<compile_context>
chip_gen: v7x
topology: tpu7x:2x2x1
jax: 0.10.0
libtpu: 0.0.40
codegen_flags: <defaults>
</compile_context>

<pallas_src>
import functools
import math

import jax
import jax.numpy as jnp
from jax.experimental import pallas as pl
from jax.experimental.pallas import tpu as pltpu


# ---------------------------------------------------------------------------
# Fused kernel: conv chain + BiLSTM + MHA + mean + fc + head.  Grid: (B,)
# ---------------------------------------------------------------------------
def _fused_backbone_kernel(p1_ref, w1_ref, b1_ref, w2_ref, b2_ref, w3_ref, b3_ref,
                           wih_ref, bih_ref, whh_ref,
                           wqkv_ref, bqkv_ref, wo_ref, bo_ref,
                           wfc_ref, bfc_ref, whd_ref, bhd_ref,
                           feat_ref, logits_ref,
                           h1_ref, h2_ref,
                           *, st2, st3, n_heads):
    bf16 = jnp.bfloat16
    f32 = jnp.float32

    # ---- conv1: wrapper-built im2col patches -> single lane-dense matmul ----
    h1 = jnp.dot(p1_ref[...], w1_ref[...], preferred_element_type=f32)
    h1_ref[...] = jnp.maximum(h1 + b1_ref[...], 0.0)

    # ---- conv2 / conv3: strided VMEM window loads, per-tap matmul sum -------
    def strided_conv_relu(src_ref, w_ref, b_ref, stride, out_len):
        cin = src_ref.shape[1]
        K = w_ref.shape[0] // cin
        acc = jnp.zeros((out_len, w_ref.shape[1]), f32)
        for k in range(K):
            win = src_ref[pl.ds(k, out_len, stride=stride), :].astype(bf16)
            acc = acc + jnp.dot(win, w_ref[k * cin:(k + 1) * cin, :],
                                preferred_element_type=f32)
        return jnp.maximum(acc + b_ref[...], 0.0)

    L2, C2 = h2_ref.shape
    h2_ref[...] = strided_conv_relu(h1_ref, w2_ref, b2_ref, st2, L2)
    K3 = w3_ref.shape[0] // C2
    L3 = (L2 - K3) // st3 + 1
    h3 = strided_conv_relu(h2_ref, w3_ref, b3_ref, st3, L3)          # (L3, 48)

    # ---- fused fwd/bwd LSTM input projection (bwd pre-reversed in time) -----
    h3_rev = jnp.concatenate([h3[L3 - 1 - t:L3 - t, :] for t in range(L3)], axis=0)
    h3_both = jnp.concatenate([h3, h3_rev], axis=1).astype(bf16)      # (L3, 96)
    gxp = (jnp.dot(h3_both, wih_ref[...], preferred_element_type=f32)
           + bih_ref[...])                                            # (L3, 8H)

    # ---- BiLSTM recurrence: interleaved 128-lane gates, bf16 matmul ---------
    TH = whh_ref.shape[0]          # 2H = 128
    H = TH // 2
    whh = whh_ref[...]             # (2H, 8H) bf16, loaded once
    h = jnp.zeros((1, TH), f32)
    c = jnp.zeros((1, TH), f32)
    hs = []
    for t in range(L3):            # static unroll, L3 is tiny
        rec = jnp.dot(h.astype(bf16), whh, preferred_element_type=f32)  # (1, 8H)
        g = gxp[t:t + 1, :] + rec
        i_g = jax.nn.sigmoid(g[:, 0:TH])
        f_g = jax.nn.sigmoid(g[:, TH:2 * TH])
        g_g = jnp.tanh(g[:, 2 * TH:3 * TH])
        o_g = jax.nn.sigmoid(g[:, 3 * TH:4 * TH])
        c = f_g * c + i_g * g_g
        h = o_g * jnp.tanh(c)
        hs.append(h)               # [h_fwd(t) | h_bwd(L3-1-t)]

    # Lane-dense assembly AFTER the serial loop: out[t] = [h_f(t) | h_b(t)].
    xf = jnp.concatenate([hs[t][:, 0:H] for t in range(L3)], axis=0)
    xb = jnp.concatenate([hs[L3 - 1 - t][:, H:TH] for t in range(L3)], axis=0)
    x_attn = jnp.concatenate([xf, xb], axis=1)                        # (L3, E)

    # ---- MHA: single packed QKV matmul + per-head attention -----------------
    E = TH
    hd = E // n_heads
    qkv = (jnp.dot(x_attn.astype(bf16), wqkv_ref[...],
                   preferred_element_type=f32) + bqkv_ref[...])       # (L3, 3E)
    ctx_heads = []
    for hh in range(n_heads):
        q_h = qkv[:, hh * hd:(hh + 1) * hd].astype(bf16)
        k_h = qkv[:, E + hh * hd:E + (hh + 1) * hd].astype(bf16)
        v_h = qkv[:, 2 * E + hh * hd:2 * E + (hh + 1) * hd].astype(bf16)
        s = jnp.dot(q_h, k_h.T, preferred_element_type=f32)           # (L3, L3)
        s = s - jnp.max(s, axis=-1, keepdims=True)
        p = jnp.exp(s)
        p = p * pl.reciprocal(jnp.sum(p, axis=-1, keepdims=True), approx=True)
        ctx_heads.append(jnp.dot(p.astype(bf16), v_h,
                                 preferred_element_type=f32))         # (L3, hd)
    ctx = jnp.concatenate(ctx_heads, axis=1)                          # (L3, E)
    o = (jnp.dot(ctx.astype(bf16), wo_ref[...],
                 preferred_element_type=f32) + bo_ref[...])           # (L3, E)

    # ---- mean over sequence + backbone_fc + head epilogue --------------------
    ctx_mean = jnp.sum(o, axis=0, keepdims=True) * (1.0 / L3)         # (1, E)
    feat = jnp.dot(ctx_mean, wfc_ref[...],
                   preferred_element_type=f32) + bfc_ref[...]         # (1, hidden)
    logits = jnp.dot(feat, whd_ref[...],
                     preferred_element_type=f32) + bhd_ref[...]       # (1, 2)
    feat_ref[...] = feat
    logits_ref[...] = logits


# ---------------------------------------------------------------------------
# Full forward pass (mirrors AttentionBackbone.forward)
# ---------------------------------------------------------------------------
def attention_backbone_forward(x, p, n_heads=4):
    B, T, N, C = x.shape
    cin = C * T
    H = p['w_hh_f'].shape[1]             # 64
    TH = 2 * H                           # 128
    E = TH
    hidden = p['fc_w'].shape[0]
    nh = n_heads
    hd = E // nh
    f32, bf16 = jnp.float32, jnp.bfloat16

    # Conv geometry (static).
    C1, _, K1 = p['conv1_w'].shape
    C2, _, K2 = p['conv2_w'].shape
    C3, _, K3 = p['conv3_w'].shape
    ST1, ST2, ST3 = 4, 4, 2
    L1 = (N - K1) // ST1 + 1
    L2 = (L1 - K2) // ST2 + 1
    L3 = (L2 - K3) // ST3 + 1

    # ---- input layout + conv1 im2col in the wrapper (lane-dense patches) ----
    # Channel-last (B, N, C*T) with PyTorch channel ordering c*T + t.
    x_cl = x.transpose(0, 2, 3, 1).reshape(B, N, cin).astype(f32)
    cols = [x_cl[:, k:k + (L1 - 1) * ST1 + 1:ST1, :] for k in range(K1)]
    patches1 = jnp.concatenate(cols, axis=2).astype(bf16)     # (B, L1, K1*cin)

    # ---- conv weights: (Cout, Cin, K) -> (K*Cin, Cout), rows k*Cin+ci -------
    def conv_mat(w):
        co, ci, k = w.shape
        return w.transpose(2, 1, 0).reshape(k * ci, co).astype(bf16)

    w1m, w2m, w3m = conv_mat(p['conv1_w']), conv_mat(p['conv2_w']), conv_mat(p['conv3_w'])
    b1 = p['conv1_b'].reshape(1, C1).astype(f32)
    b2 = p['conv2_b'].reshape(1, C2).astype(f32)
    b3 = p['conv3_b'].reshape(1, C3).astype(f32)

    # ---- LSTM weights, interleaved-gate layout ------------------------------
    # Lane layout (8H): [i_f|i_b, f_f|f_b, g_f|g_b, o_f|o_b], each group 2H=128.
    def gate_blocks(w):                  # (4H, X) -> 4 x (X, H)
        return [w[g * H:(g + 1) * H, :].T for g in range(4)]

    wf_ih, wb_ih = gate_blocks(p['w_ih_f']), gate_blocks(p['w_ih_b'])
    wf_hh, wb_hh = gate_blocks(p['w_hh_f']), gate_blocks(p['w_hh_b'])
    n_in = p['w_ih_f'].shape[1]          # 48
    zin = jnp.zeros((n_in, H), f32)
    zhh = jnp.zeros((H, H), f32)
    wih_cols, whh_cols, bih_cols = [], [], []
    for g in range(4):
        wih_cols.append(jnp.concatenate(
            [jnp.concatenate([wf_ih[g], zin], axis=1),
             jnp.concatenate([zin, wb_ih[g]], axis=1)], axis=0))      # (2*48, 2H)
        whh_cols.append(jnp.concatenate(
            [jnp.concatenate([wf_hh[g], zhh], axis=1),
             jnp.concatenate([zhh, wb_hh[g]], axis=1)], axis=0))      # (2H, 2H)
        bih_cols.append(jnp.concatenate(
            [p['b_ih_f'][g * H:(g + 1) * H] + p['b_hh_f'][g * H:(g + 1) * H],
             p['b_ih_b'][g * H:(g + 1) * H] + p['b_hh_b'][g * H:(g + 1) * H]]))
    wih_big = jnp.concatenate(wih_cols, axis=1).astype(bf16)          # (96, 8H)
    whh_big = jnp.concatenate(whh_cols, axis=1).astype(bf16)          # (2H, 8H)
    bih_big = jnp.concatenate(bih_cols).reshape(1, 8 * H).astype(f32)

    # ---- attention weights: packed QKV, q-scale folded into W_q/b_q ---------
    scale = 1.0 / math.sqrt(hd)
    wq = p['attn_in_w'][0:E] * scale
    bq = p['attn_in_b'][0:E] * scale
    wk, bk = p['attn_in_w'][E:2 * E], p['attn_in_b'][E:2 * E]
    wv, bv = p['attn_in_w'][2 * E:3 * E], p['attn_in_b'][2 * E:3 * E]
    wqkv = jnp.concatenate([wq.T, wk.T, wv.T], axis=1).astype(bf16)   # (E, 3E)
    bqkv = jnp.concatenate([bq, bk, bv]).reshape(1, 3 * E).astype(f32)
    wo = p['attn_out_w'].T.astype(bf16)                               # (E, E)
    bo = p['attn_out_b'].reshape(1, E).astype(f32)
    wfc = p['fc_w'].T.astype(f32)                                     # (E, hidden)
    bfc = p['fc_b'].reshape(1, hidden).astype(f32)
    whd = p['head_w'].T.astype(f32)                                   # (hidden, 2)
    bhd = p['head_b'].reshape(1, 2).astype(f32)

    def const_spec(a):                   # full-array block, constant index map
        nd = a.ndim
        return pl.BlockSpec(a.shape, lambda b, _n=nd: (0,) * _n)

    feat3, logits3 = pl.pallas_call(
        functools.partial(_fused_backbone_kernel, st2=ST2, st3=ST3, n_heads=nh),
        grid=(B,),
        in_specs=[pl.BlockSpec((None, L1, K1 * cin), lambda b: (b, 0, 0)),
                  const_spec(w1m), const_spec(b1),
                  const_spec(w2m), const_spec(b2),
                  const_spec(w3m), const_spec(b3),
                  const_spec(wih_big), const_spec(bih_big), const_spec(whh_big),
                  const_spec(wqkv), const_spec(bqkv),
                  const_spec(wo), const_spec(bo),
                  const_spec(wfc), const_spec(bfc),
                  const_spec(whd), const_spec(bhd)],
        out_specs=(pl.BlockSpec((None, 1, hidden), lambda b: (b, 0, 0)),
                   pl.BlockSpec((None, 1, 2), lambda b: (b, 0, 0))),
        out_shape=(jax.ShapeDtypeStruct((B, 1, hidden), f32),
                   jax.ShapeDtypeStruct((B, 1, 2), f32)),
        scratch_shapes=[pltpu.VMEM((L1, C1), f32),     # conv1 activations
                        pltpu.VMEM((L2, C2), f32)],    # conv2 activations
        compiler_params=pltpu.CompilerParams(dimension_semantics=("parallel",)),
    )(patches1, w1m, b1, w2m, b2, w3m, b3,
      wih_big, bih_big, whh_big, wqkv, bqkv, wo, bo, wfc, bfc, whd, bhd)

    return logits3[:, 0, :], feat3[:, 0, :]


# ---------------------------------------------------------------------------
# Deterministic parameter init (PyTorch weight layouts, synthetic values)
# ---------------------------------------------------------------------------
def init_params(key, seq_len, hidden_size):
    C = 2
    cin = C * seq_len
    H, E = 64, 128
    shapes = {
        'conv1_w': (24, cin, 10), 'conv1_b': (24,),
        'conv2_w': (36, 24, 8),   'conv2_b': (36,),
        'conv3_w': (48, 36, 4),   'conv3_b': (48,),
        'w_ih_f': (4 * H, 48), 'w_hh_f': (4 * H, H),
        'b_ih_f': (4 * H,),    'b_hh_f': (4 * H,),
        'w_ih_b': (4 * H, 48), 'w_hh_b': (4 * H, H),
        'b_ih_b': (4 * H,),    'b_hh_b': (4 * H,),
        'attn_in_w': (3 * E, E), 'attn_in_b': (3 * E,),
        'attn_out_w': (E, E),    'attn_out_b': (E,),
        'fc_w': (hidden_size, E), 'fc_b': (hidden_size,),
        'head_w': (2, hidden_size), 'head_b': (2,),
    }
    params = {}
    keys = jax.random.split(key, len(shapes))
    for k, (name, shp) in zip(keys, sorted(shapes.items())):
        fan_in = shp[-1] if len(shp) > 1 else shp[0]
        params[name] = (jax.random.normal(k, shp, jnp.float32)
                        / math.sqrt(max(fan_in, 1)))
    return params


if __name__ == "__main__":
    B, T, N, C = 2, 4, 256, 2          # batch, seq_len, num_ranges, channels
    hidden_size = 32

    key = jax.random.PRNGKey(0)
    kx, kp = jax.random.split(key)
    x = jax.random.normal(kx, (B, T, N, C), jnp.float32)
    params = init_params(kp, seq_len=T, hidden_size=hidden_size)

    fwd = jax.jit(attention_backbone_forward)
    logits, feat = fwd(x, params)
    jax.block_until_ready((logits, feat))
    assert logits.shape == (B, 2) and feat.shape == (B, hidden_size)
    assert bool(jnp.all(jnp.isfinite(logits))) and bool(jnp.all(jnp.isfinite(feat)))
    print("KERNEL_OK")
</pallas_src>

<mosaic_0001>
module attributes {stable_mosaic.version = 11 : i64} {
  func.func @_fused_backbone_kernel(%arg0: i32, %arg1: memref<1x62x80xbf16, #tpu.memory_space<vmem>>, %arg2: memref<80x24xbf16, #tpu.memory_space<vmem>>, %arg3: memref<1x24xf32, #tpu.memory_space<vmem>>, %arg4: memref<192x36xbf16, #tpu.memory_space<vmem>>, %arg5: memref<1x36xf32, #tpu.memory_space<vmem>>, %arg6: memref<144x48xbf16, #tpu.memory_space<vmem>>, %arg7: memref<1x48xf32, #tpu.memory_space<vmem>>, %arg8: memref<96x512xbf16, #tpu.memory_space<vmem>>, %arg9: memref<1x512xf32, #tpu.memory_space<vmem>>, %arg10: memref<128x512xbf16, #tpu.memory_space<vmem>>, %arg11: memref<128x384xbf16, #tpu.memory_space<vmem>>, %arg12: memref<1x384xf32, #tpu.memory_space<vmem>>, %arg13: memref<128x128xbf16, #tpu.memory_space<vmem>>, %arg14: memref<1x128xf32, #tpu.memory_space<vmem>>, %arg15: memref<128x32xf32, #tpu.memory_space<vmem>>, %arg16: memref<1x32xf32, #tpu.memory_space<vmem>>, %arg17: memref<32x2xf32, #tpu.memory_space<vmem>>, %arg18: memref<1x2xf32, #tpu.memory_space<vmem>>, %arg19: memref<1x1x32xf32, #tpu.memory_space<vmem>>, %arg20: memref<1x1x2xf32, #tpu.memory_space<vmem>>, %arg21: memref<62x24xf32, #tpu.memory_space<vmem>>, %arg22: memref<14x36xf32, #tpu.memory_space<vmem>>) attributes {dimension_semantics = [#tpu.dimension_semantics<parallel>], iteration_bounds = array<i64: 2>, scalar_prefetch = 0 : i64, scratch_operands = 2 : i64, tpu.core_type = #tpu.core_type<tc>, window_params = [{transform_indices = @transform_0, window_bounds = array<i64: 1, 62, 80>}, {pipeline_mode = #tpu.pipeline_mode<synchronous>, transform_indices = @transform_1, window_bounds = array<i64: 80, 24>}, {pipeline_mode = #tpu.pipeline_mode<synchronous>, transform_indices = @transform_2, window_bounds = array<i64: 1, 24>}, {pipeline_mode = #tpu.pipeline_mode<synchronous>, transform_indices = @transform_3, window_bounds = array<i64: 192, 36>}, {pipeline_mode = #tpu.pipeline_mode<synchronous>, transform_indices = @transform_4, window_bounds = array<i64: 1, 36>}, {pipeline_mode = #tpu.pipeline_mode<synchronous>, transform_indices = @transform_5, window_bounds = array<i64: 144, 48>}, {pipeline_mode = #tpu.pipeline_mode<synchronous>, transform_indices = @transform_6, window_bounds = array<i64: 1, 48>}, {pipeline_mode = #tpu.pipeline_mode<synchronous>, transform_indices = @transform_7, window_bounds = array<i64: 96, 512>}, {pipeline_mode = #tpu.pipeline_mode<synchronous>, transform_indices = @transform_8, window_bounds = array<i64: 1, 512>}, {pipeline_mode = #tpu.pipeline_mode<synchronous>, transform_indices = @transform_9, window_bounds = array<i64: 128, 512>}, {pipeline_mode = #tpu.pipeline_mode<synchronous>, transform_indices = @transform_10, window_bounds = array<i64: 128, 384>}, {pipeline_mode = #tpu.pipeline_mode<synchronous>, transform_indices = @transform_11, window_bounds = array<i64: 1, 384>}, {pipeline_mode = #tpu.pipeline_mode<synchronous>, transform_indices = @transform_12, window_bounds = array<i64: 128, 128>}, {pipeline_mode = #tpu.pipeline_mode<synchronous>, transform_indices = @transform_13, window_bounds = array<i64: 1, 128>}, {pipeline_mode = #tpu.pipeline_mode<synchronous>, transform_indices = @transform_14, window_bounds = array<i64: 128, 32>}, {pipeline_mode = #tpu.pipeline_mode<synchronous>, transform_indices = @transform_15, window_bounds = array<i64: 1, 32>}, {pipeline_mode = #tpu.pipeline_mode<synchronous>, transform_indices = @transform_16, window_bounds = array<i64: 32, 2>}, {pipeline_mode = #tpu.pipeline_mode<synchronous>, transform_indices = @transform_17, window_bounds = array<i64: 1, 2>}, {transform_indices = @transform_18, window_bounds = array<i64: 1, 1, 32>}, {transform_indices = @transform_19, window_bounds = array<i64: 1, 1, 2>}]} {
    %c0 = arith.constant 0 : index
    %c0_0 = arith.constant 0 : index
    %c0_1 = arith.constant 0 : index
    %0 = vector.load %arg1[%c0, %c0_0, %c0_1] : memref<1x62x80xbf16, #tpu.memory_space<vmem>>, vector<1x62x80xbf16>
    %1 = vector.shape_cast %0 : vector<1x62x80xbf16> to vector<62x80xbf16>
    %c0_2 = arith.constant 0 : index
    %c0_3 = arith.constant 0 : index
    %2 = vector.load %arg2[%c0_2, %c0_3] : memref<80x24xbf16, #tpu.memory_space<vmem>>, vector<80x24xbf16>
    %cst = arith.constant dense<0.000000e+00> : vector<62x24xf32>
    %3 = tpu.matmul %1, %2, %cst {dimension_numbers = #tpu.dot_dimension_numbers<[1], [0], [0], [1], [0, 0, 1, 1], [], []>} : vector<62x80xbf16>, vector<80x24xbf16>, vector<62x24xf32> -> vector<62x24xf32>
    %c0_4 = arith.constant 0 : index
    %c0_5 = arith.constant 0 : index
    %4 = vector.load %arg3[%c0_4, %c0_5] : memref<1x24xf32, #tpu.memory_space<vmem>>, vector<1x24xf32>
    %5 = vector.broadcast %4 : vector<1x24xf32> to vector<62x24xf32>
    %6 = arith.addf %3, %5 : vector<62x24xf32>
    %cst_6 = arith.constant 0.000000e+00 : f32
    %7 = vector.broadcast %cst_6 : f32 to vector<62x24xf32>
    %8 = arith.maximumf %6, %7 : vector<62x24xf32>
    %c0_7 = arith.constant 0 : index
    %c0_8 = arith.constant 0 : index
    %9 = vector.load %arg21[%c0_7, %c0_8] : memref<62x24xf32, #tpu.memory_space<vmem>>, vector<62x24xf32>
    tpu.vector_store %arg21[%c0_7, %c0_8], %8 {strides = array<i32>} : memref<62x24xf32, #tpu.memory_space<vmem>>, vector<62x24xf32>,
    %cst_9 = arith.constant 0.000000e+00 : f32
    %10 = vector.broadcast %cst_9 : f32 to vector<14x36xf32>
    %c0_10 = arith.constant 0 : index
    %c0_11 = arith.constant 0 : index
    %11 = tpu.strided_load %arg21[%c0_10, %c0_11] {strides = array<i32: 4, 1>} : memref<62x24xf32, #tpu.memory_space<vmem>>, vector<14x24xf32>
    %12 = arith.truncf %11 : vector<14x24xf32> to vector<14x24xbf16>
    %c0_12 = arith.constant 0 : index
    %c0_13 = arith.constant 0 : index
    %13 = vector.load %arg4[%c0_12, %c0_13] : memref<192x36xbf16, #tpu.memory_space<vmem>>, vector<24x36xbf16>
    %cst_14 = arith.constant dense<0.000000e+00> : vector<14x36xf32>
    %14 = tpu.matmul %12, %13, %cst_14 {dimension_numbers = #tpu.dot_dimension_numbers<[1], [0], [0], [1], [0, 0, 1, 1], [], []>} : vector<14x24xbf16>, vector<24x36xbf16>, vector<14x36xf32> -> vector<14x36xf32>
    %15 = arith.addf %10, %14 : vector<14x36xf32>
    %c1 = arith.constant 1 : index
    %c0_15 = arith.constant 0 : index
    %16 = tpu.strided_load %arg21[%c1, %c0_15] {strides = array<i32: 4, 1>} : memref<62x24xf32, #tpu.memory_space<vmem>>, vector<14x24xf32>
    %17 = arith.truncf %16 : vector<14x24xf32> to vector<14x24xbf16>
    %c24 = arith.constant 24 : index
    %c0_16 = arith.constant 0 : index
    %18 = vector.load %arg4[%c24, %c0_16] : memref<192x36xbf16, #tpu.memory_space<vmem>>, vector<24x36xbf16>
    %cst_17 = arith.constant dense<0.000000e+00> : vector<14x36xf32>
    %19 = tpu.matmul %17, %18, %cst_17 {dimension_numbers = #tpu.dot_dimension_numbers<[1], [0], [0], [1], [0, 0, 1, 1], [], []>} : vector<14x24xbf16>, vector<24x36xbf16>, vector<14x36xf32> -> vector<14x36xf32>
    %20 = arith.addf %15, %19 : vector<14x36xf32>
    %c2 = arith.constant 2 : index
    %c0_18 = arith.constant 0 : index
    %21 = tpu.strided_load %arg21[%c2, %c0_18] {strides = array<i32: 4, 1>} : memref<62x24xf32, #tpu.memory_space<vmem>>, vector<14x24xf32>
    %22 = arith.truncf %21 : vector<14x24xf32> to vector<14x24xbf16>
    %c48 = arith.constant 48 : index
    %c0_19 = arith.constant 0 : index
    %23 = vector.load %arg4[%c48, %c0_19] : memref<192x36xbf16, #tpu.memory_space<vmem>>, vector<24x36xbf16>
    %cst_20 = arith.constant dense<0.000000e+00> : vector<14x36xf32>
    %24 = tpu.matmul %22, %23, %cst_20 {dimension_numbers = #tpu.dot_dimension_numbers<[1], [0], [0], [1], [0, 0, 1, 1], [], []>} : vector<14x24xbf16>, vector<24x36xbf16>, vector<14x36xf32> -> vector<14x36xf32>
    %25 = arith.addf %20, %24 : vector<14x36xf32>
    %c3 = arith.constant 3 : index
    %c0_21 = arith.constant 0 : index
    %26 = tpu.strided_load %arg21[%c3, %c0_21] {strides = array<i32: 4, 1>} : memref<62x24xf32, #tpu.memory_space<vmem>>, vector<14x24xf32>
    %27 = arith.truncf %26 : vector<14x24xf32> to vector<14x24xbf16>
    %c72 = arith.constant 72 : index
    %c0_22 = arith.constant 0 : index
    %28 = vector.load %arg4[%c72, %c0_22] : memref<192x36xbf16, #tpu.memory_space<vmem>>, vector<24x36xbf16>
    %cst_23 = arith.constant dense<0.000000e+00> : vector<14x36xf32>
    %29 = tpu.matmul %27, %28, %cst_23 {dimension_numbers = #tpu.dot_dimension_numbers<[1], [0], [0], [1], [0, 0, 1, 1], [], []>} : vector<14x24xbf16>, vector<24x36xbf16>, vector<14x36xf32> -> vector<14x36xf32>
    %30 = arith.addf %25, %29 : vector<14x36xf32>
    %c4 = arith.constant 4 : index
    %c0_24 = arith.constant 0 : index
    %31 = tpu.strided_load %arg21[%c4, %c0_24] {strides = array<i32: 4, 1>} : memref<62x24xf32, #tpu.memory_space<vmem>>, vector<14x24xf32>
    %32 = arith.truncf %31 : vector<14x24xf32> to vector<14x24xbf16>
    %c96 = arith.constant 96 : index
    %c0_25 = arith.constant 0 : index
    %33 = vector.load %arg4[%c96, %c0_25] : memref<192x36xbf16, #tpu.memory_space<vmem>>, vector<24x36xbf16>
    %cst_26 = arith.constant dense<0.000000e+00> : vector<14x36xf32>
    %34 = tpu.matmul %32, %33, %cst_26 {dimension_numbers = #tpu.dot_dimension_numbers<[1], [0], [0], [1], [0, 0, 1, 1], [], []>} : vector<14x24xbf16>, vector<24x36xbf16>, vector<14x36xf32> -> vector<14x36xf32>
    %35 = arith.addf %30, %34 : vector<14x36xf32>
    %c5 = arith.constant 5 : index
    %c0_27 = arith.constant 0 : index
    %36 = tpu.strided_load %arg21[%c5, %c0_27] {strides = array<i32: 4, 1>} : memref<62x24xf32, #tpu.memory_space<vmem>>, vector<14x24xf32>
    %37 = arith.truncf %36 : vector<14x24xf32> to vector<14x24xbf16>
    %c120 = arith.constant 120 : index
    %c0_28 = arith.constant 0 : index
    %38 = vector.load %arg4[%c120, %c0_28] : memref<192x36xbf16, #tpu.memory_space<vmem>>, vector<24x36xbf16>
    %cst_29 = arith.constant dense<0.000000e+00> : vector<14x36xf32>
    %39 = tpu.matmul %37, %38, %cst_29 {dimension_numbers = #tpu.dot_dimension_numbers<[1], [0], [0], [1], [0, 0, 1, 1], [], []>} : vector<14x24xbf16>, vector<24x36xbf16>, vector<14x36xf32> -> vector<14x36xf32>
    %40 = arith.addf %35, %39 : vector<14x36xf32>
    %c6 = arith.constant 6 : index
    %c0_30 = arith.constant 0 : index
    %41 = tpu.strided_load %arg21[%c6, %c0_30] {strides = array<i32: 4, 1>} : memref<62x24xf32, #tpu.memory_space<vmem>>, vector<14x24xf32>
    %42 = arith.truncf %41 : vector<14x24xf32> to vector<14x24xbf16>
    %c144 = arith.constant 144 : index
    %c0_31 = arith.constant 0 : index
    %43 = vector.load %arg4[%c144, %c0_31] : memref<192x36xbf16, #tpu.memory_space<vmem>>, vector<24x36xbf16>
    %cst_32 = arith.constant dense<0.000000e+00> : vector<14x36xf32>
    %44 = tpu.matmul %42, %43, %cst_32 {dimension_numbers = #tpu.dot_dimension_numbers<[1], [0], [0], [1], [0, 0, 1, 1], [], []>} : vector<14x24xbf16>, vector<24x36xbf16>, vector<14x36xf32> -> vector<14x36xf32>
    %45 = arith.addf %40, %44 : vector<14x36xf32>
    %c7 = arith.constant 7 : index
    %c0_33 = arith.constant 0 : index
    %46 = tpu.strided_load %arg21[%c7, %c0_33] {strides = array<i32: 4, 1>} : memref<62x24xf32, #tpu.memory_space<vmem>>, vector<14x24xf32>
    %47 = arith.truncf %46 : vector<14x24xf32> to vector<14x24xbf16>
    %c168 = arith.constant 168 : index
    %c0_34 = arith.constant 0 : index
    %48 = vector.load %arg4[%c168, %c0_34] : memref<192x36xbf16, #tpu.memory_space<vmem>>, vector<24x36xbf16>
    %cst_35 = arith.constant dense<0.000000e+00> : vector<14x36xf32>
    %49 = tpu.matmul %47, %48, %cst_35 {dimension_numbers = #tpu.dot_dimension_numbers<[1], [0], [0], [1], [0, 0, 1, 1], [], []>} : vector<14x24xbf16>, vector<24x36xbf16>, vector<14x36xf32> -> vector<14x36xf32>
    %50 = arith.addf %45, %49 : vector<14x36xf32>
    %c0_36 = arith.constant 0 : index
    %c0_37 = arith.constant 0 : index
    %51 = vector.load %arg5[%c0_36, %c0_37] : memref<1x36xf32, #tpu.memory_space<vmem>>, vector<1x36xf32>
    %52 = vector.broadcast %51 : vector<1x36xf32> to vector<14x36xf32>
    %53 = arith.addf %50, %52 : vector<14x36xf32>
    %cst_38 = arith.constant 0.000000e+00 : f32
    %54 = vector.broadcast %cst_38 : f32 to vector<14x36xf32>
    %55 = arith.maximumf %53, %54 : vector<14x36xf32>
    %c0_39 = arith.constant 0 : index
    %c0_40 = arith.constant 0 : index
    %56 = vector.load %arg22[%c0_39, %c0_40] : memref<14x36xf32, #tpu.memory_space<vmem>>, vector<14x36xf32>
    tpu.vector_store %arg22[%c0_39, %c0_40], %55 {strides = array<i32>} : memref<14x36xf32, #tpu.memory_space<vmem>>, vector<14x36xf32>,
    %cst_41 = arith.constant 0.000000e+00 : f32
    %57 = vector.broadcast %cst_41 : f32 to vector<6x48xf32>
    %c0_42 = arith.constant 0 : index
    %c0_43 = arith.constant 0 : index
    %58 = tpu.strided_load %arg22[%c0_42, %c0_43] {strides = array<i32: 2, 1>} : memref<14x36xf32, #tpu.memory_space<vmem>>, vector<6x36xf32>
    %59 = arith.truncf %58 : vector<6x36xf32> to vector<6x36xbf16>
    %c0_44 = arith.constant 0 : index
    %c0_45 = arith.constant 0 : index
    %60 = vector.load %arg6[%c0_44, %c0_45] : memref<144x48xbf16, #tpu.memory_space<vmem>>, vector<36x48xbf16>
    %cst_46 = arith.constant dense<0.000000e+00> : vector<6x48xf32>
    %61 = tpu.matmul %59, %60, %cst_46 {dimension_numbers = #tpu.dot_dimension_numbers<[1], [0], [0], [1], [0, 0, 1, 1], [], []>} : vector<6x36xbf16>, vector<36x48xbf16>, vector<6x48xf32> -> vector<6x48xf32>
    %62 = arith.addf %57, %61 : vector<6x48xf32>
    %c1_47 = arith.constant 1 : index
    %c0_48 = arith.constant 0 : index
    %63 = tpu.strided_load %arg22[%c1_47, %c0_48] {strides = array<i32: 2, 1>} : memref<14x36xf32, #tpu.memory_space<vmem>>, vector<6x36xf32>
    %64 = arith.truncf %63 : vector<6x36xf32> to vector<6x36xbf16>
    %c36 = arith.constant 36 : index
    %c0_49 = arith.constant 0 : index
    %65 = vector.load %arg6[%c36, %c0_49] : memref<144x48xbf16, #tpu.memory_space<vmem>>, vector<36x48xbf16>
    %cst_50 = arith.constant dense<0.000000e+00> : vector<6x48xf32>
    %66 = tpu.matmul %64, %65, %cst_50 {dimension_numbers = #tpu.dot_dimension_numbers<[1], [0], [0], [1], [0, 0, 1, 1], [], []>} : vector<6x36xbf16>, vector<36x48xbf16>, vector<6x48xf32> -> vector<6x48xf32>
    %67 = arith.addf %62, %66 : vector<6x48xf32>
    %c2_51 = arith.constant 2 : index
    %c0_52 = arith.constant 0 : index
    %68 = tpu.strided_load %arg22[%c2_51, %c0_52] {strides = array<i32: 2, 1>} : memref<14x36xf32, #tpu.memory_space<vmem>>, vector<6x36xf32>
    %69 = arith.truncf %68 : vector<6x36xf32> to vector<6x36xbf16>
    %c72_53 = arith.constant 72 : index
    %c0_54 = arith.constant 0 : index
    %70 = vector.load %arg6[%c72_53, %c0_54] : memref<144x48xbf16, #tpu.memory_space<vmem>>, vector<36x48xbf16>
    %cst_55 = arith.constant dense<0.000000e+00> : vector<6x48xf32>
    %71 = tpu.matmul %69, %70, %cst_55 {dimension_numbers = #tpu.dot_dimension_numbers<[1], [0], [0], [1], [0, 0, 1, 1], [], []>} : vector<6x36xbf16>, vector<36x48xbf16>, vector<6x48xf32> -> vector<6x48xf32>
    %72 = arith.addf %67, %71 : vector<6x48xf32>
    %c3_56 = arith.constant 3 : index
    %c0_57 = arith.constant 0 : index
    %73 = tpu.strided_load %arg22[%c3_56, %c0_57] {strides = array<i32: 2, 1>} : memref<14x36xf32, #tpu.memory_space<vmem>>, vector<6x36xf32>
    %74 = arith.truncf %73 : vector<6x36xf32> to vector<6x36xbf16>
    %c108 = arith.constant 108 : index
    %c0_58 = arith.constant 0 : index
    %75 = vector.load %arg6[%c108, %c0_58] : memref<144x48xbf16, #tpu.memory_space<vmem>>, vector<36x48xbf16>
    %cst_59 = arith.constant dense<0.000000e+00> : vector<6x48xf32>
    %76 = tpu.matmul %74, %75, %cst_59 {dimension_numbers = #tpu.dot_dimension_numbers<[1], [0], [0], [1], [0, 0, 1, 1], [], []>} : vector<6x36xbf16>, vector<36x48xbf16>, vector<6x48xf32> -> vector<6x48xf32>
    %77 = arith.addf %72, %76 : vector<6x48xf32>
    %c0_60 = arith.constant 0 : index
    %c0_61 = arith.constant 0 : index
    %78 = vector.load %arg7[%c0_60, %c0_61] : memref<1x48xf32, #tpu.memory_space<vmem>>, vector<1x48xf32>
    %79 = vector.broadcast %78 : vector<1x48xf32> to vector<6x48xf32>
    %80 = arith.addf %77, %79 : vector<6x48xf32>
    %cst_62 = arith.constant 0.000000e+00 : f32
    %81 = vector.broadcast %cst_62 : f32 to vector<6x48xf32>
    %82 = arith.maximumf %80, %81 : vector<6x48xf32>
    %83 = vector.extract_strided_slice %82 {offsets = [5, 0], sizes = [1, 48], strides = [1, 1]} : vector<6x48xf32> to vector<1x48xf32>
    %84 = vector.extract_strided_slice %82 {offsets = [4, 0], sizes = [1, 48], strides = [1, 1]} : vector<6x48xf32> to vector<1x48xf32>
    %85 = vector.extract_strided_slice %82 {offsets = [3, 0], sizes = [1, 48], strides = [1, 1]} : vector<6x48xf32> to vector<1x48xf32>
    %86 = vector.extract_strided_slice %82 {offsets = [2, 0], sizes = [1, 48], strides = [1, 1]} : vector<6x48xf32> to vector<1x48xf32>
    %87 = vector.extract_strided_slice %82 {offsets = [1, 0], sizes = [1, 48], strides = [1, 1]} : vector<6x48xf32> to vector<1x48xf32>
    %88 = vector.extract_strided_slice %82 {offsets = [0, 0], sizes = [1, 48], strides = [1, 1]} : vector<6x48xf32> to vector<1x48xf32>
    %89 = tpu.concatenate %83, %84, %85, %86, %87, %88 in 0 : vector<1x48xf32>, vector<1x48xf32>, vector<1x48xf32>, vector<1x48xf32>, vector<1x48xf32>, vector<1x48xf32> -> vector<6x48xf32>
    %90 = tpu.concatenate %82, %89 in 1 : vector<6x48xf32>, vector<6x48xf32> -> vector<6x96xf32>
    %91 = arith.truncf %90 : vector<6x96xf32> to vector<6x96xbf16>
    %c0_63 = arith.constant 0 : index
    %c0_64 = arith.constant 0 : index
    %92 = vector.load %arg8[%c0_63, %c0_64] : memref<96x512xbf16, #tpu.memory_space<vmem>>, vector<96x512xbf16>
    %cst_65 = arith.constant dense<0.000000e+00> : vector<6x512xf32>
    %93 = tpu.matmul %91, %92, %cst_65 {dimension_numbers = #tpu.dot_dimension_numbers<[1], [0], [0], [1], [0, 0, 1, 1], [], []>} : vector<6x96xbf16>, vector<96x512xbf16>, vector<6x512xf32> -> vector<6x512xf32>
    %c0_66 = arith.constant 0 : index
    %c0_67 = arith.constant 0 : index
    %94 = vector.load %arg9[%c0_66, %c0_67] : memref<1x512xf32, #tpu.memory_space<vmem>>, vector<1x512xf32>
    %95 = vector.broadcast %94 : vector<1x512xf32> to vector<6x512xf32>
    %96 = arith.addf %93, %95 : vector<6x512xf32>
    %c0_68 = arith.constant 0 : index
    %c0_69 = arith.constant 0 : index
    %97 = vector.load %arg10[%c0_68, %c0_69] : memref<128x512xbf16, #tpu.memory_space<vmem>>, vector<128x512xbf16>
    %cst_70 = arith.constant 0.000000e+00 : f32
    %98 = vector.broadcast %cst_70 : f32 to vector<1x128xf32>
    %cst_71 = arith.constant 0.000000e+00 : f32
    %99 = vector.broadcast %cst_71 : f32 to vector<1x128xf32>
    %100 = arith.truncf %98 : vector<1x128xf32> to vector<1x128xbf16>
    %cst_72 = arith.constant dense<0.000000e+00> : vector<1x512xf32>
    %101 = tpu.matmul %100, %97, %cst_72 {dimension_numbers = #tpu.dot_dimension_numbers<[1], [0], [0], [1], [0, 0, 1, 1], [], []>} : vector<1x128xbf16>, vector<128x512xbf16>, vector<1x512xf32> -> vector<1x512xf32>
    %102 = vector.extract_strided_slice %96 {offsets = [0, 0], sizes = [1, 512], strides = [1, 1]} : vector<6x512xf32> to vector<1x512xf32>
    %103 = arith.addf %102, %101 : vector<1x512xf32>
    %104 = vector.extract_strided_slice %103 {offsets = [0, 0], sizes = [1, 128], strides = [1, 1]} : vector<1x512xf32> to vector<1x128xf32>
    %105 = arith.negf %104 : vector<1x128xf32>
    %106 = math.exp %105 : vector<1x128xf32>
    %cst_73 = arith.constant 1.000000e+00 : f32
    %107 = vector.broadcast %cst_73 : f32 to vector<1x128xf32>
    %108 = arith.addf %107, %106 : vector<1x128xf32>
    %109 = arith.divf %107, %108 : vector<1x128xf32>
    %110 = vector.extract_strided_slice %103 {offsets = [0, 128], sizes = [1, 128], strides = [1, 1]} : vector<1x512xf32> to vector<1x128xf32>
    %111 = arith.negf %110 : vector<1x128xf32>
    %112 = math.exp %111 : vector<1x128xf32>
    %cst_74 = arith.constant 1.000000e+00 : f32
    %113 = vector.broadcast %cst_74 : f32 to vector<1x128xf32>
    %114 = arith.addf %113, %112 : vector<1x128xf32>
    %115 = arith.divf %113, %114 : vector<1x128xf32>
    %116 = vector.extract_strided_slice %103 {offsets = [0, 256], sizes = [1, 128], strides = [1, 1]} : vector<1x512xf32> to vector<1x128xf32>
    %117 = math.tanh %116 : vector<1x128xf32>
    %118 = vector.extract_strided_slice %103 {offsets = [0, 384], sizes = [1, 128], strides = [1, 1]} : vector<1x512xf32> to vector<1x128xf32>
    %119 = arith.negf %118 : vector<1x128xf32>
    %120 = math.exp %119 : vector<1x128xf32>
    %cst_75 = arith.constant 1.000000e+00 : f32
    %121 = vector.broadcast %cst_75 : f32 to vector<1x128xf32>
    %122 = arith.addf %121, %120 : vector<1x128xf32>
    %123 = arith.divf %121, %122 : vector<1x128xf32>
    %124 = arith.mulf %115, %99 : vector<1x128xf32>
    %125 = arith.mulf %109, %117 : vector<1x128xf32>
    %126 = arith.addf %124, %125 : vector<1x128xf32>
    %127 = math.tanh %126 : vector<1x128xf32>
    %128 = arith.mulf %123, %127 : vector<1x128xf32>
    %129 = arith.truncf %128 : vector<1x128xf32> to vector<1x128xbf16>
    %cst_76 = arith.constant dense<0.000000e+00> : vector<1x512xf32>
    %130 = tpu.matmul %129, %97, %cst_76 {dimension_numbers = #tpu.dot_dimension_numbers<[1], [0], [0], [1], [0, 0, 1, 1], [], []>} : vector<1x128xbf16>, vector<128x512xbf16>, vector<1x512xf32> -> vector<1x512xf32>
    %131 = vector.extract_strided_slice %96 {offsets = [1, 0], sizes = [1, 512], strides = [1, 1]} : vector<6x512xf32> to vector<1x512xf32>
    %132 = arith.addf %131, %130 : vector<1x512xf32>
    %133 = vector.extract_strided_slice %132 {offsets = [0, 0], sizes = [1, 128], strides = [1, 1]} : vector<1x512xf32> to vector<1x128xf32>
    %134 = arith.negf %133 : vector<1x128xf32>
    %135 = math.exp %134 : vector<1x128xf32>
    %cst_77 = arith.constant 1.000000e+00 : f32
    %136 = vector.broadcast %cst_77 : f32 to vector<1x128xf32>
    %137 = arith.addf %136, %135 : vector<1x128xf32>
    %138 = arith.divf %136, %137 : vector<1x128xf32>
    %139 = vector.extract_strided_slice %132 {offsets = [0, 128], sizes = [1, 128], strides = [1, 1]} : vector<1x512xf32> to vector<1x128xf32>
    %140 = arith.negf %139 : vector<1x128xf32>
    %141 = math.exp %140 : vector<1x128xf32>
    %cst_78 = arith.constant 1.000000e+00 : f32
    %142 = vector.broadcast %cst_78 : f32 to vector<1x128xf32>
    %143 = arith.addf %142, %141 : vector<1x128xf32>
    %144 = arith.divf %142, %143 : vector<1x128xf32>
    %145 = vector.extract_strided_slice %132 {offsets = [0, 256], sizes = [1, 128], strides = [1, 1]} : vector<1x512xf32> to vector<1x128xf32>
    %146 = math.tanh %145 : vector<1x128xf32>
    %147 = vector.extract_strided_slice %132 {offsets = [0, 384], sizes = [1, 128], strides = [1, 1]} : vector<1x512xf32> to vector<1x128xf32>
    %148 = arith.negf %147 : vector<1x128xf32>
    %149 = math.exp %148 : vector<1x128xf32>
    %cst_79 = arith.constant 1.000000e+00 : f32
    %150 = vector.broadcast %cst_79 : f32 to vector<1x128xf32>
    %151 = arith.addf %150, %149 : vector<1x128xf32>
    %152 = arith.divf %150, %151 : vector<1x128xf32>
    %153 = arith.mulf %144, %126 : vector<1x128xf32>
    %154 = arith.mulf %138, %146 : vector<1x128xf32>
    %155 = arith.addf %153, %154 : vector<1x128xf32>
    %156 = math.tanh %155 : vector<1x128xf32>
    %157 = arith.mulf %152, %156 : vector<1x128xf32>
    %158 = arith.truncf %157 : vector<1x128xf32> to vector<1x128xbf16>
    %cst_80 = arith.constant dense<0.000000e+00> : vector<1x512xf32>
    %159 = tpu.matmul %158, %97, %cst_80 {dimension_numbers = #tpu.dot_dimension_numbers<[1], [0], [0], [1], [0, 0, 1, 1], [], []>} : vector<1x128xbf16>, vector<128x512xbf16>, vector<1x512xf32> -> vector<1x512xf32>
    %160 = vector.extract_strided_slice %96 {offsets = [2, 0], sizes = [1, 512], strides = [1, 1]} : vector<6x512xf32> to vector<1x512xf32>
    %161 = arith.addf %160, %159 : vector<1x512xf32>
    %162 = vector.extract_strided_slice %161 {offsets = [0, 0], sizes = [1, 128], strides = [1, 1]} : vector<1x512xf32> to vector<1x128xf32>
    %163 = arith.negf %162 : vector<1x128xf32>
    %164 = math.exp %163 : vector<1x128xf32>
    %cst_81 = arith.constant 1.000000e+00 : f32
    %165 = vector.broadcast %cst_81 : f32 to vector<1x128xf32>
    %166 = arith.addf %165, %164 : vector<1x128xf32>
    %167 = arith.divf %165, %166 : vector<1x128xf32>
    %168 = vector.extract_strided_slice %161 {offsets = [0, 128], sizes = [1, 128], strides = [1, 1]} : vector<1x512xf32> to vector<1x128xf32>
    %169 = arith.negf %168 : vector<1x128xf32>
    %170 = math.exp %169 : vector<1x128xf32>
    %cst_82 = arith.constant 1.000000e+00 : f32
    %171 = vector.broadcast %cst_82 : f32 to vector<1x128xf32>
    %172 = arith.addf %171, %170 : vector<1x128xf32>
    %173 = arith.divf %171, %172 : vector<1x128xf32>
    %174 = vector.extract_strided_slice %161 {offsets = [0, 256], sizes = [1, 128], strides = [1, 1]} : vector<1x512xf32> to vector<1x128xf32>
    %175 = math.tanh %174 : vector<1x128xf32>
    %176 = vector.extract_strided_slice %161 {offsets = [0, 384], sizes = [1, 128], strides = [1, 1]} : vector<1x512xf32> to vector<1x128xf32>
    %177 = arith.negf %176 : vector<1x128xf32>
    %178 = math.exp %177 : vector<1x128xf32>
    %cst_83 = arith.constant 1.000000e+00 : f32
    %179 = vector.broadcast %cst_83 : f32 to vector<1x128xf32>
    %180 = arith.addf %179, %178 : vector<1x128xf32>
    %181 = arith.divf %179, %180 : vector<1x128xf32>
    %182 = arith.mulf %173, %155 : vector<1x128xf32>
    %183 = arith.mulf %167, %175 : vector<1x128xf32>
    %184 = arith.addf %182, %183 : vector<1x128xf32>
    %185 = math.tanh %184 : vector<1x128xf32>
    %186 = arith.mulf %181, %185 : vector<1x128xf32>
    %187 = arith.truncf %186 : vector<1x128xf32> to vector<1x128xbf16>
    %cst_84 = arith.constant dense<0.000000e+00> : vector<1x512xf32>
    %188 = tpu.matmul %187, %97, %cst_84 {dimension_numbers = #tpu.dot_dimension_numbers<[1], [0], [0], [1], [0, 0, 1, 1], [], []>} : vector<1x128xbf16>, vector<128x512xbf16>, vector<1x512xf32> -> vector<1x512xf32>
    %189 = vector.extract_strided_slice %96 {offsets = [3, 0], sizes = [1, 512], strides = [1, 1]} : vector<6x512xf32> to vector<1x512xf32>
    %190 = arith.addf %189, %188 : vector<1x512xf32>
    %191 = vector.extract_strided_slice %190 {offsets = [0, 0], sizes = [1, 128], strides = [1, 1]} : vector<1x512xf32> to vector<1x128xf32>
    %192 = arith.negf %191 : vector<1x128xf32>
    %193 = math.exp %192 : vector<1x128xf32>
    %cst_85 = arith.constant 1.000000e+00 : f32
    %194 = vector.broadcast %cst_85 : f32 to vector<1x128xf32>
    %195 = arith.addf %194, %193 : vector<1x128xf32>
    %196 = arith.divf %194, %195 : vector<1x128xf32>
    %197 = vector.extract_strided_slice %190 {offsets = [0, 128], sizes = [1, 128], strides = [1, 1]} : vector<1x512xf32> to vector<1x128xf32>
    %198 = arith.negf %197 : vector<1x128xf32>
    %199 = math.exp %198 : vector<1x128xf32>
    %cst_86 = arith.constant 1.000000e+00 : f32
    %200 = vector.broadcast %cst_86 : f32 to vector<1x128xf32>
    %201 = arith.addf %200, %199 : vector<1x128xf32>
    %202 = arith.divf %200, %201 : vector<1x128xf32>
    %203 = vector.extract_strided_slice %190 {offsets = [0, 256], sizes = [1, 128], strides = [1, 1]} : vector<1x512xf32> to vector<1x128xf32>
    %204 = math.tanh %203 : vector<1x128xf32>
    %205 = vector.extract_strided_slice %190 {offsets = [0, 384], sizes = [1, 128], strides = [1, 1]} : vector<1x512xf32> to vector<1x128xf32>
    %206 = arith.negf %205 : vector<1x128xf32>
    %207 = math.exp %206 : vector<1x128xf32>
    %cst_87 = arith.constant 1.000000e+00 : f32
    %208 = vector.broadcast %cst_87 : f32 to vector<1x128xf32>
    %209 = arith.addf %208, %207 : vector<1x128xf32>
    %210 = arith.divf %208, %209 : vector<1x128xf32>
    %211 = arith.mulf %202, %184 : vector<1x128xf32>
    %212 = arith.mulf %196, %204 : vector<1x128xf32>
    %213 = arith.addf %211, %212 : vector<1x128xf32>
    %214 = math.tanh %213 : vector<1x128xf32>
    %215 = arith.mulf %210, %214 : vector<1x128xf32>
    %216 = arith.truncf %215 : vector<1x128xf32> to vector<1x128xbf16>
    %cst_88 = arith.constant dense<0.000000e+00> : vector<1x512xf32>
    %217 = tpu.matmul %216, %97, %cst_88 {dimension_numbers = #tpu.dot_dimension_numbers<[1], [0], [0], [1], [0, 0, 1, 1], [], []>} : vector<1x128xbf16>, vector<128x512xbf16>, vector<1x512xf32> -> vector<1x512xf32>
    %218 = vector.extract_strided_slice %96 {offsets = [4, 0], sizes = [1, 512], strides = [1, 1]} : vector<6x512xf32> to vector<1x512xf32>
    %219 = arith.addf %218, %217 : vector<1x512xf32>
    %220 = vector.extract_strided_slice %219 {offsets = [0, 0], sizes = [1, 128], strides = [1, 1]} : vector<1x512xf32> to vector<1x128xf32>
    %221 = arith.negf %220 : vector<1x128xf32>
    %222 = math.exp %221 : vector<1x128xf32>
    %cst_89 = arith.constant 1.000000e+00 : f32
    %223 = vector.broadcast %cst_89 : f32 to vector<1x128xf32>
    %224 = arith.addf %223, %222 : vector<1x128xf32>
    %225 = arith.divf %223, %224 : vector<1x128xf32>
    %226 = vector.extract_strided_slice %219 {offsets = [0, 128], sizes = [1, 128], strides = [1, 1]} : vector<1x512xf32> to vector<1x128xf32>
    %227 = arith.negf %226 : vector<1x128xf32>
    %228 = math.exp %227 : vector<1x128xf32>
    %cst_90 = arith.constant 1.000000e+00 : f32
    %229 = vector.broadcast %cst_90 : f32 to vector<1x128xf32>
    %230 = arith.addf %229, %228 : vector<1x128xf32>
    %231 = arith.divf %229, %230 : vector<1x128xf32>
    %232 = vector.extract_strided_slice %219 {offsets = [0, 256], sizes = [1, 128], strides = [1, 1]} : vector<1x512xf32> to vector<1x128xf32>
    %233 = math.tanh %232 : vector<1x128xf32>
    %234 = vector.extract_strided_slice %219 {offsets = [0, 384], sizes = [1, 128], strides = [1, 1]} : vector<1x512xf32> to vector<1x128xf32>
    %235 = arith.negf %234 : vector<1x128xf32>
    %236 = math.exp %235 : vector<1x128xf32>
    %cst_91 = arith.constant 1.000000e+00 : f32
    %237 = vector.broadcast %cst_91 : f32 to vector<1x128xf32>
    %238 = arith.addf %237, %236 : vector<1x128xf32>
    %239 = arith.divf %237, %238 : vector<1x128xf32>
    %240 = arith.mulf %231, %213 : vector<1x128xf32>
    %241 = arith.mulf %225, %233 : vector<1x128xf32>
    %242 = arith.addf %240, %241 : vector<1x128xf32>
    %243 = math.tanh %242 : vector<1x128xf32>
    %244 = arith.mulf %239, %243 : vector<1x128xf32>
    %245 = arith.truncf %244 : vector<1x128xf32> to vector<1x128xbf16>
    %cst_92 = arith.constant dense<0.000000e+00> : vector<1x512xf32>
    %246 = tpu.matmul %245, %97, %cst_92 {dimension_numbers = #tpu.dot_dimension_numbers<[1], [0], [0], [1], [0, 0, 1, 1], [], []>} : vector<1x128xbf16>, vector<128x512xbf16>, vector<1x512xf32> -> vector<1x512xf32>
    %247 = vector.extract_strided_slice %96 {offsets = [5, 0], sizes = [1, 512], strides = [1, 1]} : vector<6x512xf32> to vector<1x512xf32>
    %248 = arith.addf %247, %246 : vector<1x512xf32>
    %249 = vector.extract_strided_slice %248 {offsets = [0, 0], sizes = [1, 128], strides = [1, 1]} : vector<1x512xf32> to vector<1x128xf32>
    %250 = arith.negf %249 : vector<1x128xf32>
    %251 = math.exp %250 : vector<1x128xf32>
    %cst_93 = arith.constant 1.000000e+00 : f32
    %252 = vector.broadcast %cst_93 : f32 to vector<1x128xf32>
    %253 = arith.addf %252, %251 : vector<1x128xf32>
    %254 = arith.divf %252, %253 : vector<1x128xf32>
    %255 = vector.extract_strided_slice %248 {offsets = [0, 128], sizes = [1, 128], strides = [1, 1]} : vector<1x512xf32> to vector<1x128xf32>
    %256 = arith.negf %255 : vector<1x128xf32>
    %257 = math.exp %256 : vector<1x128xf32>
    %cst_94 = arith.constant 1.000000e+00 : f32
    %258 = vector.broadcast %cst_94 : f32 to vector<1x128xf32>
    %259 = arith.addf %258, %257 : vector<1x128xf32>
    %260 = arith.divf %258, %259 : vector<1x128xf32>
    %261 = vector.extract_strided_slice %248 {offsets = [0, 256], sizes = [1, 128], strides = [1, 1]} : vector<1x512xf32> to vector<1x128xf32>
    %262 = math.tanh %261 : vector<1x128xf32>
    %263 = vector.extract_strided_slice %248 {offsets = [0, 384], sizes = [1, 128], strides = [1, 1]} : vector<1x512xf32> to vector<1x128xf32>
    %264 = arith.negf %263 : vector<1x128xf32>
    %265 = math.exp %264 : vector<1x128xf32>
    %cst_95 = arith.constant 1.000000e+00 : f32
    %266 = vector.broadcast %cst_95 : f32 to vector<1x128xf32>
    %267 = arith.addf %266, %265 : vector<1x128xf32>
    %268 = arith.divf %266, %267 : vector<1x128xf32>
    %269 = arith.mulf %260, %242 : vector<1x128xf32>
    %270 = arith.mulf %254, %262 : vector<1x128xf32>
    %271 = arith.addf %269, %270 : vector<1x128xf32>
    %272 = math.tanh %271 : vector<1x128xf32>
    %273 = arith.mulf %268, %272 : vector<1x128xf32>
    %274 = vector.extract_strided_slice %128 {offsets = [0, 0], sizes = [1, 64], strides = [1, 1]} : vector<1x128xf32> to vector<1x64xf32>
    %275 = vector.extract_strided_slice %157 {offsets = [0, 0], sizes = [1, 64], strides = [1, 1]} : vector<1x128xf32> to vector<1x64xf32>
    %276 = vector.extract_strided_slice %186 {offsets = [0, 0], sizes = [1, 64], strides = [1, 1]} : vector<1x128xf32> to vector<1x64xf32>
    %277 = vector.extract_strided_slice %215 {offsets = [0, 0], sizes = [1, 64], strides = [1, 1]} : vector<1x128xf32> to vector<1x64xf32>
    %278 = vector.extract_strided_slice %244 {offsets = [0, 0], sizes = [1, 64], strides = [1, 1]} : vector<1x128xf32> to vector<1x64xf32>
    %279 = vector.extract_strided_slice %273 {offsets = [0, 0], sizes = [1, 64], strides = [1, 1]} : vector<1x128xf32> to vector<1x64xf32>
    %280 = tpu.concatenate %274, %275, %276, %277, %278, %279 in 0 : vector<1x64xf32>, vector<1x64xf32>, vector<1x64xf32>, vector<1x64xf32>, vector<1x64xf32>, vector<1x64xf32> -> vector<6x64xf32>
    %281 = vector.extract_strided_slice %273 {offsets = [0, 64], sizes = [1, 64], strides = [1, 1]} : vector<1x128xf32> to vector<1x64xf32>
    %282 = vector.extract_strided_slice %244 {offsets = [0, 64], sizes = [1, 64], strides = [1, 1]} : vector<1x128xf32> to vector<1x64xf32>
    %283 = vector.extract_strided_slice %215 {offsets = [0, 64], sizes = [1, 64], strides = [1, 1]} : vector<1x128xf32> to vector<1x64xf32>
    %284 = vector.extract_strided_slice %186 {offsets = [0, 64], sizes = [1, 64], strides = [1, 1]} : vector<1x128xf32> to vector<1x64xf32>
    %285 = vector.extract_strided_slice %157 {offsets = [0, 64], sizes = [1, 64], strides = [1, 1]} : vector<1x128xf32> to vector<1x64xf32>
    %286 = vector.extract_strided_slice %128 {offsets = [0, 64], sizes = [1, 64], strides = [1, 1]} : vector<1x128xf32> to vector<1x64xf32>
    %287 = tpu.concatenate %281, %282, %283, %284, %285, %286 in 0 : vector<1x64xf32>, vector<1x64xf32>, vector<1x64xf32>, vector<1x64xf32>, vector<1x64xf32>, vector<1x64xf32> -> vector<6x64xf32>
    %288 = tpu.concatenate %280, %287 in 1 : vector<6x64xf32>, vector<6x64xf32> -> vector<6x128xf32>
    %289 = arith.truncf %288 : vector<6x128xf32> to vector<6x128xbf16>
    %c0_96 = arith.constant 0 : index
    %c0_97 = arith.constant 0 : index
    %290 = vector.load %arg11[%c0_96, %c0_97] : memref<128x384xbf16, #tpu.memory_space<vmem>>, vector<128x384xbf16>
    %cst_98 = arith.constant dense<0.000000e+00> : vector<6x384xf32>
    %291 = tpu.matmul %289, %290, %cst_98 {dimension_numbers = #tpu.dot_dimension_numbers<[1], [0], [0], [1], [0, 0, 1, 1], [], []>} : vector<6x128xbf16>, vector<128x384xbf16>, vector<6x384xf32> -> vector<6x384xf32>
    %c0_99 = arith.constant 0 : index
    %c0_100 = arith.constant 0 : index
    %292 = vector.load %arg12[%c0_99, %c0_100] : memref<1x384xf32, #tpu.memory_space<vmem>>, vector<1x384xf32>
    %293 = vector.broadcast %292 : vector<1x384xf32> to vector<6x384xf32>
    %294 = arith.addf %291, %293 : vector<6x384xf32>
    %295 = vector.extract_strided_slice %294 {offsets = [0, 0], sizes = [6, 32], strides = [1, 1]} : vector<6x384xf32> to vector<6x32xf32>
    %296 = arith.truncf %295 : vector<6x32xf32> to vector<6x32xbf16>
    %297 = vector.extract_strided_slice %294 {offsets = [0, 128], sizes = [6, 32], strides = [1, 1]} : vector<6x384xf32> to vector<6x32xf32>
    %298 = arith.truncf %297 : vector<6x32xf32> to vector<6x32xbf16>
    %299 = vector.extract_strided_slice %294 {offsets = [0, 256], sizes = [6, 32], strides = [1, 1]} : vector<6x384xf32> to vector<6x32xf32>
    %300 = arith.truncf %299 : vector<6x32xf32> to vector<6x32xbf16>
    %301 = tpu.transpose %298, [1, 0] : vector<6x32xbf16> -> vector<32x6xbf16>
    %cst_101 = arith.constant dense<0.000000e+00> : vector<6x6xf32>
    %302 = tpu.matmul %296, %301, %cst_101 {dimension_numbers = #tpu.dot_dimension_numbers<[1], [0], [0], [1], [0, 0, 1, 1], [], []>} : vector<6x32xbf16>, vector<32x6xbf16>, vector<6x6xf32> -> vector<6x6xf32>
    %cst_102 = arith.constant dense<0xFF800000> : vector<6xf32>
    %303 = vector.multi_reduction <maximumf>, %302, %cst_102 [1] : vector<6x6xf32> to vector<6xf32>
    %304 = vector.shape_cast %303 : vector<6xf32> to vector<6x1xf32>
    %305 = vector.broadcast %304 : vector<6x1xf32> to vector<6x6xf32>
    %306 = arith.subf %302, %305 : vector<6x6xf32>
    %307 = math.exp %306 : vector<6x6xf32>
    %cst_103 = arith.constant dense<0.000000e+00> : vector<6xf32>
    %308 = vector.multi_reduction <add>, %307, %cst_103 [1] : vector<6x6xf32> to vector<6xf32>
    %309 = vector.shape_cast %308 : vector<6xf32> to vector<6x1xf32>
    %310 = tpu.reciprocal %309 {approx = true} : vector<6x1xf32> -> vector<6x1xf32>
    %311 = vector.broadcast %310 : vector<6x1xf32> to vector<6x6xf32>
    %312 = arith.mulf %307, %311 : vector<6x6xf32>
    %313 = arith.truncf %312 : vector<6x6xf32> to vector<6x6xbf16>
    %cst_104 = arith.constant dense<0.000000e+00> : vector<6x32xf32>
    %314 = tpu.matmul %313, %300, %cst_104 {dimension_numbers = #tpu.dot_dimension_numbers<[1], [0], [0], [1], [0, 0, 1, 1], [], []>} : vector<6x6xbf16>, vector<6x32xbf16>, vector<6x32xf32> -> vector<6x32xf32>
    %315 = vector.extract_strided_slice %294 {offsets = [0, 32], sizes = [6, 32], strides = [1, 1]} : vector<6x384xf32> to vector<6x32xf32>
    %316 = arith.truncf %315 : vector<6x32xf32> to vector<6x32xbf16>
    %317 = vector.extract_strided_slice %294 {offsets = [0, 160], sizes = [6, 32], strides = [1, 1]} : vector<6x384xf32> to vector<6x32xf32>
    %318 = arith.truncf %317 : vector<6x32xf32> to vector<6x32xbf16>
    %319 = vector.extract_strided_slice %294 {offsets = [0, 288], sizes = [6, 32], strides = [1, 1]} : vector<6x384xf32> to vector<6x32xf32>
    %320 = arith.truncf %319 : vector<6x32xf32> to vector<6x32xbf16>
    %321 = tpu.transpose %318, [1, 0] : vector<6x32xbf16> -> vector<32x6xbf16>
    %cst_105 = arith.constant dense<0.000000e+00> : vector<6x6xf32>
    %322 = tpu.matmul %316, %321, %cst_105 {dimension_numbers = #tpu.dot_dimension_numbers<[1], [0], [0], [1], [0, 0, 1, 1], [], []>} : vector<6x32xbf16>, vector<32x6xbf16>, vector<6x6xf32> -> vector<6x6xf32>
    %cst_106 = arith.constant dense<0xFF800000> : vector<6xf32>
    %323 = vector.multi_reduction <maximumf>, %322, %cst_106 [1] : vector<6x6xf32> to vector<6xf32>
    %324 = vector.shape_cast %323 : vector<6xf32> to vector<6x1xf32>
    %325 = vector.broadcast %324 : vector<6x1xf32> to vector<6x6xf32>
    %326 = arith.subf %322, %325 : vector<6x6xf32>
    %327 = math.exp %326 : vector<6x6xf32>
    %cst_107 = arith.constant dense<0.000000e+00> : vector<6xf32>
    %328 = vector.multi_reduction <add>, %327, %cst_107 [1] : vector<6x6xf32> to vector<6xf32>
    %329 = vector.shape_cast %328 : vector<6xf32> to vector<6x1xf32>
    %330 = tpu.reciprocal %329 {approx = true} : vector<6x1xf32> -> vector<6x1xf32>
    %331 = vector.broadcast %330 : vector<6x1xf32> to vector<6x6xf32>
    %332 = arith.mulf %327, %331 : vector<6x6xf32>
    %333 = arith.truncf %332 : vector<6x6xf32> to vector<6x6xbf16>
    %cst_108 = arith.constant dense<0.000000e+00> : vector<6x32xf32>
    %334 = tpu.matmul %333, %320, %cst_108 {dimension_numbers = #tpu.dot_dimension_numbers<[1], [0], [0], [1], [0, 0, 1, 1], [], []>} : vector<6x6xbf16>, vector<6x32xbf16>, vector<6x32xf32> -> vector<6x32xf32>
    %335 = vector.extract_strided_slice %294 {offsets = [0, 64], sizes = [6, 32], strides = [1, 1]} : vector<6x384xf32> to vector<6x32xf32>
    %336 = arith.truncf %335 : vector<6x32xf32> to vector<6x32xbf16>
    %337 = vector.extract_strided_slice %294 {offsets = [0, 192], sizes = [6, 32], strides = [1, 1]} : vector<6x384xf32> to vector<6x32xf32>
    %338 = arith.truncf %337 : vector<6x32xf32> to vector<6x32xbf16>
    %339 = vector.extract_strided_slice %294 {offsets = [0, 320], sizes = [6, 32], strides = [1, 1]} : vector<6x384xf32> to vector<6x32xf32>
    %340 = arith.truncf %339 : vector<6x32xf32> to vector<6x32xbf16>
    %341 = tpu.transpose %338, [1, 0] : vector<6x32xbf16> -> vector<32x6xbf16>
    %cst_109 = arith.constant dense<0.000000e+00> : vector<6x6xf32>
    %342 = tpu.matmul %336, %341, %cst_109 {dimension_numbers = #tpu.dot_dimension_numbers<[1], [0], [0], [1], [0, 0, 1, 1], [], []>} : vector<6x32xbf16>, vector<32x6xbf16>, vector<6x6xf32> -> vector<6x6xf32>
    %cst_110 = arith.constant dense<0xFF800000> : vector<6xf32>
    %343 = vector.multi_reduction <maximumf>, %342, %cst_110 [1] : vector<6x6xf32> to vector<6xf32>
    %344 = vector.shape_cast %343 : vector<6xf32> to vector<6x1xf32>
    %345 = vector.broadcast %344 : vector<6x1xf32> to vector<6x6xf32>
    %346 = arith.subf %342, %345 : vector<6x6xf32>
    %347 = math.exp %346 : vector<6x6xf32>
    %cst_111 = arith.constant dense<0.000000e+00> : vector<6xf32>
    %348 = vector.multi_reduction <add>, %347, %cst_111 [1] : vector<6x6xf32> to vector<6xf32>
    %349 = vector.shape_cast %348 : vector<6xf32> to vector<6x1xf32>
    %350 = tpu.reciprocal %349 {approx = true} : vector<6x1xf32> -> vector<6x1xf32>
    %351 = vector.broadcast %350 : vector<6x1xf32> to vector<6x6xf32>
    %352 = arith.mulf %347, %351 : vector<6x6xf32>
    %353 = arith.truncf %352 : vector<6x6xf32> to vector<6x6xbf16>
    %cst_112 = arith.constant dense<0.000000e+00> : vector<6x32xf32>
    %354 = tpu.matmul %353, %340, %cst_112 {dimension_numbers = #tpu.dot_dimension_numbers<[1], [0], [0], [1], [0, 0, 1, 1], [], []>} : vector<6x6xbf16>, vector<6x32xbf16>, vector<6x32xf32> -> vector<6x32xf32>
    %355 = vector.extract_strided_slice %294 {offsets = [0, 96], sizes = [6, 32], strides = [1, 1]} : vector<6x384xf32> to vector<6x32xf32>
    %356 = arith.truncf %355 : vector<6x32xf32> to vector<6x32xbf16>
    %357 = vector.extract_strided_slice %294 {offsets = [0, 224], sizes = [6, 32], strides = [1, 1]} : vector<6x384xf32> to vector<6x32xf32>
    %358 = arith.truncf %357 : vector<6x32xf32> to vector<6x32xbf16>
    %359 = vector.extract_strided_slice %294 {offsets = [0, 352], sizes = [6, 32], strides = [1, 1]} : vector<6x384xf32> to vector<6x32xf32>
    %360 = arith.truncf %359 : vector<6x32xf32> to vector<6x32xbf16>
    %361 = tpu.transpose %358, [1, 0] : vector<6x32xbf16> -> vector<32x6xbf16>
    %cst_113 = arith.constant dense<0.000000e+00> : vector<6x6xf32>
    %362 = tpu.matmul %356, %361, %cst_113 {dimension_numbers = #tpu.dot_dimension_numbers<[1], [0], [0], [1], [0, 0, 1, 1], [], []>} : vector<6x32xbf16>, vector<32x6xbf16>, vector<6x6xf32> -> vector<6x6xf32>
    %cst_114 = arith.constant dense<0xFF800000> : vector<6xf32>
    %363 = vector.multi_reduction <maximumf>, %362, %cst_114 [1] : vector<6x6xf32> to vector<6xf32>
    %364 = vector.shape_cast %363 : vector<6xf32> to vector<6x1xf32>
    %365 = vector.broadcast %364 : vector<6x1xf32> to vector<6x6xf32>
    %366 = arith.subf %362, %365 : vector<6x6xf32>
    %367 = math.exp %366 : vector<6x6xf32>
    %cst_115 = arith.constant dense<0.000000e+00> : vector<6xf32>
    %368 = vector.multi_reduction <add>, %367, %cst_115 [1] : vector<6x6xf32> to vector<6xf32>
    %369 = vector.shape_cast %368 : vector<6xf32> to vector<6x1xf32>
    %370 = tpu.reciprocal %369 {approx = true} : vector<6x1xf32> -> vector<6x1xf32>
    %371 = vector.broadcast %370 : vector<6x1xf32> to vector<6x6xf32>
    %372 = arith.mulf %367, %371 : vector<6x6xf32>
    %373 = arith.truncf %372 : vector<6x6xf32> to vector<6x6xbf16>
    %cst_116 = arith.constant dense<0.000000e+00> : vector<6x32xf32>
    %374 = tpu.matmul %373, %360, %cst_116 {dimension_numbers = #tpu.dot_dimension_numbers<[1], [0], [0], [1], [0, 0, 1, 1], [], []>} : vector<6x6xbf16>, vector<6x32xbf16>, vector<6x32xf32> -> vector<6x32xf32>
    %375 = tpu.concatenate %314, %334, %354, %374 in 1 : vector<6x32xf32>, vector<6x32xf32>, vector<6x32xf32>, vector<6x32xf32> -> vector<6x128xf32>
    %376 = arith.truncf %375 : vector<6x128xf32> to vector<6x128xbf16>
    %c0_117 = arith.constant 0 : index
    %c0_118 = arith.constant 0 : index
    %377 = vector.load %arg13[%c0_117, %c0_118] : memref<128x128xbf16, #tpu.memory_space<vmem>>, vector<128x128xbf16>
    %cst_119 = arith.constant dense<0.000000e+00> : vector<6x128xf32>
    %378 = tpu.matmul %376, %377, %cst_119 {dimension_numbers = #tpu.dot_dimension_numbers<[1], [0], [0], [1], [0, 0, 1, 1], [], []>} : vector<6x128xbf16>, vector<128x128xbf16>, vector<6x128xf32> -> vector<6x128xf32>
    %c0_120 = arith.constant 0 : index
    %c0_121 = arith.constant 0 : index
    %379 = vector.load %arg14[%c0_120, %c0_121] : memref<1x128xf32, #tpu.memory_space<vmem>>, vector<1x128xf32>
    %380 = vector.broadcast %379 : vector<1x128xf32> to vector<6x128xf32>
    %381 = arith.addf %378, %380 : vector<6x128xf32>
    %cst_122 = arith.constant dense<0.000000e+00> : vector<128xf32>
    %382 = vector.multi_reduction <add>, %381, %cst_122 [0] : vector<6x128xf32> to vector<128xf32>
    %383 = vector.shape_cast %382 : vector<128xf32> to vector<1x128xf32>
    %cst_123 = arith.constant 0.166666672 : f32
    %384 = vector.broadcast %cst_123 : f32 to vector<1x128xf32>
    %385 = arith.mulf %383, %384 : vector<1x128xf32>
    %c0_124 = arith.constant 0 : index
    %c0_125 = arith.constant 0 : index
    %386 = vector.load %arg15[%c0_124, %c0_125] : memref<128x32xf32, #tpu.memory_space<vmem>>, vector<128x32xf32>
    %cst_126 = arith.constant dense<0.000000e+00> : vector<1x32xf32>
    %387 = tpu.matmul %385, %386, %cst_126 {dimension_numbers = #tpu.dot_dimension_numbers<[1], [0], [0], [1], [0, 0, 1, 1], [], []>} : vector<1x128xf32>, vector<128x32xf32>, vector<1x32xf32> -> vector<1x32xf32>
    %c0_127 = arith.constant 0 : index
    %c0_128 = arith.constant 0 : index
    %388 = vector.load %arg16[%c0_127, %c0_128] : memref<1x32xf32, #tpu.memory_space<vmem>>, vector<1x32xf32>
    %389 = arith.addf %387, %388 : vector<1x32xf32>
    %c0_129 = arith.constant 0 : index
    %c0_130 = arith.constant 0 : index
    %390 = vector.load %arg17[%c0_129, %c0_130] : memref<32x2xf32, #tpu.memory_space<vmem>>, vector<32x2xf32>
    %cst_131 = arith.constant dense<0.000000e+00> : vector<1x2xf32>
    %391 = tpu.matmul %389, %390, %cst_131 {dimension_numbers = #tpu.dot_dimension_numbers<[1], [0], [0], [1], [0, 0, 1, 1], [], []>} : vector<1x32xf32>, vector<32x2xf32>, vector<1x2xf32> -> vector<1x2xf32>
    %c0_132 = arith.constant 0 : index
    %c0_133 = arith.constant 0 : index
    %392 = vector.load %arg18[%c0_132, %c0_133] : memref<1x2xf32, #tpu.memory_space<vmem>>, vector<1x2xf32>
    %393 = arith.addf %391, %392 : vector<1x2xf32>
    %c0_134 = arith.constant 0 : index
    %c0_135 = arith.constant 0 : index
    %c0_136 = arith.constant 0 : index
    %394 = vector.load %arg19[%c0_134, %c0_135, %c0_136] : memref<1x1x32xf32, #tpu.memory_space<vmem>>, vector<1x1x32xf32>
    %395 = vector.shape_cast %394 : vector<1x1x32xf32> to vector<1x32xf32>
    %396 = vector.shape_cast %389 : vector<1x32xf32> to vector<1x1x32xf32>
    tpu.vector_store %arg19[%c0_134, %c0_135, %c0_136], %396 {strides = array<i32>} : memref<1x1x32xf32, #tpu.memory_space<vmem>>, vector<1x1x32xf32>,
    %c0_137 = arith.constant 0 : index
    %c0_138 = arith.constant 0 : index
    %c0_139 = arith.constant 0 : index
    %397 = vector.load %arg20[%c0_137, %c0_138, %c0_139] : memref<1x1x2xf32, #tpu.memory_space<vmem>>, vector<1x1x2xf32>
    %398 = vector.shape_cast %397 : vector<1x1x2xf32> to vector<1x2xf32>
    %399 = vector.shape_cast %393 : vector<1x2xf32> to vector<1x1x2xf32>
    tpu.vector_store %arg20[%c0_137, %c0_138, %c0_139], %399 {strides = array<i32>} : memref<1x1x2xf32, #tpu.memory_space<vmem>>, vector<1x1x2xf32>,
    return
  }
  func.func @transform_0(%arg0: i32) -> (i32, i32, i32) {
    %c0_i32 = arith.constant 0 : i32
    %c0_i32_0 = arith.constant 0 : i32
    %c0_i32_1 = arith.constant 0 : i32
    return %arg0, %c0_i32, %c0_i32_0 : i32, i32, i32
  }
  func.func @transform_1(%arg0: i32) -> (i32, i32) {
    %c0_i32 = arith.constant 0 : i32
    %c0_i32_0 = arith.constant 0 : i32
    %c0_i32_1 = arith.constant 0 : i32
    return %c0_i32, %c0_i32_0 : i32, i32
  }
  func.func @transform_2(%arg0: i32) -> (i32, i32) {
    %c0_i32 = arith.constant 0 : i32
    %c0_i32_0 = arith.constant 0 : i32
    %c0_i32_1 = arith.constant 0 : i32
    return %c0_i32, %c0_i32_0 : i32, i32
  }
  func.func @transform_3(%arg0: i32) -> (i32, i32) {
    %c0_i32 = arith.constant 0 : i32
    %c0_i32_0 = arith.constant 0 : i32
    %c0_i32_1 = arith.constant 0 : i32
    return %c0_i32, %c0_i32_0 : i32, i32
  }
  func.func @transform_4(%arg0: i32) -> (i32, i32) {
    %c0_i32 = arith.constant 0 : i32
    %c0_i32_0 = arith.constant 0 : i32
    %c0_i32_1 = arith.constant 0 : i32
    return %c0_i32, %c0_i32_0 : i32, i32
  }
  func.func @transform_5(%arg0: i32) -> (i32, i32) {
    %c0_i32 = arith.constant 0 : i32
    %c0_i32_0 = arith.constant 0 : i32
    %c0_i32_1 = arith.constant 0 : i32
    return %c0_i32, %c0_i32_0 : i32, i32
  }
  func.func @transform_6(%arg0: i32) -> (i32, i32) {
    %c0_i32 = arith.constant 0 : i32
    %c0_i32_0 = arith.constant 0 : i32
    %c0_i32_1 = arith.constant 0 : i32
    return %c0_i32, %c0_i32_0 : i32, i32
  }
  func.func @transform_7(%arg0: i32) -> (i32, i32) {
    %c0_i32 = arith.constant 0 : i32
    %c0_i32_0 = arith.constant 0 : i32
    %c0_i32_1 = arith.constant 0 : i32
    return %c0_i32, %c0_i32_0 : i32, i32
  }
  func.func @transform_8(%arg0: i32) -> (i32, i32) {
    %c0_i32 = arith.constant 0 : i32
    %c0_i32_0 = arith.constant 0 : i32
    %c0_i32_1 = arith.constant 0 : i32
    return %c0_i32, %c0_i32_0 : i32, i32
  }
  func.func @transform_9(%arg0: i32) -> (i32, i32) {
    %c0_i32 = arith.constant 0 : i32
    %c0_i32_0 = arith.constant 0 : i32
    %c0_i32_1 = arith.constant 0 : i32
    return %c0_i32, %c0_i32_0 : i32, i32
  }
  func.func @transform_10(%arg0: i32) -> (i32, i32) {
    %c0_i32 = arith.constant 0 : i32
    %c0_i32_0 = arith.constant 0 : i32
    %c0_i32_1 = arith.constant 0 : i32
    return %c0_i32, %c0_i32_0 : i32, i32
  }
  func.func @transform_11(%arg0: i32) -> (i32, i32) {
    %c0_i32 = arith.constant 0 : i32
    %c0_i32_0 = arith.constant 0 : i32
    %c0_i32_1 = arith.constant 0 : i32
    return %c0_i32, %c0_i32_0 : i32, i32
  }
  func.func @transform_12(%arg0: i32) -> (i32, i32) {
    %c0_i32 = arith.constant 0 : i32
    %c0_i32_0 = arith.constant 0 : i32
    %c0_i32_1 = arith.constant 0 : i32
    return %c0_i32, %c0_i32_0 : i32, i32
  }
  func.func @transform_13(%arg0: i32) -> (i32, i32) {
    %c0_i32 = arith.constant 0 : i32
    %c0_i32_0 = arith.constant 0 : i32
    %c0_i32_1 = arith.constant 0 : i32
    return %c0_i32, %c0_i32_0 : i32, i32
  }
  func.func @transform_14(%arg0: i32) -> (i32, i32) {
    %c0_i32 = arith.constant 0 : i32
    %c0_i32_0 = arith.constant 0 : i32
    %c0_i32_1 = arith.constant 0 : i32
    return %c0_i32, %c0_i32_0 : i32, i32
  }
  func.func @transform_15(%arg0: i32) -> (i32, i32) {
    %c0_i32 = arith.constant 0 : i32
    %c0_i32_0 = arith.constant 0 : i32
    %c0_i32_1 = arith.constant 0 : i32
    return %c0_i32, %c0_i32_0 : i32, i32
  }
  func.func @transform_16(%arg0: i32) -> (i32, i32) {
    %c0_i32 = arith.constant 0 : i32
    %c0_i32_0 = arith.constant 0 : i32
    %c0_i32_1 = arith.constant 0 : i32
    return %c0_i32, %c0_i32_0 : i32, i32
  }
  func.func @transform_17(%arg0: i32) -> (i32, i32) {
    %c0_i32 = arith.constant 0 : i32
    %c0_i32_0 = arith.constant 0 : i32
    %c0_i32_1 = arith.constant 0 : i32
    return %c0_i32, %c0_i32_0 : i32, i32
  }
  func.func @transform_18(%arg0: i32) -> (i32, i32, i32) {
    %c0_i32 = arith.constant 0 : i32
    %c0_i32_0 = arith.constant 0 : i32
    %c0_i32_1 = arith.constant 0 : i32
    return %arg0, %c0_i32, %c0_i32_0 : i32, i32, i32
  }
  func.func @transform_19(%arg0: i32) -> (i32, i32, i32) {
    %c0_i32 = arith.constant 0 : i32
    %c0_i32_0 = arith.constant 0 : i32
    %c0_i32_1 = arith.constant 0 : i32
    return %arg0, %c0_i32, %c0_i32_0 : i32, i32, i32
  }
}

</mosaic_0001>

<llo_original>
// kernel: attention_backbone_forward.1
$region0: #{attention_backbone_forward.1}
  #allocation0 [shape = 'u32[]', space=smem, size = 0x4, offset = 0x4, fixed_abs, tag = 'smem constant byte address 0x4 - core index']
  #allocation1 [shape = 'u32[144,128]{1,0:T(1,128)}', space=vmem, size = 0x12000, scoped, tag = 'internal scratch']
  #allocation2 [shape = 'f32[62,24]{1,0:T(8,128)}', space=vmem, size = 0x8000, scoped, tag = 'scratch operand']
  #allocation3 [shape = 'f32[14,36]{1,0:T(8,128)}', space=vmem, size = 0x2000, scoped, tag = 'scratch operand']
  %s0 = inlined_call_operand.vmem [shape: bf16[2,62,80], index: 0, kind: input, shape index: {}]
  %s1 = inlined_call_operand.vmem [shape: bf16[80,24], index: 1, kind: input, shape index: {}]
  %s2 = inlined_call_operand.vmem [shape: f32[1,24], index: 2, kind: input, shape index: {}]
  %s3 = inlined_call_operand.vmem [shape: bf16[192,36], index: 3, kind: input, shape index: {}]
  %s4 = inlined_call_operand.vmem [shape: f32[1,36], index: 4, kind: input, shape index: {}]
  %s5 = inlined_call_operand.vmem [shape: bf16[144,48], index: 5, kind: input, shape index: {}]
  %s6 = inlined_call_operand.vmem [shape: f32[1,48], index: 6, kind: input, shape index: {}]
  %s7 = inlined_call_operand.vmem [shape: bf16[96,512], index: 7, kind: input, shape index: {}]
  %s8 = inlined_call_operand.vmem [shape: f32[1,512], index: 8, kind: input, shape index: {}]
  %s9 = inlined_call_operand.vmem [shape: bf16[128,512], index: 9, kind: input, shape index: {}]
  %s10 = inlined_call_operand.vmem [shape: bf16[128,384], index: 10, kind: input, shape index: {}]
  %s11 = inlined_call_operand.vmem [shape: f32[1,384], index: 11, kind: input, shape index: {}]
  %s12 = inlined_call_operand.vmem [shape: bf16[128,128], index: 12, kind: input, shape index: {}]
  %s13 = inlined_call_operand.vmem [shape: f32[1,128], index: 13, kind: input, shape index: {}]
  %s14 = inlined_call_operand.vmem [shape: f32[128,32], index: 14, kind: input, shape index: {}]
  %s15 = inlined_call_operand.vmem [shape: f32[1,32], index: 15, kind: input, shape index: {}]
  %s16 = inlined_call_operand.vmem [shape: f32[32,2], index: 16, kind: input, shape index: {}]
  %s17 = inlined_call_operand.vmem [shape: f32[1,2], index: 17, kind: input, shape index: {}]
  %s18 = inlined_call_operand.hbm [shape: f32[2,1,32], index: 18, kind: output, shape index: {0}]
  %s19 = inlined_call_operand.hbm [shape: f32[2,1,2], index: 19, kind: output, shape index: {1}]
  %20 = xla_tuple %s18, %s19
  %s21 = sld [smem:[#allocation0]]
  $region113: #{attention_backbone_forward.1} parent=0
    _
  %s23 = ssub.s32 1, %s21
  %s24 = scalar_select 0, %s23, %s21
  $region1: #{attention_backbone_forward.1} parent=0
    #allocation4 [shape = 'u8[1024]{0}', space=vmem, size = 0x400, scoped, tag = 'output window, operand 0']
    #allocation5 [shape = 's32[2]{0}', space=sflag, size = 0x8, scoped, tag = 'scoped memory for attention_backbone_forward.1']
    #allocation6 [shape = 'u8[1024]{0}', space=vmem, size = 0x400, scoped, tag = 'output window, operand 1']
    #allocation7 [shape = 's32[2]{0}', space=sflag, size = 0x8, scoped, tag = 'scoped memory for attention_backbone_forward.1']
    %25 = vsyncpa [#allocation5], 0
    %s26 = scalar_lea.sflag [#allocation5], 1
    %27 = vsyncpa %s26, 0
    %28 = vsyncpa [#allocation7], 0
    %s29 = scalar_lea.sflag [#allocation7], 1
    %30 = vsyncpa %s29, 0
    loop: start=0, step=1, limit=4
    $region2: #{attention_backbone_forward.1} parent=1 // loop_pre_header
      _
    $region3: #{attention_backbone_forward.1} parent=1 // loop_header
      %s32 = sphi 0, %s36
      %p33 = scmp.ge.s32.totalorder %s32, 4
      %s42 = sphi 0, %s44
      %s45 = sphi 0, %s42
      %s46 = sphi 0, %s45
      %s62 = sphi 0, %s46
      %s66 = sphi 0, %s66
      %s68 = sphi 0, %s66
      %s69 = sphi 0, %s68
      %s83 = sphi 0, %s69
      %s87 = sphi 0, %s87
      %s89 = sphi 0, %s87
      %s90 = sphi 0, %s89
      %s104 = sphi 0, %s90
      %s108 = sphi 0, %s108
      %s110 = sphi 0, %s108
      %s111 = sphi 0, %s110
      %s125 = sphi 0, %s111
      %s129 = sphi 0, %s129
      %s131 = sphi 0, %s129
      %s132 = sphi 0, %s131
      %s146 = sphi 0, %s132
      %s150 = sphi 0, %s150
      %s152 = sphi 0, %s150
      %s153 = sphi 0, %s152
      %s167 = sphi 0, %s153
      %s171 = sphi 0, %s171
      %s173 = sphi 0, %s171
      %s174 = sphi 0, %s173
      %s188 = sphi 0, %s174
      %s192 = sphi 0, %s192
      %s194 = sphi 0, %s192
      %s195 = sphi 0, %s194
      %s209 = sphi 0, %s195
      %s213 = sphi 0, %s213
      %s215 = sphi 0, %s213
      %s216 = sphi 0, %s215
      %s230 = sphi 0, %s216
      %s234 = sphi 0, %s234
      %s236 = sphi 0, %s234
      %s237 = sphi 0, %s236
      %s251 = sphi 0, %s237
      %s255 = sphi 0, %s255
      %s257 = sphi 0, %s255
      %s258 = sphi 0, %s257
      %s272 = sphi 0, %s258
      %s276 = sphi 0, %s276
      %s278 = sphi 0, %s276
      %s279 = sphi 0, %s278
      %s293 = sphi 0, %s279
      %s297 = sphi 0, %s297
      %s299 = sphi 0, %s297
      %s300 = sphi 0, %s299
      %s314 = sphi 0, %s300
      %s318 = sphi 0, %s318
      %s320 = sphi 0, %s318
      %s321 = sphi 0, %s320
      %s335 = sphi 0, %s321
      %s339 = sphi 0, %s339
      %s341 = sphi 0, %s339
      %s342 = sphi 0, %s341
      %s356 = sphi 0, %s342
      %s360 = sphi 0, %s360
      %s362 = sphi 0, %s360
      %s363 = sphi 0, %s362
      %s377 = sphi 0, %s363
      %s381 = sphi 0, %s381
      %s383 = sphi 0, %s381
      %s384 = sphi 0, %s383
      %s398 = sphi 0, %s384
      %s402 = sphi 0, %s402
      %s404 = sphi 0, %s402
      %s405 = sphi 0, %s404
      %s419 = sphi 0, %s405
      %s425 = sphi 0, %s427
      %s428 = sphi 0, %s425
      %s429 = sphi 0, %s428
      %s445 = sphi 0, %s429
      %s451 = sphi 0, %s453
      %s454 = sphi 0, %s451
      %s455 = sphi 0, %s454
      %s471 = sphi 0, %s455
    $region4: #{attention_backbone_forward.1} parent=1 // loop_header_branch
      %35 = sbr.rel (%p33) target = $region8
    $region5: #{attention_backbone_forward.1} parent=1 // loop_body
      %s37 = ssub.s32 %s32, 1
      %s38 = ssub.s32 %s32, 2
      %s39 = sadd.s32 %s32, 1
      %s40 = ssub.s32 %s32, %s39
      %p41 = scmp.eq.s32.totalorder %s40, 0
      %s43 = sadd.s32 %s42, 1
      %s44 = scalar_select %p41, %s42, %s43
      %p47 = pneg %p41
      %p48 = scmp.eq.s32.totalorder %s32, 1
      %p49 = por %p47, %p48
      %p50 = scmp.ne.s32.totalorder %s42, %s45
      %p51 = scmp.eq.s32.totalorder %s32, 0
      %p52 = por %p50, %p51
      %p53 = scmp.ne.s32.totalorder %s42, %s45
      %p54 = scmp.eq.s32.totalorder %s37, 1
      %p55 = por %p53, %p54
      %p56 = scmp.ne.s32.totalorder %s45, %s46
      %p57 = scmp.eq.s32.totalorder %s37, 0
      %p58 = por %p56, %p57
      %p59 = scmp.ne.s32.totalorder %s45, %s46
      %p60 = scmp.eq.s32.totalorder %s38, 1
      %p61 = por %p59, %p60
      %p63 = scmp.ne.s32.totalorder %s46, %s62
      %p64 = scmp.eq.s32.totalorder %s38, 0
      %p65 = por %p63, %p64
      %s67 = sadd.s32 %s66, 1
      %p70 = scmp.eq.s32.totalorder %s32, 1
      %p71 = scmp.ne.s32.totalorder %s66, %s68
      %p72 = scmp.eq.s32.totalorder %s32, 0
      %p73 = por %p71, %p72
      %p74 = scmp.ne.s32.totalorder %s66, %s68
      %p75 = scmp.eq.s32.totalorder %s37, 1
      %p76 = por %p74, %p75
      %p77 = scmp.ne.s32.totalorder %s68, %s69
      %p78 = scmp.eq.s32.totalorder %s37, 0
      %p79 = por %p77, %p78
      %p80 = scmp.ne.s32.totalorder %s68, %s69
      %p81 = scmp.eq.s32.totalorder %s38, 1
      %p82 = por %p80, %p81
      %p84 = scmp.ne.s32.totalorder %s69, %s83
      %p85 = scmp.eq.s32.totalorder %s38, 0
      %p86 = por %p84, %p85
      %s88 = sadd.s32 %s87, 1
      %p91 = scmp.eq.s32.totalorder %s32, 1
      %p92 = scmp.ne.s32.totalorder %s87, %s89
      %p93 = scmp.eq.s32.totalorder %s32, 0
      %p94 = por %p92, %p93
      %p95 = scmp.ne.s32.totalorder %s87, %s89
      %p96 = scmp.eq.s32.totalorder %s37, 1
      %p97 = por %p95, %p96
      %p98 = scmp.ne.s32.totalorder %s89, %s90
      %p99 = scmp.eq.s32.totalorder %s37, 0
      %p100 = por %p98, %p99
      %p101 = scmp.ne.s32.totalorder %s89, %s90
      %p102 = scmp.eq.s32.totalorder %s38, 1
      %p103 = por %p101, %p102
      %p105 = scmp.ne.s32.totalorder %s90, %s104
      %p106 = scmp.eq.s32.totalorder %s38, 0
      %p107 = por %p105, %p106
      %s109 = sadd.s32 %s108, 1
      %p112 = scmp.eq.s32.totalorder %s32, 1
      %p113 = scmp.ne.s32.totalorder %s108, %s110
      %p114 = scmp.eq.s32.totalorder %s32, 0
      %p115 = por %p113, %p114
      %p116 = scmp.ne.s32.totalorder %s108, %s110
      %p117 = scmp.eq.s32.totalorder %s37, 1
      %p118 = por %p116, %p117
      %p119 = scmp.ne.s32.totalorder %s110, %s111
      %p120 = scmp.eq.s32.totalorder %s37, 0
      %p121 = por %p119, %p120
      %p122 = scmp.ne.s32.totalorder %s110, %s111
      %p123 = scmp.eq.s32.totalorder %s38, 1
      %p124 = por %p122, %p123
      %p126 = scmp.ne.s32.totalorder %s111, %s125
      %p127 = scmp.eq.s32.totalorder %s38, 0
      %p128 = por %p126, %p127
      %s130 = sadd.s32 %s129, 1
      %p133 = scmp.eq.s32.totalorder %s32, 1
      %p134 = scmp.ne.s32.totalorder %s129, %s131
      %p135 = scmp.eq.s32.totalorder %s32, 0
      %p136 = por %p134, %p135
      %p137 = scmp.ne.s32.totalorder %s129, %s131
      %p138 = scmp.eq.s32.totalorder %s37, 1
      %p139 = por %p137, %p138
      %p140 = scmp.ne.s32.totalorder %s131, %s132
      %p141 = scmp.eq.s32.totalorder %s37, 0
      %p142 = por %p140, %p141
      %p143 = scmp.ne.s32.totalorder %s131, %s132
      %p144 = scmp.eq.s32.totalorder %s38, 1
      %p145 = por %p143, %p144
      %p147 = scmp.ne.s32.totalorder %s132, %s146
      %p148 = scmp.eq.s32.totalorder %s38, 0
      %p149 = por %p147, %p148
      %s151 = sadd.s32 %s150, 1
      %p154 = scmp.eq.s32.totalorder %s32, 1
      %p155 = scmp.ne.s32.totalorder %s150, %s152
      %p156 = scmp.eq.s32.totalorder %s32, 0
      %p157 = por %p155, %p156
      %p158 = scmp.ne.s32.totalorder %s150, %s152
      %p159 = scmp.eq.s32.totalorder %s37, 1
      %p160 = por %p158, %p159
      %p161 = scmp.ne.s32.totalorder %s152, %s153
      %p162 = scmp.eq.s32.totalorder %s37, 0
      %p163 = por %p161, %p162
      %p164 = scmp.ne.s32.totalorder %s152, %s153
      %p165 = scmp.eq.s32.totalorder %s38, 1
      %p166 = por %p164, %p165
      %p168 = scmp.ne.s32.totalorder %s153, %s167
      %p169 = scmp.eq.s32.totalorder %s38, 0
      %p170 = por %p168, %p169
      %s172 = sadd.s32 %s171, 1
      %p175 = scmp.eq.s32.totalorder %s32, 1
      %p176 = scmp.ne.s32.totalorder %s171, %s173
      %p177 = scmp.eq.s32.totalorder %s32, 0
      %p178 = por %p176, %p177
      %p179 = scmp.ne.s32.totalorder %s171, %s173
      %p180 = scmp.eq.s32.totalorder %s37, 1
      %p181 = por %p179, %p180
      %p182 = scmp.ne.s32.totalorder %s173, %s174
      %p183 = scmp.eq.s32.totalorder %s37, 0
      %p184 = por %p182, %p183
      %p185 = scmp.ne.s32.totalorder %s173, %s174
      %p186 = scmp.eq.s32.totalorder %s38, 1
      %p187 = por %p185, %p186
      %p189 = scmp.ne.s32.totalorder %s174, %s188
      %p190 = scmp.eq.s32.totalorder %s38, 0
      %p191 = por %p189, %p190
      %s193 = sadd.s32 %s192, 1
      %p196 = scmp.eq.s32.totalorder %s32, 1
      %p197 = scmp.ne.s32.totalorder %s192, %s194
      %p198 = scmp.eq.s32.totalorder %s32, 0
      %p199 = por %p197, %p198
      %p200 = scmp.ne.s32.totalorder %s192, %s194
      %p201 = scmp.eq.s32.totalorder %s37, 1
      %p202 = por %p200, %p201
      %p203 = scmp.ne.s32.totalorder %s194, %s195
      %p204 = scmp.eq.s32.totalorder %s37, 0
      %p205 = por %p203, %p204
      %p206 = scmp.ne.s32.totalorder %s194, %s195
      %p207 = scmp.eq.s32.totalorder %s38, 1
      %p208 = por %p206, %p207
      %p210 = scmp.ne.s32.totalorder %s195, %s209
      %p211 = scmp.eq.s32.totalorder %s38, 0
      %p212 = por %p210, %p211
      %s214 = sadd.s32 %s213, 1
      %p217 = scmp.eq.s32.totalorder %s32, 1
      %p218 = scmp.ne.s32.totalorder %s213, %s215
      %p219 = scmp.eq.s32.totalorder %s32, 0
      %p220 = por %p218, %p219
      %p221 = scmp.ne.s32.totalorder %s213, %s215
      %p222 = scmp.eq.s32.totalorder %s37, 1
      %p223 = por %p221, %p222
      %p224 = scmp.ne.s32.totalorder %s215, %s216
      %p225 = scmp.eq.s32.totalorder %s37, 0
      %p226 = por %p224, %p225
      %p227 = scmp.ne.s32.totalorder %s215, %s216
      %p228 = scmp.eq.s32.totalorder %s38, 1
      %p229 = por %p227, %p228
      %p231 = scmp.ne.s32.totalorder %s216, %s230
      %p232 = scmp.eq.s32.totalorder %s38, 0
      %p233 = por %p231, %p232
      %s235 = sadd.s32 %s234, 1
      %p238 = scmp.eq.s32.totalorder %s32, 1
      %p239 = scmp.ne.s32.totalorder %s234, %s236
      %p240 = scmp.eq.s32.totalorder %s32, 0
      %p241 = por %p239, %p240
      %p242 = scmp.ne.s32.totalorder %s234, %s236
      %p243 = scmp.eq.s32.totalorder %s37, 1
      %p244 = por %p242, %p243
      %p245 = scmp.ne.s32.totalorder %s236, %s237
      %p246 = scmp.eq.s32.totalorder %s37, 0
      %p247 = por %p245, %p246
      %p248 = scmp.ne.s32.totalorder %s236, %s237
      %p249 = scmp.eq.s32.totalorder %s38, 1
      %p250 = por %p248, %p249
      %p252 = scmp.ne.s32.totalorder %s237, %s251
      %p253 = scmp.eq.s32.totalorder %s38, 0
      %p254 = por %p252, %p253
      %s256 = sadd.s32 %s255, 1
      %p259 = scmp.eq.s32.totalorder %s32, 1
      %p260 = scmp.ne.s32.totalorder %s255, %s257
      %p261 = scmp.eq.s32.totalorder %s32, 0
      %p262 = por %p260, %p261
      %p263 = scmp.ne.s32.totalorder %s255, %s257
      %p264 = scmp.eq.s32.totalorder %s37, 1
      %p265 = por %p263, %p264
      %p266 = scmp.ne.s32.totalorder %s257, %s258
      %p267 = scmp.eq.s32.totalorder %s37, 0
      %p268 = por %p266, %p267
      %p269 = scmp.ne.s32.totalorder %s257, %s258
      %p270 = scmp.eq.s32.totalorder %s38, 1
      %p271 = por %p269, %p270
      %p273 = scmp.ne.s32.totalorder %s258, %s272
      %p274 = scmp.eq.s32.totalorder %s38, 0
      %p275 = por %p273, %p274
      %s277 = sadd.s32 %s276, 1
      %p280 = scmp.eq.s32.totalorder %s32, 1
      %p281 = scmp.ne.s32.totalorder %s276, %s278
      %p282 = scmp.eq.s32.totalorder %s32, 0
      %p283 = por %p281, %p282
      %p284 = scmp.ne.s32.totalorder %s276, %s278
      %p285 = scmp.eq.s32.totalorder %s37, 1
      %p286 = por %p284, %p285
      %p287 = scmp.ne.s32.totalorder %s278, %s279
      %p288 = scmp.eq.s32.totalorder %s37, 0
      %p289 = por %p287, %p288
      %p290 = scmp.ne.s32.totalorder %s278, %s279
      %p291 = scmp.eq.s32.totalorder %s38, 1
      %p292 = por %p290, %p291
      %p294 = scmp.ne.s32.totalorder %s279, %s293
      %p295 = scmp.eq.s32.totalorder %s38, 0
      %p296 = por %p294, %p295
      %s298 = sadd.s32 %s297, 1
      %p301 = scmp.eq.s32.totalorder %s32, 1
      %p302 = scmp.ne.s32.totalorder %s297, %s299
      %p303 = scmp.eq.s32.totalorder %s32, 0
      %p304 = por %p302, %p303
      %p305 = scmp.ne.s32.totalorder %s297, %s299
      %p306 = scmp.eq.s32.totalorder %s37, 1
      %p307 = por %p305, %p306
      %p308 = scmp.ne.s32.totalorder %s299, %s300
      %p309 = scmp.eq.s32.totalorder %s37, 0
      %p310 = por %p308, %p309
      %p311 = scmp.ne.s32.totalorder %s299, %s300
      %p312 = scmp.eq.s32.totalorder %s38, 1
      %p313 = por %p311, %p312
      %p315 = scmp.ne.s32.totalorder %s300, %s314
      %p316 = scmp.eq.s32.totalorder %s38, 0
      %p317 = por %p315, %p316
      %s319 = sadd.s32 %s318, 1
      %p322 = scmp.eq.s32.totalorder %s32, 1
      %p323 = scmp.ne.s32.totalorder %s318, %s320
      %p324 = scmp.eq.s32.totalorder %s32, 0
      %p325 = por %p323, %p324
      %p326 = scmp.ne.s32.totalorder %s318, %s320
      %p327 = scmp.eq.s32.totalorder %s37, 1
      %p328 = por %p326, %p327
      %p329 = scmp.ne.s32.totalorder %s320, %s321
      %p330 = scmp.eq.s32.totalorder %s37, 0
      %p331 = por %p329, %p330
      %p332 = scmp.ne.s32.totalorder %s320, %s321
      %p333 = scmp.eq.s32.totalorder %s38, 1
      %p334 = por %p332, %p333
      %p336 = scmp.ne.s32.totalorder %s321, %s335
      %p337 = scmp.eq.s32.totalorder %s38, 0
      %p338 = por %p336, %p337
      %s340 = sadd.s32 %s339, 1
      %p343 = scmp.eq.s32.totalorder %s32, 1
      %p344 = scmp.ne.s32.totalorder %s339, %s341
      %p345 = scmp.eq.s32.totalorder %s32, 0
      %p346 = por %p344, %p345
      %p347 = scmp.ne.s32.totalorder %s339, %s341
      %p348 = scmp.eq.s32.totalorder %s37, 1
      %p349 = por %p347, %p348
      %p350 = scmp.ne.s32.totalorder %s341, %s342
      %p351 = scmp.eq.s32.totalorder %s37, 0
      %p352 = por %p350, %p351
      %p353 = scmp.ne.s32.totalorder %s341, %s342
      %p354 = scmp.eq.s32.totalorder %s38, 1
      %p355 = por %p353, %p354
      %p357 = scmp.ne.s32.totalorder %s342, %s356
      %p358 = scmp.eq.s32.totalorder %s38, 0
      %p359 = por %p357, %p358
      %s361 = sadd.s32 %s360, 1
      %p364 = scmp.eq.s32.totalorder %s32, 1
      %p365 = scmp.ne.s32.totalorder %s360, %s362
      %p366 = scmp.eq.s32.totalorder %s32, 0
      %p367 = por %p365, %p366
      %p368 = scmp.ne.s32.totalorder %s360, %s362
      %p369 = scmp.eq.s32.totalorder %s37, 1
      %p370 = por %p368, %p369
      %p371 = scmp.ne.s32.totalorder %s362, %s363
      %p372 = scmp.eq.s32.totalorder %s37, 0
      %p373 = por %p371, %p372
      %p374 = scmp.ne.s32.totalorder %s362, %s363
      %p375 = scmp.eq.s32.totalorder %s38, 1
      %p376 = por %p374, %p375
      %p378 = scmp.ne.s32.totalorder %s363, %s377
      %p379 = scmp.eq.s32.totalorder %s38, 0
      %p380 = por %p378, %p379
      %s382 = sadd.s32 %s381, 1
      %p385 = scmp.eq.s32.totalorder %s32, 1
      %p386 = scmp.ne.s32.totalorder %s381, %s383
      %p387 = scmp.eq.s32.totalorder %s32, 0
      %p388 = por %p386, %p387
      %p389 = scmp.ne.s32.totalorder %s381, %s383
      %p390 = scmp.eq.s32.totalorder %s37, 1
      %p391 = por %p389, %p390
      %p392 = scmp.ne.s32.totalorder %s383, %s384
      %p393 = scmp.eq.s32.totalorder %s37, 0
      %p394 = por %p392, %p393
      %p395 = scmp.ne.s32.totalorder %s383, %s384
      %p396 = scmp.eq.s32.totalorder %s38, 1
      %p397 = por %p395, %p396
      %p399 = scmp.ne.s32.totalorder %s384, %s398
      %p400 = scmp.eq.s32.totalorder %s38, 0
      %p401 = por %p399, %p400
      %s403 = sadd.s32 %s402, 1
      %p406 = scmp.eq.s32.totalorder %s32, 1
      %p407 = scmp.ne.s32.totalorder %s402, %s404
      %p408 = scmp.eq.s32.totalorder %s32, 0
      %p409 = por %p407, %p408
      %p410 = scmp.ne.s32.totalorder %s402, %s404
      %p411 = scmp.eq.s32.totalorder %s37, 1
      %p412 = por %p410, %p411
      %p413 = scmp.ne.s32.totalorder %s404, %s405
      %p414 = scmp.eq.s32.totalorder %s37, 0
      %p415 = por %p413, %p414
      %p416 = scmp.ne.s32.totalorder %s404, %s405
      %p417 = scmp.eq.s32.totalorder %s38, 1
      %p418 = por %p416, %p417
      %p420 = scmp.ne.s32.totalorder %s405, %s419
      %p421 = scmp.eq.s32.totalorder %s38, 0
      %p422 = por %p420, %p421
      %s423 = ssub.s32 %s32, %s39
      %p424 = scmp.eq.s32.totalorder %s423, 0
      %s426 = sadd.s32 %s425, 1
      %s427 = scalar_select %p424, %s425, %s426
      %p430 = pneg %p424
      %p431 = scmp.eq.s32.totalorder %s32, 1
      %p432 = por %p430, %p431
      %p433 = scmp.ne.s32.totalorder %s425, %s428
      %p434 = scmp.eq.s32.totalorder %s32, 0
      %p435 = por %p433, %p434
      %p436 = scmp.ne.s32.totalorder %s425, %s428
      %p437 = scmp.eq.s32.totalorder %s37, 1
      %p438 = por %p436, %p437
      %p439 = scmp.ne.s32.totalorder %s428, %s429
      %p440 = scmp.eq.s32.totalorder %s37, 0
      %p441 = por %p439, %p440
      %p442 = scmp.ne.s32.totalorder %s428, %s429
      %p443 = scmp.eq.s32.totalorder %s38, 1
      %p444 = por %p442, %p443
      %p446 = scmp.ne.s32.totalorder %s429, %s445
      %p447 = scmp.eq.s32.totalorder %s38, 0
      %p448 = por %p446, %p447
      %s449 = ssub.s32 %s32, %s39
      %p450 = scmp.eq.s32.totalorder %s449, 0
      %s452 = sadd.s32 %s451, 1
      %s453 = scalar_select %p450, %s451, %s452
      %p456 = pneg %p450
      %p457 = scmp.eq.s32.totalorder %s32, 1
      %p458 = por %p456, %p457
      %p459 = scmp.ne.s32.totalorder %s451, %s454
      %p460 = scmp.eq.s32.totalorder %s32, 0
      %p461 = por %p459, %p460
      %p462 = scmp.ne.s32.totalorder %s451, %s454
      %p463 = scmp.eq.s32.totalorder %s37, 1
      %p464 = por %p462, %p463
      %p465 = scmp.ne.s32.totalorder %s454, %s455
      %p466 = scmp.eq.s32.totalorder %s37, 0
      %p467 = por %p465, %p466
      %p468 = scmp.ne.s32.totalorder %s454, %s455
      %p469 = scmp.eq.s32.totalorder %s38, 1
      %p470 = por %p468, %p469
      %p472 = scmp.ne.s32.totalorder %s455, %s471
      %p473 = scmp.eq.s32.totalorder %s38, 0
      %p474 = por %p472, %p473
      %p475 = scmp.le.s32.totalorder 1, %s32
      %p476 = scmp.lt.s32.totalorder %s32, 3
      %p477 = pnand %p475, %p476
      %p478 = pneg %p477
      // Predicated region
      $region9: #{attention_backbone_forward.1} parent=5 // pred_check
        _
      $region10: #{attention_backbone_forward.1} parent=5 // pred_check_branch
        %480 = sbr.rel (%p477) target = $region12
      $region11: #{attention_backbone_forward.1} parent=5 // pred_region
        %s481 = ssub.s32 %s32, 1
        // Predicated region
        $region13: #{attention_backbone_forward.1} parent=11 // pred_check
          %p482 = pneg %p79
        $region14: #{attention_backbone_forward.1} parent=11 // pred_check_branch
          %484 = sbr.rel (%p482) target = $region16
        $region15: #{attention_backbone_forward.1} parent=11 // pred_region
          _
        $region16: #{attention_backbone_forward.1} parent=11 // pred_fallthru
          _
        // Predicated region
        $region17: #{attention_backbone_forward.1} parent=11 // pred_check
          %p485 = pneg %p100
        $region18: #{attention_backbone_forward.1} parent=11 // pred_check_branch
          %487 = sbr.rel (%p485) target = $region20
        $region19: #{attention_backbone_forward.1} parent=11 // pred_region
          _
        $region20: #{attention_backbone_forward.1} parent=11 // pred_fallthru
          _
        // Predicated region
        $region21: #{attention_backbone_forward.1} parent=11 // pred_check
          %p488 = pneg %p121
        $region22: #{attention_backbone_forward.1} parent=11 // pred_check_branch
          %490 = sbr.rel (%p488) target = $region24
        $region23: #{attention_backbone_forward.1} parent=11 // pred_region
          _
        $region24: #{attention_backbone_forward.1} parent=11 // pred_fallthru
          _
        // Predicated region
        $region25: #{attention_backbone_forward.1} parent=11 // pred_check
          %p491 = pneg %p142
        $region26: #{attention_backbone_forward.1} parent=11 // pred_check_branch
          %493 = sbr.rel (%p491) target = $region28
        $region27: #{attention_backbone_forward.1} parent=11 // pred_region
          _
        $region28: #{attention_backbone_forward.1} parent=11 // pred_fallthru
          _
        // Predicated region
        $region29: #{attention_backbone_forward.1} parent=11 // pred_check
          %p494 = pneg %p163
        $region30: #{attention_backbone_forward.1} parent=11 // pred_check_branch
          %496 = sbr.rel (%p494) target = $region32
        $region31: #{attention_backbone_forward.1} parent=11 // pred_region
          _
        $region32: #{attention_backbone_forward.1} parent=11 // pred_fallthru
          _
        // Predicated region
        $region33: #{attention_backbone_forward.1} parent=11 // pred_check
          %p497 = pneg %p184
        $region34: #{attention_backbone_forward.1} parent=11 // pred_check_branch
          %499 = sbr.rel (%p497) target = $region36
        $region35: #{attention_backbone_forward.1} parent=11 // pred_region
          _
        $region36: #{attention_backbone_forward.1} parent=11 // pred_fallthru
          _
        // Predicated region
        $region37: #{attention_backbone_forward.1} parent=11 // pred_check
          %p500 = pneg %p205
        $region38: #{attention_backbone_forward.1} parent=11 // pred_check_branch
          %502 = sbr.rel (%p500) target = $region40
        $region39: #{attention_backbone_forward.1} parent=11 // pred_region
          _
        $region40: #{attention_backbone_forward.1} parent=11 // pred_fallthru
          _
        // Predicated region
        $region41: #{attention_backbone_forward.1} parent=11 // pred_check
          %p503 = pneg %p226
        $region42: #{attention_backbone_forward.1} parent=11 // pred_check_branch
          %505 = sbr.rel (%p503) target = $region44
        $region43: #{attention_backbone_forward.1} parent=11 // pred_region
          _
        $region44: #{attention_backbone_forward.1} parent=11 // pred_fallthru
          _
        // Predicated region
        $region45: #{attention_backbone_forward.1} parent=11 // pred_check
          %p506 = pneg %p247
        $region46: #{attention_backbone_forward.1} parent=11 // pred_check_branch
          %508 = sbr.rel (%p506) target = $region48
        $region47: #{attention_backbone_forward.1} parent=11 // pred_region
          _
        $region48: #{attention_backbone_forward.1} parent=11 // pred_fallthru
          _
        // Predicated region
        $region49: #{attention_backbone_forward.1} parent=11 // pred_check
          %p509 = pneg %p268
        $region50: #{attention_backbone_forward.1} parent=11 // pred_check_branch
          %511 = sbr.rel (%p509) target = $region52
        $region51: #{attention_backbone_forward.1} parent=11 // pred_region
          _
        $region52: #{attention_backbone_forward.1} parent=11 // pred_fallthru
          _
        // Predicated region
        $region53: #{attention_backbone_forward.1} parent=11 // pred_check
          %p512 = pneg %p289
        $region54: #{attention_backbone_forward.1} parent=11 // pred_check_branch
          %514 = sbr.rel (%p512) target = $region56
        $region55: #{attention_backbone_forward.1} parent=11 // pred_region
          _
        $region56: #{attention_backbone_forward.1} parent=11 // pred_fallthru
          _
        // Predicated region
        $region57: #{attention_backbone_forward.1} parent=11 // pred_check
          %p515 = pneg %p310
        $region58: #{attention_backbone_forward.1} parent=11 // pred_check_branch
          %517 = sbr.rel (%p515) target = $region60
        $region59: #{attention_backbone_forward.1} parent=11 // pred_region
          _
        $region60: #{attention_backbone_forward.1} parent=11 // pred_fallthru
          _
        // Predicated region
        $region61: #{attention_backbone_forward.1} parent=11 // pred_check
          %p518 = pneg %p331
        $region62: #{attention_backbone_forward.1} parent=11 // pred_check_branch
          %520 = sbr.rel (%p518) target = $region64
        $region63: #{attention_backbone_forward.1} parent=11 // pred_region
          _
        $region64: #{attention_backbone_forward.1} parent=11 // pred_fallthru
          _
        // Predicated region
        $region65: #{attention_backbone_forward.1} parent=11 // pred_check
          %p521 = pneg %p352
        $region66: #{attention_backbone_forward.1} parent=11 // pred_check_branch
          %523 = sbr.rel (%p521) target = $region68
        $region67: #{attention_backbone_forward.1} parent=11 // pred_region
          _
        $region68: #{attention_backbone_forward.1} parent=11 // pred_fallthru
          _
        // Predicated region
        $region69: #{attention_backbone_forward.1} parent=11 // pred_check
          %p524 = pneg %p373
        $region70: #{attention_backbone_forward.1} parent=11 // pred_check_branch
          %526 = sbr.rel (%p524) target = $region72
        $region71: #{attention_backbone_forward.1} parent=11 // pred_region
          _
        $region72: #{attention_backbone_forward.1} parent=11 // pred_fallthru
          _
        // Predicated region
        $region73: #{attention_backbone_forward.1} parent=11 // pred_check
          %p527 = pneg %p394
        $region74: #{attention_backbone_forward.1} parent=11 // pred_check_branch
          %529 = sbr.rel (%p527) target = $region76
        $region75: #{attention_backbone_forward.1} parent=11 // pred_region
          _
        $region76: #{attention_backbone_forward.1} parent=11 // pred_fallthru
          _
        // Predicated region
        $region77: #{attention_backbone_forward.1} parent=11 // pred_check
          %p530 = pneg %p415
        $region78: #{attention_backbone_forward.1} parent=11 // pred_check_branch
          %532 = sbr.rel (%p530) target = $region80
        $region79: #{attention_backbone_forward.1} parent=11 // pred_region
          _
        $region80: #{attention_backbone_forward.1} parent=11 // pred_fallthru
          _
      $region12: #{attention_backbone_forward.1} parent=5 // pred_fallthru
        _
      %p533 = scmp.lt.s32.totalorder %s32, 2
      // Predicated region
      $region81: #{attention_backbone_forward.1} parent=5 // pred_check
        %p534 = pneg %p533
      $region82: #{attention_backbone_forward.1} parent=5 // pred_check_branch
        %536 = sbr.rel (%p534) target = $region84
      $region83: #{attention_backbone_forward.1} parent=5 // pred_region
        // Predicated region
        $region85: #{attention_backbone_forward.1} parent=83 // pred_check
          %p537 = pneg %p52
        $region86: #{attention_backbone_forward.1} parent=83 // pred_check_branch
          %539 = sbr.rel (%p537) target = $region88
        $region87: #{attention_backbone_forward.1} parent=83 // pred_region
          %p540 = scmp.lt.s32.totalorder %s32, 1
          %s541 = scalar_select %p540, %s32, 1
          %s542 = smul.addr %s541, 8
          %s543 = smul.addr %s542, 4
          %s544 = scalar_lea.vmem %s0, %s543
        $region88: #{attention_backbone_forward.1} parent=83 // pred_fallthru
          _
      $region84: #{attention_backbone_forward.1} parent=5 // pred_fallthru
        _
      %p545 = scmp.le.s32.totalorder 1, %s32
      %p546 = scmp.lt.s32.totalorder %s32, 3
      %p547 = pnand %p545, %p546
      %p548 = pneg %p547
      // Predicated region
      $region89: #{attention_backbone_forward.1} parent=5 // pred_check
        _
      $region90: #{attention_backbone_forward.1} parent=5 // pred_check_branch
        %550 = sbr.rel (%p547) target = $region92
      $region91: #{attention_backbone_forward.1} parent=5 // pred_region
        %s551 = ssub.s32 %s32, 1
        %p552 = scmp.lt.s32.totalorder %s37, 1
        %s553 = scalar_select %p552, %s37, 1
        %s554 = smul.addr %s553, 8
        %s555 = smul.addr %s554, 4
        %s556 = scalar_lea.vmem %s0, %s555
        %p557 = pneg %p58
        %p558 = pneg %p55
        %p559 = pneg %p79
        %p560 = pneg %p76
        %p561 = pneg %p100
        %p562 = pneg %p97
        %p563 = pneg %p121
        %p564 = pneg %p118
        %p565 = pneg %p142
        %p566 = pneg %p139
        %p567 = pneg %p163
        %p568 = pneg %p160
        %p569 = pneg %p184
        %p570 = pneg %p181
        %p571 = pneg %p205
        %p572 = pneg %p202
        %p573 = pneg %p226
        %p574 = pneg %p223
        %p575 = pneg %p247
        %p576 = pneg %p244
        %p577 = pneg %p268
        %p578 = pneg %p265
        %p579 = pneg %p289
        %p580 = pneg %p286
        %p581 = pneg %p310
        %p582 = pneg %p307
        %p583 = pneg %p331
        %p584 = pneg %p328
        %p585 = pneg %p352
        %p586 = pneg %p349
        %p587 = pneg %p373
        %p588 = pneg %p370
        %p589 = pneg %p394
        %p590 = pneg %p391
        %p591 = pneg %p415
        %p592 = pneg %p412
        %p593 = pneg %p441
        %p594 = pneg %p438
        %s595 = sand.u32 %s428, 1
        %s596 = scalar_lea.sflag [#allocation5], %s595
        %s597 = sand.u32 %s428, 1
        %s598 = scalar_lea.vmem [#allocation4], %s597
        %p599 = pneg %p467
        %p600 = pneg %p464
        %s601 = sand.u32 %s454, 1
        %s602 = scalar_lea.sflag [#allocation7], %s601
        %s603 = sand.u32 %s454, 1
        %s604 = scalar_lea.vmem [#allocation6], %s603
        %p605 = scmp.lt.s32.totalorder %s37, 1
        %s606 = scalar_select %p605, %s37, 1
        %s607 = smul.addr %s606, 8
        %s608 = smul.addr %s607, 4
        %s609 = scalar_lea.vmem %s0, %s608
        %v611 = vld [vmem:[%s609] sm:$0xf]
        %v612 = vld [vmem:[%s609 + $0x4] sm:$0xf]
        %v613 = vld [vmem:[%s609 + $0x8] sm:$0xf]
        %v614 = vld [vmem:[%s609 + $0xc] sm:$0xf]
        %v615 = vld [vmem:[%s609 + $0x10] sm:$0xf]
        %v616 = vld [vmem:[%s609 + $0x14] sm:$0xf]
        %v617 = vld [vmem:[%s609 + $0x18] sm:$0xf]
        %v618 = vld [vmem:[%s609 + $0x1c] sm:$0x7]
        %v619 = vld [vmem:[%s1] sm:$0xf]
        %v620 = vld [vmem:[%s1 + $0x4] sm:$0xf]
        %v621 = vld [vmem:[%s1 + $0x8] sm:$0xf]
        %v622 = vld [vmem:[%s1 + $0xc] sm:$0xf]
        %v623 = vld [vmem:[%s1 + $0x10] sm:$0xf]
        %v624 = vld [vmem:[%s1 + $0x14] sm:$0xf]
        %v625 = vld [vmem:[%s1 + $0x18] sm:$0xf]
        %v626 = vld [vmem:[%s1 + $0x1c] sm:$0xf]
        %v627 = vld [vmem:[%s1 + $0x20] sm:$0xf]
        %v628 = vld [vmem:[%s1 + $0x24] sm:$0xf]
        %v629 = vld [vmem:[%s2] sm:$0x1]
        %v631 = vlaneseq
        %v632 = vshrl.u32 %v631, 7
        %v633 = vsub.s32 0, %v632
        %v634 = vrot.slane %v629, %v633
        %v644 = vunpack.c.l.b16 %v611
        %v645 = vunpack.c.l.b16 %v612
        %v646 = vunpack.c.l.b16 %v613
        %v647 = vunpack.c.l.b16 %v614
        %v648 = vunpack.c.l.b16 %v615
        %v649 = vunpack.c.l.b16 %v616
        %v650 = vunpack.c.l.b16 %v617
        %v651 = vunpack.c.l.b16 %v618
        %v652 = vpack.c.b16 %v645, %v644
        %v653 = vpack.c.b16 %v647, %v646
        %v654 = vpack.c.b16 %v649, %v648
        %v655 = vpack.c.b16 %v651, %v650
        %v666 = vunpack.c.l.b16 %v619
        %v667 = vunpack.c.l.b16 %v620
        %v668 = vunpack.c.l.b16 %v621
        %v669 = vunpack.c.l.b16 %v622
        %v670 = vunpack.c.l.b16 %v623
        %v671 = vunpack.c.l.b16 %v624
        %v672 = vunpack.c.l.b16 %v625
        %v673 = vunpack.c.l.b16 %v626
        %v674 = vunpack.c.l.b16 %v627
        %v675 = vunpack.c.l.b16 %v628
        %v676 = vpack.c.b16 %v667, %v666
        %v677 = vpack.c.b16 %v669, %v668
        %v678 = vpack.c.b16 %v671, %v670
        %v679 = vpack.c.b16 %v673, %v672
        %v680 = vpack.c.b16 %v675, %v674
        %vm686 = vcmask 654336
        %v688 = vsel %vm686, %v652, 0
        %v691 = vsel %vm686, %v653, 0
        %v694 = vsel %vm686, %v654, 0
        %v697 = vsel %vm686, %v655, 0
        %699 = vmatprep.subr.bf16.mxu0 0
        %700 = vmatpush1.bf16.msra.mxu0 %v676
        %701 = vmatprep.subr.bf16.mxu0 0
        %702 = vmatpush1.bf16.msra.mxu0 %v677
        %703 = vmatprep.subr.bf16.mxu0 0
        %704 = vmatpush1.bf16.msra.mxu0 %v678
        %705 = vmatprep.subr.bf16.mxu0 0
        %706 = vmatpush1.bf16.msra.mxu0 %v679
        %707 = vmatprep.subr.bf16.mxu0 0
        %708 = vmatpush1.bf16.msra.mxu0 %v680
        %709 = vmatprep.subr.bf16.mxu0 0
        %710 = vmatpush1.bf16.msra.mxu0 0
        %711 = vmatprep.subr.bf16.mxu0 0
        %712 = vmatpush1.bf16.msra.mxu0 0
        %713 = vmatprep.subr.bf16.mxu0 0
        %714 = vmatpush1.bf16.msra.mxu0 0
        %715 = vmatprep.subr.bf16.mxu0 0
        %716 = vmatpush1.bf16.msra.mxu0 0
        %717 = vmatprep.subr.bf16.mxu0 0
        %718 = vmatpush1.bf16.msra.mxu0 0
        %719 = vmatprep.subr.bf16.mxu0 0
        %720 = vmatpush1.bf16.msra.mxu0 0
        %721 = vmatprep.subr.bf16.mxu0 0
        %722 = vmatpush1.bf16.msra.mxu0 0
        %723 = vmatprep.subr.bf16.mxu0 0
        %724 = vmatpush1.bf16.msra.mxu0 0
        %725 = vmatprep.subr.bf16.mxu0 0
        %726 = vmatpush1.bf16.msra.mxu0 0
        %727 = vmatprep.subr.bf16.mxu0 0
        %728 = vmatpush1.bf16.msra.mxu0 0
        %729 = vmatprep.subr.bf16.mxu0 0
        %730 = vmatpush1.bf16.msra.mxu0 0
        %731 = vmatprep.mubr.bf16.mxu0 0
        %732 = vmatmul.mubr.bf16.gmra.mrb[0].mxu0 %v688
        %v733 = vpop.f32.mrb[0].mxu0
        %v734 = vadd.f32 %v634, %v733
        %v735 = vpop.f32.mrb[0].mxu0
        %v736 = vpop.f32.mrb[0].mxu0
        %v737 = vadd.f32 %v634, %v736
        %v738 = vpop.f32.mrb[0].mxu0
        %739 = vmatprep.mubr.bf16.mxu0 0
        %740 = vmatmul.mubr.bf16.gmra.mrb[0].mxu0 %v691
        %v741 = vpop.f32.mrb[0].mxu0
        %v742 = vadd.f32 %v634, %v741
        %v743 = vpop.f32.mrb[0].mxu0
        %v744 = vpop.f32.mrb[0].mxu0
        %v745 = vadd.f32 %v634, %v744
        %v746 = vpop.f32.mrb[0].mxu0
        %747 = vmatprep.mubr.bf16.mxu0 0
        %748 = vmatmul.mubr.bf16.gmra.mrb[0].mxu0 %v694
        %v749 = vpop.f32.mrb[0].mxu0
        %v750 = vadd.f32 %v634, %v749
        %v751 = vpop.f32.mrb[0].mxu0
        %v752 = vpop.f32.mrb[0].mxu0
        %v753 = vadd.f32 %v634, %v752
        %v754 = vpop.f32.mrb[0].mxu0
        %755 = vmatprep.mubr.bf16.mxu0 0
        %756 = vmatmul.mubr.bf16.gmra.mrb[0].mxu0 %v697
        %v757 = vpop.f32.mrb[0].mxu0
        %v758 = vadd.f32 %v634, %v757
        %v759 = vpop.f32.mrb[0].mxu0
        %v760 = vpop.f32.mrb[0].mxu0
        %v761 = vadd.f32 %v634, %v760
        %v762 = vpop.f32.mrb[0].mxu0
        %763 = vdwg.mxu0
        %v764 = vmax.f32 %v734, 0.0
        %v765 = vmax.f32 %v737, 0.0
        %v766 = vmax.f32 %v742, 0.0
        %v767 = vmax.f32 %v745, 0.0
        %v768 = vmax.f32 %v750, 0.0
        %v769 = vmax.f32 %v753, 0.0
        %v770 = vmax.f32 %v758, 0.0
        %v771 = vmax.f32 %v761, 0.0
        %vm772 = vcmask 195584
        %773 = vst.msk [vmem:[#allocation2] sm:$0xff] %vm772, %v764
        %774 = vst.msk [vmem:[#allocation2 + $0x8] sm:$0xff] %vm772, %v765
        %775 = vst.msk [vmem:[#allocation2 + $0x10] sm:$0xff] %vm772, %v766
        %776 = vst.msk [vmem:[#allocation2 + $0x18] sm:$0xff] %vm772, %v767
        %777 = vst.msk [vmem:[#allocation2 + $0x20] sm:$0xff] %vm772, %v768
        %778 = vst.msk [vmem:[#allocation2 + $0x28] sm:$0xff] %vm772, %v769
        %779 = vst.msk [vmem:[#allocation2 + $0x30] sm:$0xff] %vm772, %v770
        %vm780 = vcmask 193536
        %781 = vst.msk [vmem:[#allocation2 + $0x38] sm:$0x3f] %vm780, %v771
        %v782 = vld [vmem:[#allocation2] ss:$4 sm:$0xff]
        %s783 = scalar_lea.vmem [#allocation2], 32
        %v784 = vld [vmem:[%s783] ss:$4 sm:$0x3f]
        %v785 = vpack.c.bf16 %v784, %v782
        %v786 = vld [vmem:[%s3] sm:$0xf]
        %v787 = vld [vmem:[%s3 + $0x4] sm:$0xf]
        %v788 = vld [vmem:[%s3 + $0x8] sm:$0xf]
        %s789 = scalar_lea.vmem [#allocation2], 1
        %v790 = vld [vmem:[%s789] ss:$4 sm:$0xff]
        %s791 = scalar_lea.vmem [#allocation2], 33
        %v792 = vld [vmem:[%s791] ss:$4 sm:$0x3f]
        %v793 = vpack.c.bf16 %v792, %v790
        %v794 = vld [vmem:[%s3 + $0xc] sm:$0xf]
        %v795 = vld [vmem:[%s3 + $0x10] sm:$0xf]
        %v796 = vld [vmem:[%s3 + $0x14] sm:$0xf]
        %v800 = vunpack.c.l.b16 %v794
        %v801 = vunpack.c.l.b16 %v795
        %v802 = vunpack.c.l.b16 %v796
        %v803 = vpack.c.b16 %v801, %v800
        %v804 = vpack.c.b16 %v802, %v802
        %v807 = vsel %vm772, %v793, 0
        %vm809 = vcmask 1043456
        %v811 = vsel %vm809, %v804, 0
        %813 = vmatprep.subr.bf16.mxu0 0
        %814 = vmatpush1.bf16.msra.mxu0 %v803
        %815 = vmatprep.subr.bf16.mxu0 0
        %816 = vmatpush1.bf16.msra.mxu0 %v811
        %817 = vmatprep.subr.bf16.mxu0 0
        %818 = vmatpush1.bf16.msra.mxu0 0
        %819 = vmatprep.subr.bf16.mxu0 0
        %820 = vmatpush1.bf16.msra.mxu0 0
        %821 = vmatprep.subr.bf16.mxu0 0
        %822 = vmatpush1.bf16.msra.mxu0 0
        %823 = vmatprep.subr.bf16.mxu0 0
        %824 = vmatpush1.bf16.msra.mxu0 0
        %825 = vmatprep.subr.bf16.mxu0 0
        %826 = vmatpush1.bf16.msra.mxu0 0
        %827 = vmatprep.subr.bf16.mxu0 0
        %828 = vmatpush1.bf16.msra.mxu0 0
        %829 = vmatprep.subr.bf16.mxu0 0
        %830 = vmatpush1.bf16.msra.mxu0 0
        %831 = vmatprep.subr.bf16.mxu0 0
        %832 = vmatpush1.bf16.msra.mxu0 0
        %833 = vmatprep.subr.bf16.mxu0 0
        %834 = vmatpush1.bf16.msra.mxu0 0
        %835 = vmatprep.subr.bf16.mxu0 0
        %836 = vmatpush1.bf16.msra.mxu0 0
        %837 = vmatprep.subr.bf16.mxu0 0
        %838 = vmatpush1.bf16.msra.mxu0 0
        %839 = vmatprep.subr.bf16.mxu0 0
        %840 = vmatpush1.bf16.msra.mxu0 0
        %841 = vmatprep.subr.bf16.mxu0 0
        %842 = vmatpush1.bf16.msra.mxu0 0
        %843 = vmatprep.subr.bf16.mxu0 0
        %844 = vmatpush1.bf16.msra.mxu0 0
        %845 = vmatprep.mubr.bf16.mxu0 0
        %846 = vmatmul.mubr.bf16.gmra.mrb[0].mxu0 %v807
        %v847 = vpop.f32.mrb[0].mxu0
        %v848 = vadd.f32 0.0, %v847
        %v849 = vpop.f32.mrb[0].mxu0
        %v850 = vpop.f32.mrb[0].mxu0
        %v851 = vadd.f32 0.0, %v850
        %v852 = vpop.f32.mrb[0].mxu0
        %853 = vdwg.mxu0
        %v857 = vunpack.c.l.b16 %v786
        %v858 = vunpack.c.l.b16 %v787
        %v859 = vunpack.c.l.b16 %v788
        %v860 = vpack.c.b16 %v858, %v857
        %v861 = vpack.c.b16 %v859, %v859
        %v864 = vsel %vm772, %v785, 0
        %v867 = vsel %vm809, %v861, 0
        %869 = vmatprep.subr.bf16.mxu0 0
        %870 = vmatpush1.bf16.msra.mxu0 %v860
        %871 = vmatprep.subr.bf16.mxu0 0
        %872 = vmatpush1.bf16.msra.mxu0 %v867
        %873 = vmatprep.subr.bf16.mxu0 0
        %874 = vmatpush1.bf16.msra.mxu0 0
        %875 = vmatprep.subr.bf16.mxu0 0
        %876 = vmatpush1.bf16.msra.mxu0 0
        %877 = vmatprep.subr.bf16.mxu0 0
        %878 = vmatpush1.bf16.msra.mxu0 0
        %879 = vmatprep.subr.bf16.mxu0 0
        %880 = vmatpush1.bf16.msra.mxu0 0
        %881 = vmatprep.subr.bf16.mxu0 0
        %882 = vmatpush1.bf16.msra.mxu0 0
        %883 = vmatprep.subr.bf16.mxu0 0
        %884 = vmatpush1.bf16.msra.mxu0 0
        %885 = vmatprep.subr.bf16.mxu0 0
        %886 = vmatpush1.bf16.msra.mxu0 0
        %887 = vmatprep.subr.bf16.mxu0 0
        %888 = vmatpush1.bf16.msra.mxu0 0
        %889 = vmatprep.subr.bf16.mxu0 0
        %890 = vmatpush1.bf16.msra.mxu0 0
        %891 = vmatprep.subr.bf16.mxu0 0
        %892 = vmatpush1.bf16.msra.mxu0 0
        %893 = vmatprep.subr.bf16.mxu0 0
        %894 = vmatpush1.bf16.msra.mxu0 0
        %895 = vmatprep.subr.bf16.mxu0 0
        %896 = vmatpush1.bf16.msra.mxu0 0
        %897 = vmatprep.subr.bf16.mxu0 0
        %898 = vmatpush1.bf16.msra.mxu0 0
        %899 = vmatprep.subr.bf16.mxu0 0
        %900 = vmatpush1.bf16.msra.mxu0 0
        %901 = vmatprep.mubr.bf16.mxu0 0
        %902 = vmatmul.mubr.bf16.gmra.mrb[0].mxu0 %v864
        %v903 = vpop.f32.mrb[0].mxu0
        %v904 = vadd.f32 %v848, %v903
        %v905 = vpop.f32.mrb[0].mxu0
        %v906 = vpop.f32.mrb[0].mxu0
        %v907 = vadd.f32 %v851, %v906
        %v908 = vpop.f32.mrb[0].mxu0
        %909 = vdwg.mxu0
        %s910 = scalar_lea.vmem [#allocation2], 2
        %v911 = vld [vmem:[%s910] ss:$4 sm:$0xff]
        %s912 = scalar_lea.vmem [#allocation2], 34
        %v913 = vld [vmem:[%s912] ss:$4 sm:$0x3f]
        %v914 = vpack.c.bf16 %v913, %v911
        %v915 = vld [vmem:[%s3 + $0x18] sm:$0xf]
        %v916 = vld [vmem:[%s3 + $0x1c] sm:$0xf]
        %v917 = vld [vmem:[%s3 + $0x20] sm:$0xf]
        %v921 = vunpack.c.l.b16 %v915
        %v922 = vunpack.c.l.b16 %v916
        %v923 = vunpack.c.l.b16 %v917
        %v924 = vpack.c.b16 %v922, %v921
        %v925 = vpack.c.b16 %v923, %v923
        %v928 = vsel %vm772, %v914, 0
        %v931 = vsel %vm809, %v925, 0
        %933 = vmatprep.subr.bf16.mxu0 0
        %934 = vmatpush1.bf16.msra.mxu0 %v924
        %935 = vmatprep.subr.bf16.mxu0 0
        %936 = vmatpush1.bf16.msra.mxu0 %v931
        %937 = vmatprep.subr.bf16.mxu0 0
        %938 = vmatpush1.bf16.msra.mxu0 0
        %939 = vmatprep.subr.bf16.mxu0 0
        %940 = vmatpush1.bf16.msra.mxu0 0
        %941 = vmatprep.subr.bf16.mxu0 0
        %942 = vmatpush1.bf16.msra.mxu0 0
        %943 = vmatprep.subr.bf16.mxu0 0
        %944 = vmatpush1.bf16.msra.mxu0 0
        %945 = vmatprep.subr.bf16.mxu0 0
        %946 = vmatpush1.bf16.msra.mxu0 0
        %947 = vmatprep.subr.bf16.mxu0 0
        %948 = vmatpush1.bf16.msra.mxu0 0
        %949 = vmatprep.subr.bf16.mxu0 0
        %950 = vmatpush1.bf16.msra.mxu0 0
        %951 = vmatprep.subr.bf16.mxu0 0
        %952 = vmatpush1.bf16.msra.mxu0 0
        %953 = vmatprep.subr.bf16.mxu0 0
        %954 = vmatpush1.bf16.msra.mxu0 0
        %955 = vmatprep.subr.bf16.mxu0 0
        %956 = vmatpush1.bf16.msra.mxu0 0
        %957 = vmatprep.subr.bf16.mxu0 0
        %958 = vmatpush1.bf16.msra.mxu0 0
        %959 = vmatprep.subr.bf16.mxu0 0
        %960 = vmatpush1.bf16.msra.mxu0 0
        %961 = vmatprep.subr.bf16.mxu0 0
        %962 = vmatpush1.bf16.msra.mxu0 0
        %963 = vmatprep.subr.bf16.mxu0 0
        %964 = vmatpush1.bf16.msra.mxu0 0
        %965 = vmatprep.mubr.bf16.mxu0 0
        %966 = vmatmul.mubr.bf16.gmra.mrb[0].mxu0 %v928
        %v967 = vpop.f32.mrb[0].mxu0
        %v968 = vadd.f32 0.0, %v967
        %v969 = vpop.f32.mrb[0].mxu0
        %v970 = vpop.f32.mrb[0].mxu0
        %v971 = vadd.f32 0.0, %v970
        %v972 = vpop.f32.mrb[0].mxu0
        %973 = vdwg.mxu0
        %v974 = vadd.f32 %v904, %v968
        %v975 = vadd.f32 %v907, %v971
        %s976 = scalar_lea.vmem [#allocation2], 3
        %v977 = vld [vmem:[%s976] ss:$4 sm:$0xff]
        %s978 = scalar_lea.vmem [#allocation2], 35
        %v979 = vld [vmem:[%s978] ss:$4 sm:$0x3f]
        %v980 = vpack.c.bf16 %v979, %v977
        %v981 = vld [vmem:[%s3 + $0x24] sm:$0xf]
        %v982 = vld [vmem:[%s3 + $0x28] sm:$0xf]
        %v983 = vld [vmem:[%s3 + $0x2c] sm:$0xf]
        %v987 = vunpack.c.l.b16 %v981
        %v988 = vunpack.c.l.b16 %v982
        %v989 = vunpack.c.l.b16 %v983
        %v990 = vpack.c.b16 %v988, %v987
        %v991 = vpack.c.b16 %v989, %v989
        %v994 = vsel %vm772, %v980, 0
        %v997 = vsel %vm809, %v991, 0
        %999 = vmatprep.subr.bf16.mxu0 0
        %1000 = vmatpush1.bf16.msra.mxu0 %v990
        %1001 = vmatprep.subr.bf16.mxu0 0
        %1002 = vmatpush1.bf16.msra.mxu0 %v997
        %1003 = vmatprep.subr.bf16.mxu0 0
        %1004 = vmatpush1.bf16.msra.mxu0 0
        %1005 = vmatprep.subr.bf16.mxu0 0
        %1006 = vmatpush1.bf16.msra.mxu0 0
        %1007 = vmatprep.subr.bf16.mxu0 0
        %1008 = vmatpush1.bf16.msra.mxu0 0
        %1009 = vmatprep.subr.bf16.mxu0 0
        %1010 = vmatpush1.bf16.msra.mxu0 0
        %1011 = vmatprep.subr.bf16.mxu0 0
        %1012 = vmatpush1.bf16.msra.mxu0 0
        %1013 = vmatprep.subr.bf16.mxu0 0
        %1014 = vmatpush1.bf16.msra.mxu0 0
        %1015 = vmatprep.subr.bf16.mxu0 0
        %1016 = vmatpush1.bf16.msra.mxu0 0
        %1017 = vmatprep.subr.bf16.mxu0 0
        %1018 = vmatpush1.bf16.msra.mxu0 0
        %1019 = vmatprep.subr.bf16.mxu0 0
        %1020 = vmatpush1.bf16.msra.mxu0 0
        %1021 = vmatprep.subr.bf16.mxu0 0
        %1022 = vmatpush1.bf16.msra.mxu0 0
        %1023 = vmatprep.subr.bf16.mxu0 0
        %1024 = vmatpush1.bf16.msra.mxu0 0
        %1025 = vmatprep.subr.bf16.mxu0 0
        %1026 = vmatpush1.bf16.msra.mxu0 0
        %1027 = vmatprep.subr.bf16.mxu0 0
        %1028 = vmatpush1.bf16.msra.mxu0 0
        %1029 = vmatprep.subr.bf16.mxu0 0
        %1030 = vmatpush1.bf16.msra.mxu0 0
        %1031 = vmatprep.mubr.bf16.mxu0 0
        %1032 = vmatmul.mubr.bf16.gmra.mrb[0].mxu0 %v994
        %v1033 = vpop.f32.mrb[0].mxu0
        %v1034 = vadd.f32 0.0, %v1033
        %v1035 = vpop.f32.mrb[0].mxu0
        %v1036 = vpop.f32.mrb[0].mxu0
        %v1037 = vadd.f32 0.0, %v1036
        %v1038 = vpop.f32.mrb[0].mxu0
        %1039 = vdwg.mxu0
        %v1040 = vadd.f32 %v974, %v1034
        %v1041 = vadd.f32 %v975, %v1037
        %s1042 = scalar_lea.vmem [#allocation2], 4
        %v1043 = vld [vmem:[%s1042] ss:$4 sm:$0xff]
        %s1044 = scalar_lea.vmem [#allocation2], 36
        %v1045 = vld [vmem:[%s1044] ss:$4 sm:$0x3f]
        %v1046 = vpack.c.bf16 %v1045, %v1043
        %v1047 = vld [vmem:[%s3 + $0x30] sm:$0xf]
        %v1048 = vld [vmem:[%s3 + $0x34] sm:$0xf]
        %v1049 = vld [vmem:[%s3 + $0x38] sm:$0xf]
        %v1053 = vunpack.c.l.b16 %v1047
        %v1054 = vunpack.c.l.b16 %v1048
        %v1055 = vunpack.c.l.b16 %v1049
        %v1056 = vpack.c.b16 %v1054, %v1053
        %v1057 = vpack.c.b16 %v1055, %v1055
        %v1060 = vsel %vm772, %v1046, 0
        %v1063 = vsel %vm809, %v1057, 0
        %1065 = vmatprep.subr.bf16.mxu0 0
        %1066 = vmatpush1.bf16.msra.mxu0 %v1056
        %1067 = vmatprep.subr.bf16.mxu0 0
        %1068 = vmatpush1.bf16.msra.mxu0 %v1063
        %1069 = vmatprep.subr.bf16.mxu0 0
        %1070 = vmatpush1.bf16.msra.mxu0 0
        %1071 = vmatprep.subr.bf16.mxu0 0
        %1072 = vmatpush1.bf16.msra.mxu0 0
        %1073 = vmatprep.subr.bf16.mxu0 0
        %1074 = vmatpush1.bf16.msra.mxu0 0
        %1075 = vmatprep.subr.bf16.mxu0 0
        %1076 = vmatpush1.bf16.msra.mxu0 0
        %1077 = vmatprep.subr.bf16.mxu0 0
        %1078 = vmatpush1.bf16.msra.mxu0 0
        %1079 = vmatprep.subr.bf16.mxu0 0
        %1080 = vmatpush1.bf16.msra.mxu0 0
        %1081 = vmatprep.subr.bf16.mxu0 0
        %1082 = vmatpush1.bf16.msra.mxu0 0
        %1083 = vmatprep.subr.bf16.mxu0 0
        %1084 = vmatpush1.bf16.msra.mxu0 0
        %1085 = vmatprep.subr.bf16.mxu0 0
        %1086 = vmatpush1.bf16.msra.mxu0 0
        %1087 = vmatprep.subr.bf16.mxu0 0
        %1088 = vmatpush1.bf16.msra.mxu0 0
        %1089 = vmatprep.subr.bf16.mxu0 0
        %1090 = vmatpush1.bf16.msra.mxu0 0
        %1091 = vmatprep.subr.bf16.mxu0 0
        %1092 = vmatpush1.bf16.msra.mxu0 0
        %1093 = vmatprep.subr.bf16.mxu0 0
        %1094 = vmatpush1.bf16.msra.mxu0 0
        %1095 = vmatprep.subr.bf16.mxu0 0
        %1096 = vmatpush1.bf16.msra.mxu0 0
        %1097 = vmatprep.mubr.bf16.mxu0 0
        %1098 = vmatmul.mubr.bf16.gmra.mrb[0].mxu0 %v1060
        %v1099 = vpop.f32.mrb[0].mxu0
        %v1100 = vadd.f32 0.0, %v1099
        %v1101 = vpop.f32.mrb[0].mxu0
        %v1102 = vpop.f32.mrb[0].mxu0
        %v1103 = vadd.f32 0.0, %v1102
        %v1104 = vpop.f32.mrb[0].mxu0
        %1105 = vdwg.mxu0
        %v1106 = vadd.f32 %v1040, %v1100
        %v1107 = vadd.f32 %v1041, %v1103
        %s1108 = scalar_lea.vmem [#allocation2], 5
        %v1109 = vld [vmem:[%s1108] ss:$4 sm:$0xff]
        %s1110 = scalar_lea.vmem [#allocation2], 37
        %v1111 = vld [vmem:[%s1110] ss:$4 sm:$0x3f]
        %v1112 = vpack.c.bf16 %v1111, %v1109
        %v1113 = vld [vmem:[%s3 + $0x3c] sm:$0xf]
        %v1114 = vld [vmem:[%s3 + $0x40] sm:$0xf]
        %v1115 = vld [vmem:[%s3 + $0x44] sm:$0xf]
        %v1119 = vunpack.c.l.b16 %v1113
        %v1120 = vunpack.c.l.b16 %v1114
        %v1121 = vunpack.c.l.b16 %v1115
        %v1122 = vpack.c.b16 %v1120, %v1119
        %v1123 = vpack.c.b16 %v1121, %v1121
        %v1126 = vsel %vm772, %v1112, 0
        %v1129 = vsel %vm809, %v1123, 0
        %1131 = vmatprep.subr.bf16.mxu0 0
        %1132 = vmatpush1.bf16.msra.mxu0 %v1122
        %1133 = vmatprep.subr.bf16.mxu0 0
        %1134 = vmatpush1.bf16.msra.mxu0 %v1129
        %1135 = vmatprep.subr.bf16.mxu0 0
        %1136 = vmatpush1.bf16.msra.mxu0 0
        %1137 = vmatprep.subr.bf16.mxu0 0
        %1138 = vmatpush1.bf16.msra.mxu0 0
        %1139 = vmatprep.subr.bf16.mxu0 0
        %1140 = vmatpush1.bf16.msra.mxu0 0
        %1141 = vmatprep.subr.bf16.mxu0 0
        %1142 = vmatpush1.bf16.msra.mxu0 0
        %1143 = vmatprep.subr.bf16.mxu0 0
        %1144 = vmatpush1.bf16.msra.mxu0 0
        %1145 = vmatprep.subr.bf16.mxu0 0
        %1146 = vmatpush1.bf16.msra.mxu0 0
        %1147 = vmatprep.subr.bf16.mxu0 0
        %1148 = vmatpush1.bf16.msra.mxu0 0
        %1149 = vmatprep.subr.bf16.mxu0 0
        %1150 = vmatpush1.bf16.msra.mxu0 0
        %1151 = vmatprep.subr.bf16.mxu0 0
        %1152 = vmatpush1.bf16.msra.mxu0 0
        %1153 = vmatprep.subr.bf16.mxu0 0
        %1154 = vmatpush1.bf16.msra.mxu0 0
        %1155 = vmatprep.subr.bf16.mxu0 0
        %1156 = vmatpush1.bf16.msra.mxu0 0
        %1157 = vmatprep.subr.bf16.mxu0 0
        %1158 = vmatpush1.bf16.msra.mxu0 0
        %1159 = vmatprep.subr.bf16.mxu0 0
        %1160 = vmatpush1.bf16.msra.mxu0 0
        %1161 = vmatprep.subr.bf16.mxu0 0
        %1162 = vmatpush1.bf16.msra.mxu0 0
        %1163 = vmatprep.mubr.bf16.mxu0 0
        %1164 = vmatmul.mubr.bf16.gmra.mrb[0].mxu0 %v1126
        %v1165 = vpop.f32.mrb[0].mxu0
        %v1166 = vadd.f32 0.0, %v1165
        %v1167 = vpop.f32.mrb[0].mxu0
        %v1168 = vpop.f32.mrb[0].mxu0
        %v1169 = vadd.f32 0.0, %v1168
        %v1170 = vpop.f32.mrb[0].mxu0
        %1171 = vdwg.mxu0
        %v1172 = vadd.f32 %v1106, %v1166
        %v1173 = vadd.f32 %v1107, %v1169
        %s1174 = scalar_lea.vmem [#allocation2], 6
        %v1175 = vld [vmem:[%s1174] ss:$4 sm:$0xff]
        %s1176 = scalar_lea.vmem [#allocation2], 38
        %v1177 = vld [vmem:[%s1176] ss:$4 sm:$0x3f]
        %v1178 = vpack.c.bf16 %v1177, %v1175
        %v1179 = vld [vmem:[%s3 + $0x48] sm:$0xf]
        %v1180 = vld [vmem:[%s3 + $0x4c] sm:$0xf]
        %v1181 = vld [vmem:[%s3 + $0x50] sm:$0xf]
        %v1185 = vunpack.c.l.b16 %v1179
        %v1186 = vunpack.c.l.b16 %v1180
        %v1187 = vunpack.c.l.b16 %v1181
        %v1188 = vpack.c.b16 %v1186, %v1185
        %v1189 = vpack.c.b16 %v1187, %v1187
        %v1192 = vsel %vm772, %v1178, 0
        %v1195 = vsel %vm809, %v1189, 0
        %1197 = vmatprep.subr.bf16.mxu0 0
        %1198 = vmatpush1.bf16.msra.mxu0 %v1188
        %1199 = vmatprep.subr.bf16.mxu0 0
        %1200 = vmatpush1.bf16.msra.mxu0 %v1195
        %1201 = vmatprep.subr.bf16.mxu0 0
        %1202 = vmatpush1.bf16.msra.mxu0 0
        %1203 = vmatprep.subr.bf16.mxu0 0
        %1204 = vmatpush1.bf16.msra.mxu0 0
        %1205 = vmatprep.subr.bf16.mxu0 0
        %1206 = vmatpush1.bf16.msra.mxu0 0
        %1207 = vmatprep.subr.bf16.mxu0 0
        %1208 = vmatpush1.bf16.msra.mxu0 0
        %1209 = vmatprep.subr.bf16.mxu0 0
        %1210 = vmatpush1.bf16.msra.mxu0 0
        %1211 = vmatprep.subr.bf16.mxu0 0
        %1212 = vmatpush1.bf16.msra.mxu0 0
        %1213 = vmatprep.subr.bf16.mxu0 0
        %1214 = vmatpush1.bf16.msra.mxu0 0
        %1215 = vmatprep.subr.bf16.mxu0 0
        %1216 = vmatpush1.bf16.msra.mxu0 0
        %1217 = vmatprep.subr.bf16.mxu0 0
        %1218 = vmatpush1.bf16.msra.mxu0 0
        %1219 = vmatprep.subr.bf16.mxu0 0
        %1220 = vmatpush1.bf16.msra.mxu0 0
        %1221 = vmatprep.subr.bf16.mxu0 0
        %1222 = vmatpush1.bf16.msra.mxu0 0
        %1223 = vmatprep.subr.bf16.mxu0 0
        %1224 = vmatpush1.bf16.msra.mxu0 0
        %1225 = vmatprep.subr.bf16.mxu0 0
        %1226 = vmatpush1.bf16.msra.mxu0 0
        %1227 = vmatprep.subr.bf16.mxu0 0
        %1228 = vmatpush1.bf16.msra.mxu0 0
        %1229 = vmatprep.mubr.bf16.mxu0 0
        %1230 = vmatmul.mubr.bf16.gmra.mrb[0].mxu0 %v1192
        %v1231 = vpop.f32.mrb[0].mxu0
        %v1232 = vadd.f32 0.0, %v1231
        %v1233 = vpop.f32.mrb[0].mxu0
        %v1234 = vpop.f32.mrb[0].mxu0
        %v1235 = vadd.f32 0.0, %v1234
        %v1236 = vpop.f32.mrb[0].mxu0
        %1237 = vdwg.mxu0
        %v1238 = vadd.f32 %v1172, %v1232
        %v1239 = vadd.f32 %v1173, %v1235
        %s1240 = scalar_lea.vmem [#allocation2], 7
        %v1241 = vld [vmem:[%s1240] ss:$4 sm:$0xff]
        %s1242 = scalar_lea.vmem [#allocation2], 39
        %v1243 = vld [vmem:[%s1242] ss:$4 sm:$0x3f]
        %v1244 = vpack.c.bf16 %v1243, %v1241
        %v1245 = vld [vmem:[%s3 + $0x54] sm:$0xf]
        %v1246 = vld [vmem:[%s3 + $0x58] sm:$0xf]
        %v1247 = vld [vmem:[%s3 + $0x5c] sm:$0xf]
        %v1251 = vunpack.c.l.b16 %v1245
        %v1252 = vunpack.c.l.b16 %v1246
        %v1253 = vunpack.c.l.b16 %v1247
        %v1254 = vpack.c.b16 %v1252, %v1251
        %v1255 = vpack.c.b16 %v1253, %v1253
        %v1258 = vsel %vm772, %v1244, 0
        %v1261 = vsel %vm809, %v1255, 0
        %1263 = vmatprep.subr.bf16.mxu0 0
        %1264 = vmatpush1.bf16.msra.mxu0 %v1254
        %1265 = vmatprep.subr.bf16.mxu0 0
        %1266 = vmatpush1.bf16.msra.mxu0 %v1261
        %1267 = vmatprep.subr.bf16.mxu0 0
        %1268 = vmatpush1.bf16.msra.mxu0 0
        %1269 = vmatprep.subr.bf16.mxu0 0
        %1270 = vmatpush1.bf16.msra.mxu0 0
        %1271 = vmatprep.subr.bf16.mxu0 0
        %1272 = vmatpush1.bf16.msra.mxu0 0
        %1273 = vmatprep.subr.bf16.mxu0 0
        %1274 = vmatpush1.bf16.msra.mxu0 0
        %1275 = vmatprep.subr.bf16.mxu0 0
        %1276 = vmatpush1.bf16.msra.mxu0 0
        %1277 = vmatprep.subr.bf16.mxu0 0
        %1278 = vmatpush1.bf16.msra.mxu0 0
        %1279 = vmatprep.subr.bf16.mxu0 0
        %1280 = vmatpush1.bf16.msra.mxu0 0
        %1281 = vmatprep.subr.bf16.mxu0 0
        %1282 = vmatpush1.bf16.msra.mxu0 0
        %1283 = vmatprep.subr.bf16.mxu0 0
        %1284 = vmatpush1.bf16.msra.mxu0 0
        %1285 = vmatprep.subr.bf16.mxu0 0
        %1286 = vmatpush1.bf16.msra.mxu0 0
        %1287 = vmatprep.subr.bf16.mxu0 0
        %1288 = vmatpush1.bf16.msra.mxu0 0
        %1289 = vmatprep.subr.bf16.mxu0 0
        %1290 = vmatpush1.bf16.msra.mxu0 0
        %1291 = vmatprep.subr.bf16.mxu0 0
        %1292 = vmatpush1.bf16.msra.mxu0 0
        %1293 = vmatprep.subr.bf16.mxu0 0
        %1294 = vmatpush1.bf16.msra.mxu0 0
        %1295 = vmatprep.mubr.bf16.mxu0 0
        %1296 = vmatmul.mubr.bf16.gmra.mrb[0].mxu0 %v1258
        %v1297 = vpop.f32.mrb[0].mxu0
        %v1298 = vadd.f32 0.0, %v1297
        %v1299 = vpop.f32.mrb[0].mxu0
        %v1300 = vpop.f32.mrb[0].mxu0
        %v1301 = vadd.f32 0.0, %v1300
        %v1302 = vpop.f32.mrb[0].mxu0
        %1303 = vdwg.mxu0
        %v1304 = vadd.f32 %v1238, %v1298
        %v1305 = vadd.f32 %v1239, %v1301
        %v1306 = vld [vmem:[%s4] sm:$0x1]
        %v1308 = vlaneseq
        %v1309 = vshrl.u32 %v1308, 7
        %v1310 = vsub.s32 0, %v1309
        %v1311 = vrot.slane %v1306, %v1310
        %v1313 = vadd.f32 %v1304, %v1311
        %v1314 = vadd.f32 %v1305, %v1311
        %v1315 = vmax.f32 %v1313, 0.0
        %v1316 = vmax.f32 %v1314, 0.0
        %vm1317 = vcmask 293888
        %1318 = vst.msk [vmem:[#allocation3] sm:$0xff] %vm1317, %v1315
        %vm1319 = vcmask 291840
        %1320 = vst.msk [vmem:[#allocation3 + $0x8] sm:$0x3f] %vm1319, %v1316
        %v1321 = vld [vmem:[#allocation3] ss:$2 sm:$0x3f]
        %v1322 = vpack.c.bf16 %v1321, %v1321
        %v1323 = vld [vmem:[%s5] sm:$0xf]
        %v1324 = vld [vmem:[%s5 + $0x4] sm:$0xf]
        %v1325 = vld [vmem:[%s5 + $0x8] sm:$0xf]
        %v1326 = vld [vmem:[%s5 + $0xc] sm:$0xf]
        %v1327 = vld [vmem:[%s5 + $0x10] sm:$0x3]
        %s1328 = scalar_lea.vmem [#allocation3], 1
        %v1329 = vld [vmem:[%s1328] ss:$2 sm:$0x3f]
        %v1330 = vpack.c.bf16 %v1329, %v1329
        %v1331 = vld [vmem:[%s5 + $0x10] sm:$0xc]
        %v1332 = vld [vmem:[%s5 + $0x14] sm:$0xf]
        %v1333 = vld [vmem:[%s5 + $0x18] sm:$0xf]
        %v1334 = vld [vmem:[%s5 + $0x1c] sm:$0xf]
        %v1335 = vld [vmem:[%s5 + $0x20] sm:$0xf]
        %v1341 = vunpack.c.l.b16 %v1331
        %v1342 = vunpack.c.l.b16 %v1332
        %v1343 = vunpack.c.l.b16 %v1333
        %v1344 = vunpack.c.l.b16 %v1334
        %v1345 = vunpack.c.l.b16 %v1335
        %v1346 = vpack.c.b16 %v1342, %v1341
        %v1347 = vpack.c.b16 %v1344, %v1343
        %v1348 = vpack.c.b16 %v1345, %v1345
        %vm1349 = vcmask 1045504
        %v1350 = vrot.slane %v1346, 2
        %v1351 = vrot.slane %v1347, 2
        %v1352 = vsel %vm1349, %v1350, %v1351
        %v1353 = vrot.slane %v1348, 2
        %v1354 = vsel %vm1349, %v1351, %v1353
        %v1358 = vsel %vm1317, %v1330, 0
        %vm1360 = vcmask 1041408
        %v1362 = vsel %vm1360, %v1353, 0
        %1364 = vmatprep.subr.bf16.mxu0 0
        %1365 = vmatpush1.bf16.msra.mxu0 %v1352
        %1366 = vmatprep.subr.bf16.mxu0 0
        %1367 = vmatpush1.bf16.msra.mxu0 %v1354
        %1368 = vmatprep.subr.bf16.mxu0 0
        %1369 = vmatpush1.bf16.msra.mxu0 %v1362
        %1370 = vmatprep.subr.bf16.mxu0 0
        %1371 = vmatpush1.bf16.msra.mxu0 0
        %1372 = vmatprep.subr.bf16.mxu0 0
        %1373 = vmatpush1.bf16.msra.mxu0 0
        %1374 = vmatprep.subr.bf16.mxu0 0
        %1375 = vmatpush1.bf16.msra.mxu0 0
        %1376 = vmatprep.subr.bf16.mxu0 0
        %1377 = vmatpush1.bf16.msra.mxu0 0
        %1378 = vmatprep.subr.bf16.mxu0 0
        %1379 = vmatpush1.bf16.msra.mxu0 0
        %1380 = vmatprep.subr.bf16.mxu0 0
        %1381 = vmatpush1.bf16.msra.mxu0 0
        %1382 = vmatprep.subr.bf16.mxu0 0
        %1383 = vmatpush1.bf16.msra.mxu0 0
        %1384 = vmatprep.subr.bf16.mxu0 0
        %1385 = vmatpush1.bf16.msra.mxu0 0
        %1386 = vmatprep.subr.bf16.mxu0 0
        %1387 = vmatpush1.bf16.msra.mxu0 0
        %1388 = vmatprep.subr.bf16.mxu0 0
        %1389 = vmatpush1.bf16.msra.mxu0 0
        %1390 = vmatprep.subr.bf16.mxu0 0
        %1391 = vmatpush1.bf16.msra.mxu0 0
        %1392 = vmatprep.subr.bf16.mxu0 0
        %1393 = vmatpush1.bf16.msra.mxu0 0
        %1394 = vmatprep.subr.bf16.mxu0 0
        %1395 = vmatpush1.bf16.msra.mxu0 0
        %1396 = vmatprep.mubr.bf16.mxu0 0
        %1397 = vmatmul.mubr.bf16.gmra.mrb[0].mxu0 %v1358
        %v1398 = vpop.f32.mrb[0].mxu0
        %v1399 = vadd.f32 0.0, %v1398
        %v1400 = vpop.f32.mrb[0].mxu0
        %v1401 = vpop.f32.mrb[0].mxu0
        %v1402 = vpop.f32.mrb[0].mxu0
        %1403 = vdwg.mxu0
        %v1409 = vunpack.c.l.b16 %v1323
        %v1410 = vunpack.c.l.b16 %v1324
        %v1411 = vunpack.c.l.b16 %v1325
        %v1412 = vunpack.c.l.b16 %v1326
        %v1413 = vunpack.c.l.b16 %v1327
        %v1414 = vpack.c.b16 %v1410, %v1409
        %v1415 = vpack.c.b16 %v1412, %v1411
        %v1416 = vpack.c.b16 %v1413, %v1413
        %v1420 = vsel %vm1317, %v1322, 0
        %v1423 = vsel %vm1360, %v1416, 0
        %1425 = vmatprep.subr.bf16.mxu0 0
        %1426 = vmatpush1.bf16.msra.mxu0 %v1414
        %1427 = vmatprep.subr.bf16.mxu0 0
        %1428 = vmatpush1.bf16.msra.mxu0 %v1415
        %1429 = vmatprep.subr.bf16.mxu0 0
        %1430 = vmatpush1.bf16.msra.mxu0 %v1423
        %1431 = vmatprep.subr.bf16.mxu0 0
        %1432 = vmatpush1.bf16.msra.mxu0 0
        %1433 = vmatprep.subr.bf16.mxu0 0
        %1434 = vmatpush1.bf16.msra.mxu0 0
        %1435 = vmatprep.subr.bf16.mxu0 0
        %1436 = vmatpush1.bf16.msra.mxu0 0
        %1437 = vmatprep.subr.bf16.mxu0 0
        %1438 = vmatpush1.bf16.msra.mxu0 0
        %1439 = vmatprep.subr.bf16.mxu0 0
        %1440 = vmatpush1.bf16.msra.mxu0 0
        %1441 = vmatprep.subr.bf16.mxu0 0
        %1442 = vmatpush1.bf16.msra.mxu0 0
        %1443 = vmatprep.subr.bf16.mxu0 0
        %1444 = vmatpush1.bf16.msra.mxu0 0
        %1445 = vmatprep.subr.bf16.mxu0 0
        %1446 = vmatpush1.bf16.msra.mxu0 0
        %1447 = vmatprep.subr.bf16.mxu0 0
        %1448 = vmatpush1.bf16.msra.mxu0 0
        %1449 = vmatprep.subr.bf16.mxu0 0
        %1450 = vmatpush1.bf16.msra.mxu0 0
        %1451 = vmatprep.subr.bf16.mxu0 0
        %1452 = vmatpush1.bf16.msra.mxu0 0
        %1453 = vmatprep.subr.bf16.mxu0 0
        %1454 = vmatpush1.bf16.msra.mxu0 0
        %1455 = vmatprep.subr.bf16.mxu0 0
        %1456 = vmatpush1.bf16.msra.mxu0 0
        %1457 = vmatprep.mubr.bf16.mxu0 0
        %1458 = vmatmul.mubr.bf16.gmra.mrb[0].mxu0 %v1420
        %v1459 = vpop.f32.mrb[0].mxu0
        %v1460 = vadd.f32 %v1399, %v1459
        %v1461 = vpop.f32.mrb[0].mxu0
        %v1462 = vpop.f32.mrb[0].mxu0
        %v1463 = vpop.f32.mrb[0].mxu0
        %1464 = vdwg.mxu0
        %s1465 = scalar_lea.vmem [#allocation3], 2
        %v1466 = vld [vmem:[%s1465] ss:$2 sm:$0x3f]
        %v1467 = vpack.c.bf16 %v1466, %v1466
        %v1468 = vld [vmem:[%s5 + $0x24] sm:$0xf]
        %v1469 = vld [vmem:[%s5 + $0x28] sm:$0xf]
        %v1470 = vld [vmem:[%s5 + $0x2c] sm:$0xf]
        %v1471 = vld [vmem:[%s5 + $0x30] sm:$0xf]
        %v1472 = vld [vmem:[%s5 + $0x34] sm:$0x3]
        %v1478 = vunpack.c.l.b16 %v1468
        %v1479 = vunpack.c.l.b16 %v1469
        %v1480 = vunpack.c.l.b16 %v1470
        %v1481 = vunpack.c.l.b16 %v1471
        %v1482 = vunpack.c.l.b16 %v1472
        %v1483 = vpack.c.b16 %v1479, %v1478
        %v1484 = vpack.c.b16 %v1481, %v1480
        %v1485 = vpack.c.b16 %v1482, %v1482
        %v1489 = vsel %vm1317, %v1467, 0
        %v1492 = vsel %vm1360, %v1485, 0
        %1494 = vmatprep.subr.bf16.mxu0 0
        %1495 = vmatpush1.bf16.msra.mxu0 %v1483
        %1496 = vmatprep.subr.bf16.mxu0 0
        %1497 = vmatpush1.bf16.msra.mxu0 %v1484
        %1498 = vmatprep.subr.bf16.mxu0 0
        %1499 = vmatpush1.bf16.msra.mxu0 %v1492
        %1500 = vmatprep.subr.bf16.mxu0 0
        %1501 = vmatpush1.bf16.msra.mxu0 0
        %1502 = vmatprep.subr.bf16.mxu0 0
        %1503 = vmatpush1.bf16.msra.mxu0 0
        %1504 = vmatprep.subr.bf16.mxu0 0
        %1505 = vmatpush1.bf16.msra.mxu0 0
        %1506 = vmatprep.subr.bf16.mxu0 0
        %1507 = vmatpush1.bf16.msra.mxu0 0
        %1508 = vmatprep.subr.bf16.mxu0 0
        %1509 = vmatpush1.bf16.msra.mxu0 0
        %1510 = vmatprep.subr.bf16.mxu0 0
        %1511 = vmatpush1.bf16.msra.mxu0 0
        %1512 = vmatprep.subr.bf16.mxu0 0
        %1513 = vmatpush1.bf16.msra.mxu0 0
        %1514 = vmatprep.subr.bf16.mxu0 0
        %1515 = vmatpush1.bf16.msra.mxu0 0
        %1516 = vmatprep.subr.bf16.mxu0 0
        %1517 = vmatpush1.bf16.msra.mxu0 0
        %1518 = vmatprep.subr.bf16.mxu0 0
        %1519 = vmatpush1.bf16.msra.mxu0 0
        %1520 = vmatprep.subr.bf16.mxu0 0
        %1521 = vmatpush1.bf16.msra.mxu0 0
        %1522 = vmatprep.subr.bf16.mxu0 0
        %1523 = vmatpush1.bf16.msra.mxu0 0
        %1524 = vmatprep.subr.bf16.mxu0 0
        %1525 = vmatpush1.bf16.msra.mxu0 0
        %1526 = vmatprep.mubr.bf16.mxu0 0
        %1527 = vmatmul.mubr.bf16.gmra.mrb[0].mxu0 %v1489
        %v1528 = vpop.f32.mrb[0].mxu0
        %v1529 = vadd.f32 0.0, %v1528
        %v1530 = vpop.f32.mrb[0].mxu0
        %v1531 = vpop.f32.mrb[0].mxu0
        %v1532 = vpop.f32.mrb[0].mxu0
        %1533 = vdwg.mxu0
        %v1534 = vadd.f32 %v1460, %v1529
        %s1535 = scalar_lea.vmem [#allocation3], 3
        %v1536 = vld [vmem:[%s1535] ss:$2 sm:$0x3f]
        %v1537 = vpack.c.bf16 %v1536, %v1536
        %v1538 = vld [vmem:[%s5 + $0x34] sm:$0xc]
        %v1539 = vld [vmem:[%s5 + $0x38] sm:$0xf]
        %v1540 = vld [vmem:[%s5 + $0x3c] sm:$0xf]
        %v1541 = vld [vmem:[%s5 + $0x40] sm:$0xf]
        %v1542 = vld [vmem:[%s5 + $0x44] sm:$0xf]
        %v1548 = vunpack.c.l.b16 %v1538
        %v1549 = vunpack.c.l.b16 %v1539
        %v1550 = vunpack.c.l.b16 %v1540
        %v1551 = vunpack.c.l.b16 %v1541
        %v1552 = vunpack.c.l.b16 %v1542
        %v1553 = vpack.c.b16 %v1549, %v1548
        %v1554 = vpack.c.b16 %v1551, %v1550
        %v1555 = vpack.c.b16 %v1552, %v1552
        %v1556 = vrot.slane %v1553, 2
        %v1557 = vrot.slane %v1554, 2
        %v1558 = vsel %vm1349, %v1556, %v1557
        %v1559 = vrot.slane %v1555, 2
        %v1560 = vsel %vm1349, %v1557, %v1559
        %v1564 = vsel %vm1317, %v1537, 0
        %v1567 = vsel %vm1360, %v1559, 0
        %1569 = vmatprep.subr.bf16.mxu0 0
        %1570 = vmatpush1.bf16.msra.mxu0 %v1558
        %1571 = vmatprep.subr.bf16.mxu0 0
        %1572 = vmatpush1.bf16.msra.mxu0 %v1560
        %1573 = vmatprep.subr.bf16.mxu0 0
        %1574 = vmatpush1.bf16.msra.mxu0 %v1567
        %1575 = vmatprep.subr.bf16.mxu0 0
        %1576 = vmatpush1.bf16.msra.mxu0 0
        %1577 = vmatprep.subr.bf16.mxu0 0
        %1578 = vmatpush1.bf16.msra.mxu0 0
        %1579 = vmatprep.subr.bf16.mxu0 0
        %1580 = vmatpush1.bf16.msra.mxu0 0
        %1581 = vmatprep.subr.bf16.mxu0 0
        %1582 = vmatpush1.bf16.msra.mxu0 0
        %1583 = vmatprep.subr.bf16.mxu0 0
        %1584 = vmatpush1.bf16.msra.mxu0 0
        %1585 = vmatprep.subr.bf16.mxu0 0
        %1586 = vmatpush1.bf16.msra.mxu0 0
        %1587 = vmatprep.subr.bf16.mxu0 0
        %1588 = vmatpush1.bf16.msra.mxu0 0
        %1589 = vmatprep.subr.bf16.mxu0 0
        %1590 = vmatpush1.bf16.msra.mxu0 0
        %1591 = vmatprep.subr.bf16.mxu0 0
        %1592 = vmatpush1.bf16.msra.mxu0 0
        %1593 = vmatprep.subr.bf16.mxu0 0
        %1594 = vmatpush1.bf16.msra.mxu0 0
        %1595 = vmatprep.subr.bf16.mxu0 0
        %1596 = vmatpush1.bf16.msra.mxu0 0
        %1597 = vmatprep.subr.bf16.mxu0 0
        %1598 = vmatpush1.bf16.msra.mxu0 0
        %1599 = vmatprep.subr.bf16.mxu0 0
        %1600 = vmatpush1.bf16.msra.mxu0 0
        %1601 = vmatprep.mubr.bf16.mxu0 0
        %1602 = vmatmul.mubr.bf16.gmra.mrb[0].mxu0 %v1564
        %v1603 = vpop.f32.mrb[0].mxu0
        %v1604 = vadd.f32 0.0, %v1603
        %v1605 = vpop.f32.mrb[0].mxu0
        %v1606 = vpop.f32.mrb[0].mxu0
        %v1607 = vpop.f32.mrb[0].mxu0
        %1608 = vdwg.mxu0
        %v1609 = vadd.f32 %v1534, %v1604
        %v1610 = vld [vmem:[%s6] sm:$0x1]
        %v1612 = vlaneseq
        %v1613 = vshrl.u32 %v1612, 7
        %v1614 = vsub.s32 0, %v1613
        %v1615 = vrot.slane %v1610, %v1614
        %v1617 = vadd.f32 %v1609, %v1615
        %v1618 = vmax.f32 %v1617, 0.0
        %v1620 = vrot.slane %v1618, 5
        %v1622 = vrot.slane %v1618, 3
        %v1624 = vrot.slane %v1618, 1
        %v1626 = vrot.slane %v1618, 7
        %vm1628 = vcmask 1040384
        %v1629 = vsel %vm1628, %v1620, %v1622
        %v1630 = vsel %vm1360, %v1629, %v1624
        %vm1631 = vcmask 1042432
        %v1632 = vsel %vm1631, %v1630, %v1626
        %v1633 = vsel %vm809, %v1632, %v1620
        %vm1634 = vcmask 1044480
        %v1635 = vsel %vm1634, %v1633, %v1622
        %1637 = vrot.lane.b32.xlu0 %v1635, 48
        %v1638 = vpop.permute.xlu0 %1637
        %vm1640 = vcmask 392192
        %v1641 = vsel %vm1640, %v1618, %v1638
        %v1642 = vpack.c.bf16 %v1641, %v1641
        %v1643 = vld [vmem:[%s7] sm:$0xff]
        %v1644 = vld [vmem:[%s7 + $0x8] sm:$0xff]
        %v1645 = vld [vmem:[%s7 + $0x10] sm:$0xff]
        %v1646 = vld [vmem:[%s7 + $0x18] sm:$0xff]
        %v1647 = vld [vmem:[%s7 + $0x20] sm:$0xff]
        %v1648 = vld [vmem:[%s7 + $0x28] sm:$0xff]
        %v1649 = vld [vmem:[%s7 + $0x30] sm:$0xff]
        %v1650 = vld [vmem:[%s7 + $0x38] sm:$0xff]
        %v1651 = vld [vmem:[%s7 + $0x40] sm:$0xff]
        %v1652 = vld [vmem:[%s7 + $0x48] sm:$0xff]
        %v1653 = vld [vmem:[%s7 + $0x50] sm:$0xff]
        %v1654 = vld [vmem:[%s7 + $0x58] sm:$0xff]
        %v1655 = vld [vmem:[%s7 + $0x60] sm:$0xff]
        %v1656 = vld [vmem:[%s7 + $0x68] sm:$0xff]
        %v1657 = vld [vmem:[%s7 + $0x70] sm:$0xff]
        %v1658 = vld [vmem:[%s7 + $0x78] sm:$0xff]
        %v1659 = vld [vmem:[%s7 + $0x80] sm:$0xff]
        %v1660 = vld [vmem:[%s7 + $0x88] sm:$0xff]
        %v1661 = vld [vmem:[%s7 + $0x90] sm:$0xff]
        %v1662 = vld [vmem:[%s7 + $0x98] sm:$0xff]
        %v1663 = vld [vmem:[%s7 + $0xa0] sm:$0xff]
        %v1664 = vld [vmem:[%s7 + $0xa8] sm:$0xff]
        %v1665 = vld [vmem:[%s7 + $0xb0] sm:$0xff]
        %v1666 = vld [vmem:[%s7 + $0xb8] sm:$0xff]
        %v1667 = vld [vmem:[%s8] sm:$0xf]
        %v1669 = vlaneseq
        %v1670 = vshrl.u32 %v1669, 7
        %v1671 = vsub.s32 0, %v1670
        %v1672 = vrot.slane %v1667, %v1671
        %v1673 = vlaneseq
        %v1674 = vshrl.u32 %v1673, 7
        %v1675 = vsub.s32 1, %v1674
        %v1676 = vrot.slane %v1667, %v1675
        %v1677 = vlaneseq
        %v1678 = vshrl.u32 %v1677, 7
        %v1679 = vsub.s32 2, %v1678
        %v1680 = vrot.slane %v1667, %v1679
        %v1681 = vlaneseq
        %v1682 = vshrl.u32 %v1681, 7
        %v1683 = vsub.s32 3, %v1682
        %v1684 = vrot.slane %v1667, %v1683
        %v1713 = vunpack.c.l.b16 %v1643
        %v1714 = vunpack.c.h.b16 %v1643
        %v1715 = vunpack.c.l.b16 %v1644
        %v1716 = vunpack.c.h.b16 %v1644
        %v1717 = vunpack.c.l.b16 %v1645
        %v1718 = vunpack.c.h.b16 %v1645
        %v1719 = vunpack.c.l.b16 %v1646
        %v1720 = vunpack.c.h.b16 %v1646
        %v1721 = vunpack.c.l.b16 %v1647
        %v1722 = vunpack.c.h.b16 %v1647
        %v1723 = vunpack.c.l.b16 %v1648
        %v1724 = vunpack.c.h.b16 %v1648
        %v1725 = vunpack.c.l.b16 %v1649
        %v1726 = vunpack.c.h.b16 %v1649
        %v1727 = vunpack.c.l.b16 %v1650
        %v1728 = vunpack.c.h.b16 %v1650
        %v1729 = vunpack.c.l.b16 %v1651
        %v1730 = vunpack.c.h.b16 %v1651
        %v1731 = vunpack.c.l.b16 %v1652
        %v1732 = vunpack.c.h.b16 %v1652
        %v1733 = vunpack.c.l.b16 %v1653
        %v1734 = vunpack.c.h.b16 %v1653
        %v1735 = vunpack.c.l.b16 %v1654
        %v1736 = vunpack.c.h.b16 %v1654
        %v1737 = vunpack.c.l.b16 %v1655
        %v1738 = vunpack.c.h.b16 %v1655
        %v1739 = vunpack.c.l.b16 %v1656
        %v1740 = vunpack.c.h.b16 %v1656
        %v1741 = vunpack.c.l.b16 %v1657
        %v1742 = vunpack.c.h.b16 %v1657
        %v1743 = vunpack.c.l.b16 %v1658
        %v1744 = vunpack.c.h.b16 %v1658
        %v1745 = vunpack.c.l.b16 %v1659
        %v1746 = vunpack.c.h.b16 %v1659
        %v1747 = vunpack.c.l.b16 %v1660
        %v1748 = vunpack.c.h.b16 %v1660
        %v1749 = vunpack.c.l.b16 %v1661
        %v1750 = vunpack.c.h.b16 %v1661
        %v1751 = vunpack.c.l.b16 %v1662
        %v1752 = vunpack.c.h.b16 %v1662
        %v1753 = vunpack.c.l.b16 %v1663
        %v1754 = vunpack.c.h.b16 %v1663
        %v1755 = vunpack.c.l.b16 %v1664
        %v1756 = vunpack.c.h.b16 %v1664
        %v1757 = vunpack.c.l.b16 %v1665
        %v1758 = vunpack.c.h.b16 %v1665
        %v1759 = vunpack.c.l.b16 %v1666
        %v1760 = vunpack.c.h.b16 %v1666
        %v1761 = vpack.c.b16 %v1717, %v1713
        %v1762 = vpack.c.b16 %v1718, %v1714
        %v1763 = vpack.c.b16 %v1719, %v1715
        %v1764 = vpack.c.b16 %v1720, %v1716
        %v1765 = vpack.c.b16 %v1725, %v1721
        %v1766 = vpack.c.b16 %v1726, %v1722
        %v1767 = vpack.c.b16 %v1727, %v1723
        %v1768 = vpack.c.b16 %v1728, %v1724
        %v1769 = vpack.c.b16 %v1733, %v1729
        %v1770 = vpack.c.b16 %v1734, %v1730
        %v1771 = vpack.c.b16 %v1735, %v1731
        %v1772 = vpack.c.b16 %v1736, %v1732
        %v1773 = vpack.c.b16 %v1741, %v1737
        %v1774 = vpack.c.b16 %v1742, %v1738
        %v1775 = vpack.c.b16 %v1743, %v1739
        %v1776 = vpack.c.b16 %v1744, %v1740
        %v1777 = vpack.c.b16 %v1749, %v1745
        %v1778 = vpack.c.b16 %v1750, %v1746
        %v1779 = vpack.c.b16 %v1751, %v1747
        %v1780 = vpack.c.b16 %v1752, %v1748
        %v1781 = vpack.c.b16 %v1757, %v1753
        %v1782 = vpack.c.b16 %v1758, %v1754
        %v1783 = vpack.c.b16 %v1759, %v1755
        %v1784 = vpack.c.b16 %v1760, %v1756
        %vm1809 = vcmask 785408
        %v1811 = vsel %vm1809, %v1642, 0
        %1813 = vmatprep.subr.bf16.mxu0 %v1762
        %1814 = vmatpush1.bf16.msra.mxu0 %v1761
        %1815 = vmatprep.subr.bf16.mxu0 %v1766
        %1816 = vmatpush1.bf16.msra.mxu0 %v1765
        %1817 = vmatprep.subr.bf16.mxu0 %v1770
        %1818 = vmatpush1.bf16.msra.mxu0 %v1769
        %1819 = vmatprep.subr.bf16.mxu0 %v1774
        %1820 = vmatpush1.bf16.msra.mxu0 %v1773
        %1821 = vmatprep.subr.bf16.mxu0 %v1778
        %1822 = vmatpush1.bf16.msra.mxu0 %v1777
        %1823 = vmatprep.subr.bf16.mxu0 %v1782
        %1824 = vmatpush1.bf16.msra.mxu0 %v1781
        %1825 = vmatprep.subr.bf16.mxu0 0
        %1826 = vmatpush1.bf16.msra.mxu0 0
        %1827 = vmatprep.subr.bf16.mxu0 0
        %1828 = vmatpush1.bf16.msra.mxu0 0
        %1829 = vmatprep.subr.bf16.mxu0 0
        %1830 = vmatpush1.bf16.msra.mxu0 0
        %1831 = vmatprep.subr.bf16.mxu0 0
        %1832 = vmatpush1.bf16.msra.mxu0 0
        %1833 = vmatprep.subr.bf16.mxu0 0
        %1834 = vmatpush1.bf16.msra.mxu0 0
        %1835 = vmatprep.subr.bf16.mxu0 0
        %1836 = vmatpush1.bf16.msra.mxu0 0
        %1837 = vmatprep.subr.bf16.mxu0 0
        %1838 = vmatpush1.bf16.msra.mxu0 0
        %1839 = vmatprep.subr.bf16.mxu0 0
        %1840 = vmatpush1.bf16.msra.mxu0 0
        %1841 = vmatprep.subr.bf16.mxu0 0
        %1842 = vmatpush1.bf16.msra.mxu0 0
        %1843 = vmatprep.subr.bf16.mxu0 0
        %1844 = vmatpush1.bf16.msra.mxu0 0
        %1845 = vmatprep.mubr.bf16.mxu0 0
        %1846 = vmatmul.mubr.bf16.gmra.mrb[0].mxu0 %v1811
        %v1847 = vpop.f32.mrb[0].mxu0
        %v1848 = vadd.f32 %v1672, %v1847
        %v1849 = vpop.f32.mrb[0].mxu0
        %v1850 = vadd.f32 %v1676, %v1849
        %v1851 = vpop.f32.mrb[0].mxu0
        %v1852 = vpop.f32.mrb[0].mxu0
        %1853 = vdwg.mxu0
        %1854 = vmatprep.subr.bf16.mxu0 %v1764
        %1855 = vmatpush1.bf16.msra.mxu0 %v1763
        %1856 = vmatprep.subr.bf16.mxu0 %v1768
        %1857 = vmatpush1.bf16.msra.mxu0 %v1767
        %1858 = vmatprep.subr.bf16.mxu0 %v1772
        %1859 = vmatpush1.bf16.msra.mxu0 %v1771
        %1860 = vmatprep.subr.bf16.mxu0 %v1776
        %1861 = vmatpush1.bf16.msra.mxu0 %v1775
        %1862 = vmatprep.subr.bf16.mxu0 %v1780
        %1863 = vmatpush1.bf16.msra.mxu0 %v1779
        %1864 = vmatprep.subr.bf16.mxu0 %v1784
        %1865 = vmatpush1.bf16.msra.mxu0 %v1783
        %1866 = vmatprep.subr.bf16.mxu0 0
        %1867 = vmatpush1.bf16.msra.mxu0 0
        %1868 = vmatprep.subr.bf16.mxu0 0
        %1869 = vmatpush1.bf16.msra.mxu0 0
        %1870 = vmatprep.subr.bf16.mxu0 0
        %1871 = vmatpush1.bf16.msra.mxu0 0
        %1872 = vmatprep.subr.bf16.mxu0 0
        %1873 = vmatpush1.bf16.msra.mxu0 0
        %1874 = vmatprep.subr.bf16.mxu0 0
        %1875 = vmatpush1.bf16.msra.mxu0 0
        %1876 = vmatprep.subr.bf16.mxu0 0
        %1877 = vmatpush1.bf16.msra.mxu0 0
        %1878 = vmatprep.subr.bf16.mxu0 0
        %1879 = vmatpush1.bf16.msra.mxu0 0
        %1880 = vmatprep.subr.bf16.mxu0 0
        %1881 = vmatpush1.bf16.msra.mxu0 0
        %1882 = vmatprep.subr.bf16.mxu0 0
        %1883 = vmatpush1.bf16.msra.mxu0 0
        %1884 = vmatprep.subr.bf16.mxu0 0
        %1885 = vmatpush1.bf16.msra.mxu0 0
        %1886 = vmatprep.mubr.bf16.mxu0 0
        %1887 = vmatmul.mubr.bf16.gmra.mrb[0].mxu0 %v1811
        %v1888 = vpop.f32.mrb[0].mxu0
        %v1889 = vadd.f32 %v1680, %v1888
        %v1890 = vpop.f32.mrb[0].mxu0
        %v1891 = vadd.f32 %v1684, %v1890
        %v1892 = vpop.f32.mrb[0].mxu0
        %v1893 = vpop.f32.mrb[0].mxu0
        %1894 = vdwg.mxu0
        %v1895 = vld [vmem:[%s9] sm:$0xff]
        %v1896 = vld [vmem:[%s9 + $0x8] sm:$0xff]
        %v1897 = vld [vmem:[%s9 + $0x10] sm:$0xff]
        %v1898 = vld [vmem:[%s9 + $0x18] sm:$0xff]
        %v1899 = vld [vmem:[%s9 + $0x20] sm:$0xff]
        %v1900 = vld [vmem:[%s9 + $0x28] sm:$0xff]
        %v1901 = vld [vmem:[%s9 + $0x30] sm:$0xff]
        %v1902 = vld [vmem:[%s9 + $0x38] sm:$0xff]
        %v1903 = vld [vmem:[%s9 + $0x40] sm:$0xff]
        %v1904 = vld [vmem:[%s9 + $0x48] sm:$0xff]
        %v1905 = vld [vmem:[%s9 + $0x50] sm:$0xff]
        %v1906 = vld [vmem:[%s9 + $0x58] sm:$0xff]
        %v1907 = vld [vmem:[%s9 + $0x60] sm:$0xff]
        %v1908 = vld [vmem:[%s9 + $0x68] sm:$0xff]
        %v1909 = vld [vmem:[%s9 + $0x70] sm:$0xff]
        %v1910 = vld [vmem:[%s9 + $0x78] sm:$0xff]
        %v1911 = vld [vmem:[%s9 + $0x80] sm:$0xff]
        %v1912 = vld [vmem:[%s9 + $0x88] sm:$0xff]
        %v1913 = vld [vmem:[%s9 + $0x90] sm:$0xff]
        %v1914 = vld [vmem:[%s9 + $0x98] sm:$0xff]
        %v1915 = vld [vmem:[%s9 + $0xa0] sm:$0xff]
        %v1916 = vld [vmem:[%s9 + $0xa8] sm:$0xff]
        %v1917 = vld [vmem:[%s9 + $0xb0] sm:$0xff]
        %v1918 = vld [vmem:[%s9 + $0xb8] sm:$0xff]
        %v1919 = vld [vmem:[%s9 + $0xc0] sm:$0xff]
        %v1920 = vld [vmem:[%s9 + $0xc8] sm:$0xff]
        %v1921 = vld [vmem:[%s9 + $0xd0] sm:$0xff]
        %v1922 = vld [vmem:[%s9 + $0xd8] sm:$0xff]
        %v1923 = vld [vmem:[%s9 + $0xe0] sm:$0xff]
        %v1924 = vld [vmem:[%s9 + $0xe8] sm:$0xff]
        %v1925 = vld [vmem:[%s9 + $0xf0] sm:$0xff]
        %v1926 = vld [vmem:[%s9 + $0xf8] sm:$0xff]
        %v1959 = vunpack.c.l.b16 %v1895
        %v1960 = vunpack.c.h.b16 %v1895
        %v1961 = vunpack.c.l.b16 %v1896
        %v1962 = vunpack.c.h.b16 %v1896
        %v1963 = vunpack.c.l.b16 %v1897
        %v1964 = vunpack.c.h.b16 %v1897
        %v1965 = vunpack.c.l.b16 %v1898
        %v1966 = vunpack.c.h.b16 %v1898
        %v1967 = vunpack.c.l.b16 %v1899
        %v1968 = vunpack.c.h.b16 %v1899
        %v1969 = vunpack.c.l.b16 %v1900
        %v1970 = vunpack.c.h.b16 %v1900
        %v1971 = vunpack.c.l.b16 %v1901
        %v1972 = vunpack.c.h.b16 %v1901
        %v1973 = vunpack.c.l.b16 %v1902
        %v1974 = vunpack.c.h.b16 %v1902
        %v1975 = vunpack.c.l.b16 %v1903
        %v1976 = vunpack.c.h.b16 %v1903
        %v1977 = vunpack.c.l.b16 %v1904
        %v1978 = vunpack.c.h.b16 %v1904
        %v1979 = vunpack.c.l.b16 %v1905
        %v1980 = vunpack.c.h.b16 %v1905
        %v1981 = vunpack.c.l.b16 %v1906
        %v1982 = vunpack.c.h.b16 %v1906
        %v1983 = vunpack.c.l.b16 %v1907
        %v1984 = vunpack.c.h.b16 %v1907
        %v1985 = vunpack.c.l.b16 %v1908
        %v1986 = vunpack.c.h.b16 %v1908
        %v1987 = vunpack.c.l.b16 %v1909
        %v1988 = vunpack.c.h.b16 %v1909
        %v1989 = vunpack.c.l.b16 %v1910
        %v1990 = vunpack.c.h.b16 %v1910
        %v1991 = vunpack.c.l.b16 %v1911
        %v1992 = vunpack.c.h.b16 %v1911
        %v1993 = vunpack.c.l.b16 %v1912
        %v1994 = vunpack.c.h.b16 %v1912
        %v1995 = vunpack.c.l.b16 %v1913
        %v1996 = vunpack.c.h.b16 %v1913
        %v1997 = vunpack.c.l.b16 %v1914
        %v1998 = vunpack.c.h.b16 %v1914
        %v1999 = vunpack.c.l.b16 %v1915
        %v2000 = vunpack.c.h.b16 %v1915
        %v2001 = vunpack.c.l.b16 %v1916
        %v2002 = vunpack.c.h.b16 %v1916
        %v2003 = vunpack.c.l.b16 %v1917
        %v2004 = vunpack.c.h.b16 %v1917
        %v2005 = vunpack.c.l.b16 %v1918
        %v2006 = vunpack.c.h.b16 %v1918
        %v2007 = vunpack.c.l.b16 %v1919
        %v2008 = vunpack.c.h.b16 %v1919
        %v2009 = vunpack.c.l.b16 %v1920
        %v2010 = vunpack.c.h.b16 %v1920
        %v2011 = vunpack.c.l.b16 %v1921
        %v2012 = vunpack.c.h.b16 %v1921
        %v2013 = vunpack.c.l.b16 %v1922
        %v2014 = vunpack.c.h.b16 %v1922
        %v2015 = vunpack.c.l.b16 %v1923
        %v2016 = vunpack.c.h.b16 %v1923
        %v2017 = vunpack.c.l.b16 %v1924
        %v2018 = vunpack.c.h.b16 %v1924
        %v2019 = vunpack.c.l.b16 %v1925
        %v2020 = vunpack.c.h.b16 %v1925
        %v2021 = vunpack.c.l.b16 %v1926
        %v2022 = vunpack.c.h.b16 %v1926
        %v2023 = vpack.c.b16 %v1963, %v1959
        %v2024 = vpack.c.b16 %v1964, %v1960
        %v2025 = vpack.c.b16 %v1965, %v1961
        %v2026 = vpack.c.b16 %v1966, %v1962
        %v2027 = vpack.c.b16 %v1971, %v1967
        %v2028 = vpack.c.b16 %v1972, %v1968
        %v2029 = vpack.c.b16 %v1973, %v1969
        %v2030 = vpack.c.b16 %v1974, %v1970
        %v2031 = vpack.c.b16 %v1979, %v1975
        %v2032 = vpack.c.b16 %v1980, %v1976
        %v2033 = vpack.c.b16 %v1981, %v1977
        %v2034 = vpack.c.b16 %v1982, %v1978
        %v2035 = vpack.c.b16 %v1987, %v1983
        %v2036 = vpack.c.b16 %v1988, %v1984
        %v2037 = vpack.c.b16 %v1989, %v1985
        %v2038 = vpack.c.b16 %v1990, %v1986
        %v2039 = vpack.c.b16 %v1995, %v1991
        %v2040 = vpack.c.b16 %v1996, %v1992
        %v2041 = vpack.c.b16 %v1997, %v1993
        %v2042 = vpack.c.b16 %v1998, %v1994
        %v2043 = vpack.c.b16 %v2003, %v1999
        %v2044 = vpack.c.b16 %v2004, %v2000
        %v2045 = vpack.c.b16 %v2005, %v2001
        %v2046 = vpack.c.b16 %v2006, %v2002
        %v2047 = vpack.c.b16 %v2011, %v2007
        %v2048 = vpack.c.b16 %v2012, %v2008
        %v2049 = vpack.c.b16 %v2013, %v2009
        %v2050 = vpack.c.b16 %v2014, %v2010
        %v2051 = vpack.c.b16 %v2019, %v2015
        %v2052 = vpack.c.b16 %v2020, %v2016
        %v2053 = vpack.c.b16 %v2021, %v2017
        %v2054 = vpack.c.b16 %v2022, %v2018
        %2087 = vmatprep.subr.bf16.mxu0 %v2024
        %2088 = vmatpush1.bf16.msra.mxu0 %v2023
        %2089 = vmatprep.subr.bf16.mxu0 %v2028
        %2090 = vmatpush1.bf16.msra.mxu0 %v2027
        %2091 = vmatprep.subr.bf16.mxu0 %v2032
        %2092 = vmatpush1.bf16.msra.mxu0 %v2031
        %2093 = vmatprep.subr.bf16.mxu0 %v2036
        %2094 = vmatpush1.bf16.msra.mxu0 %v2035
        %2095 = vmatprep.subr.bf16.mxu0 %v2040
        %2096 = vmatpush1.bf16.msra.mxu0 %v2039
        %2097 = vmatprep.subr.bf16.mxu0 %v2044
        %2098 = vmatpush1.bf16.msra.mxu0 %v2043
        %2099 = vmatprep.subr.bf16.mxu0 %v2048
        %2100 = vmatpush1.bf16.msra.mxu0 %v2047
        %2101 = vmatprep.subr.bf16.mxu0 %v2052
        %2102 = vmatpush1.bf16.msra.mxu0 %v2051
        %2103 = vmatprep.subr.bf16.mxu0 0
        %2104 = vmatpush1.bf16.msra.mxu0 0
        %2105 = vmatprep.subr.bf16.mxu0 0
        %2106 = vmatpush1.bf16.msra.mxu0 0
        %2107 = vmatprep.subr.bf16.mxu0 0
        %2108 = vmatpush1.bf16.msra.mxu0 0
        %2109 = vmatprep.subr.bf16.mxu0 0
        %2110 = vmatpush1.bf16.msra.mxu0 0
        %2111 = vmatprep.subr.bf16.mxu0 0
        %2112 = vmatpush1.bf16.msra.mxu0 0
        %2113 = vmatprep.subr.bf16.mxu0 0
        %2114 = vmatpush1.bf16.msra.mxu0 0
        %2115 = vmatprep.subr.bf16.mxu0 0
        %2116 = vmatpush1.bf16.msra.mxu0 0
        %2117 = vmatprep.subr.bf16.mxu0 0
        %2118 = vmatpush1.bf16.msra.mxu0 0
        %2119 = vmatprep.mubr.bf16.mxu0 0
        %2120 = vmatmul.mubr.bf16.gmra.mrb[0].mxu0 0
        %v2121 = vpop.f32.mrb[0].mxu0
        %v2122 = vadd.f32 0.0, %v2121
        %v2123 = vpop.f32.mrb[0].mxu0
        %v2124 = vadd.f32 0.0, %v2123
        %v2125 = vpop.f32.mrb[0].mxu0
        %v2126 = vpop.f32.mrb[0].mxu0
        %2127 = vdwg.mxu0
        %2128 = vmatprep.subr.bf16.mxu0 %v2026
        %2129 = vmatpush1.bf16.msra.mxu0 %v2025
        %2130 = vmatprep.subr.bf16.mxu0 %v2030
        %2131 = vmatpush1.bf16.msra.mxu0 %v2029
        %2132 = vmatprep.subr.bf16.mxu0 %v2034
        %2133 = vmatpush1.bf16.msra.mxu0 %v2033
        %2134 = vmatprep.subr.bf16.mxu0 %v2038
        %2135 = vmatpush1.bf16.msra.mxu0 %v2037
        %2136 = vmatprep.subr.bf16.mxu0 %v2042
        %2137 = vmatpush1.bf16.msra.mxu0 %v2041
        %2138 = vmatprep.subr.bf16.mxu0 %v2046
        %2139 = vmatpush1.bf16.msra.mxu0 %v2045
        %2140 = vmatprep.subr.bf16.mxu0 %v2050
        %2141 = vmatpush1.bf16.msra.mxu0 %v2049
        %2142 = vmatprep.subr.bf16.mxu0 %v2054
        %2143 = vmatpush1.bf16.msra.mxu0 %v2053
        %2144 = vmatprep.subr.bf16.mxu0 0
        %2145 = vmatpush1.bf16.msra.mxu0 0
        %2146 = vmatprep.subr.bf16.mxu0 0
        %2147 = vmatpush1.bf16.msra.mxu0 0
        %2148 = vmatprep.subr.bf16.mxu0 0
        %2149 = vmatpush1.bf16.msra.mxu0 0
        %2150 = vmatprep.subr.bf16.mxu0 0
        %2151 = vmatpush1.bf16.msra.mxu0 0
        %2152 = vmatprep.subr.bf16.mxu0 0
        %2153 = vmatpush1.bf16.msra.mxu0 0
        %2154 = vmatprep.subr.bf16.mxu0 0
        %2155 = vmatpush1.bf16.msra.mxu0 0
        %2156 = vmatprep.subr.bf16.mxu0 0
        %2157 = vmatpush1.bf16.msra.mxu0 0
        %2158 = vmatprep.subr.bf16.mxu0 0
        %2159 = vmatpush1.bf16.msra.mxu0 0
        %2160 = vmatprep.mubr.bf16.mxu0 0
        %2161 = vmatmul.mubr.bf16.gmra.mrb[0].mxu0 0
        %v2162 = vpop.f32.mrb[0].mxu0
        %v2163 = vadd.f32 0.0, %v2162
        %v2164 = vpop.f32.mrb[0].mxu0
        %v2165 = vadd.f32 0.0, %v2164
        %v2166 = vpop.f32.mrb[0].mxu0
        %v2167 = vpop.f32.mrb[0].mxu0
        %2168 = vdwg.mxu0
        %v2169 = vadd.f32 %v1848, %v2122
        %v2170 = vadd.f32 %v1850, %v2124
        %v2171 = vadd.f32 %v1889, %v2163
        %v2172 = vadd.f32 %v1891, %v2165
        %v2173 = vxor.u32 %v2169, 2147483648
        %v2174 = vmul.f32 %v2173, 1.442695
        %v2175 = vpow.pop %v2174
        %v2176 = vadd.f32 %v2175, 1.0
        %v2177 = vrcp.pop %v2176
        %v2178 = vmul.f32 1.0, %v2177
        %v2179 = vxor.u32 %v2170, 2147483648
        %v2180 = vmul.f32 %v2179, 1.442695
        %v2181 = vpow.pop %v2180
        %v2182 = vadd.f32 %v2181, 1.0
        %v2183 = vrcp.pop %v2182
        %v2184 = vmul.f32 1.0, %v2183
        %v2185 = vtanh.pop %v2171
        %v2186 = vxor.u32 %v2172, 2147483648
        %v2187 = vmul.f32 %v2186, 1.442695
        %v2188 = vpow.pop %v2187
        %v2189 = vadd.f32 %v2188, 1.0
        %v2190 = vrcp.pop %v2189
        %v2191 = vmul.f32 1.0, %v2190
        %v2192 = vmul.f32 %v2184, 0.0
        %v2193 = vmul.f32 %v2178, %v2185
        %v2194 = vadd.f32 %v2192, %v2193
        %v2195 = vtanh.pop %v2194
        %v2196 = vmul.f32 %v2191, %v2195
        %v2197 = vpack.c.bf16 %v2196, %v2196
        %2198 = vmatprep.subr.bf16.mxu0 %v2024
        %2199 = vmatpush1.bf16.msra.mxu0 %v2023
        %2200 = vmatprep.subr.bf16.mxu0 %v2028
        %2201 = vmatpush1.bf16.msra.mxu0 %v2027
        %2202 = vmatprep.subr.bf16.mxu0 %v2032
        %2203 = vmatpush1.bf16.msra.mxu0 %v2031
        %2204 = vmatprep.subr.bf16.mxu0 %v2036
        %2205 = vmatpush1.bf16.msra.mxu0 %v2035
        %2206 = vmatprep.subr.bf16.mxu0 %v2040
        %2207 = vmatpush1.bf16.msra.mxu0 %v2039
        %2208 = vmatprep.subr.bf16.mxu0 %v2044
        %2209 = vmatpush1.bf16.msra.mxu0 %v2043
        %2210 = vmatprep.subr.bf16.mxu0 %v2048
        %2211 = vmatpush1.bf16.msra.mxu0 %v2047
        %2212 = vmatprep.subr.bf16.mxu0 %v2052
        %2213 = vmatpush1.bf16.msra.mxu0 %v2051
        %2214 = vmatprep.subr.bf16.mxu0 0
        %2215 = vmatpush1.bf16.msra.mxu0 0
        %2216 = vmatprep.subr.bf16.mxu0 0
        %2217 = vmatpush1.bf16.msra.mxu0 0
        %2218 = vmatprep.subr.bf16.mxu0 0
        %2219 = vmatpush1.bf16.msra.mxu0 0
        %2220 = vmatprep.subr.bf16.mxu0 0
        %2221 = vmatpush1.bf16.msra.mxu0 0
        %2222 = vmatprep.subr.bf16.mxu0 0
        %2223 = vmatpush1.bf16.msra.mxu0 0
        %2224 = vmatprep.subr.bf16.mxu0 0
        %2225 = vmatpush1.bf16.msra.mxu0 0
        %2226 = vmatprep.subr.bf16.mxu0 0
        %2227 = vmatpush1.bf16.msra.mxu0 0
        %2228 = vmatprep.subr.bf16.mxu0 0
        %2229 = vmatpush1.bf16.msra.mxu0 0
        %2230 = vmatprep.mubr.bf16.mxu0 0
        %2231 = vmatmul.mubr.bf16.gmra.mrb[0].mxu0 %v2197
        %v2232 = vpop.f32.mrb[0].mxu0
        %v2233 = vadd.f32 0.0, %v2232
        %v2234 = vpop.f32.mrb[0].mxu0
        %v2235 = vadd.f32 0.0, %v2234
        %v2236 = vpop.f32.mrb[0].mxu0
        %v2237 = vpop.f32.mrb[0].mxu0
        %2238 = vdwg.mxu0
        %2239 = vmatprep.subr.bf16.mxu0 %v2026
        %2240 = vmatpush1.bf16.msra.mxu0 %v2025
        %2241 = vmatprep.subr.bf16.mxu0 %v2030
        %2242 = vmatpush1.bf16.msra.mxu0 %v2029
        %2243 = vmatprep.subr.bf16.mxu0 %v2034
        %2244 = vmatpush1.bf16.msra.mxu0 %v2033
        %2245 = vmatprep.subr.bf16.mxu0 %v2038
        %2246 = vmatpush1.bf16.msra.mxu0 %v2037
        %2247 = vmatprep.subr.bf16.mxu0 %v2042
        %2248 = vmatpush1.bf16.msra.mxu0 %v2041
        %2249 = vmatprep.subr.bf16.mxu0 %v2046
        %2250 = vmatpush1.bf16.msra.mxu0 %v2045
        %2251 = vmatprep.subr.bf16.mxu0 %v2050
        %2252 = vmatpush1.bf16.msra.mxu0 %v2049
        %2253 = vmatprep.subr.bf16.mxu0 %v2054
        %2254 = vmatpush1.bf16.msra.mxu0 %v2053
        %2255 = vmatprep.subr.bf16.mxu0 0
        %2256 = vmatpush1.bf16.msra.mxu0 0
        %2257 = vmatprep.subr.bf16.mxu0 0
        %2258 = vmatpush1.bf16.msra.mxu0 0
        %2259 = vmatprep.subr.bf16.mxu0 0
        %2260 = vmatpush1.bf16.msra.mxu0 0
        %2261 = vmatprep.subr.bf16.mxu0 0
        %2262 = vmatpush1.bf16.msra.mxu0 0
        %2263 = vmatprep.subr.bf16.mxu0 0
        %2264 = vmatpush1.bf16.msra.mxu0 0
        %2265 = vmatprep.subr.bf16.mxu0 0
        %2266 = vmatpush1.bf16.msra.mxu0 0
        %2267 = vmatprep.subr.bf16.mxu0 0
        %2268 = vmatpush1.bf16.msra.mxu0 0
        %2269 = vmatprep.subr.bf16.mxu0 0
        %2270 = vmatpush1.bf16.msra.mxu0 0
        %2271 = vmatprep.mubr.bf16.mxu0 0
        %2272 = vmatmul.mubr.bf16.gmra.mrb[0].mxu0 %v2197
        %v2273 = vpop.f32.mrb[0].mxu0
        %v2274 = vadd.f32 0.0, %v2273
        %v2275 = vpop.f32.mrb[0].mxu0
        %v2276 = vadd.f32 0.0, %v2275
        %v2277 = vpop.f32.mrb[0].mxu0
        %v2278 = vpop.f32.mrb[0].mxu0
        %2279 = vdwg.mxu0
        %v2284 = vrot.slane %v2233, 7
        %v2285 = vrot.slane %v2235, 7
        %v2286 = vrot.slane %v2274, 7
        %v2287 = vrot.slane %v2276, 7
        %v2292 = vadd.f32 %v1848, %v2284
        %v2293 = vadd.f32 %v1850, %v2285
        %v2294 = vadd.f32 %v1889, %v2286
        %v2295 = vadd.f32 %v1891, %v2287
        %v2296 = vxor.u32 %v2292, 2147483648
        %v2297 = vmul.f32 %v2296, 1.442695
        %v2298 = vpow.pop %v2297
        %v2299 = vadd.f32 %v2298, 1.0
        %v2300 = vrcp.pop %v2299
        %v2301 = vmul.f32 1.0, %v2300
        %v2302 = vxor.u32 %v2293, 2147483648
        %v2303 = vmul.f32 %v2302, 1.442695
        %v2304 = vpow.pop %v2303
        %v2305 = vadd.f32 %v2304, 1.0
        %v2306 = vrcp.pop %v2305
        %v2307 = vmul.f32 1.0, %v2306
        %v2308 = vtanh.pop %v2294
        %v2309 = vxor.u32 %v2295, 2147483648
        %v2310 = vmul.f32 %v2309, 1.442695
        %v2311 = vpow.pop %v2310
        %v2312 = vadd.f32 %v2311, 1.0
        %v2313 = vrcp.pop %v2312
        %v2314 = vmul.f32 1.0, %v2313
        %v2316 = vrot.slane %v2194, 7
        %v2318 = vmul.f32 %v2307, %v2316
        %v2319 = vmul.f32 %v2301, %v2308
        %v2320 = vadd.f32 %v2318, %v2319
        %v2321 = vtanh.pop %v2320
        %v2322 = vmul.f32 %v2314, %v2321
        %v2323 = vpack.c.bf16 %v2322, %v2322
        %v2325 = vshrl.u32 %v2323, 16
        %2328 = vmatprep.subr.bf16.mxu0 %v2024
        %2329 = vmatpush1.bf16.msra.mxu0 %v2023
        %2330 = vmatprep.subr.bf16.mxu0 %v2028
        %2331 = vmatpush1.bf16.msra.mxu0 %v2027
        %2332 = vmatprep.subr.bf16.mxu0 %v2032
        %2333 = vmatpush1.bf16.msra.mxu0 %v2031
        %2334 = vmatprep.subr.bf16.mxu0 %v2036
        %2335 = vmatpush1.bf16.msra.mxu0 %v2035
        %2336 = vmatprep.subr.bf16.mxu0 %v2040
        %2337 = vmatpush1.bf16.msra.mxu0 %v2039
        %2338 = vmatprep.subr.bf16.mxu0 %v2044
        %2339 = vmatpush1.bf16.msra.mxu0 %v2043
        %2340 = vmatprep.subr.bf16.mxu0 %v2048
        %2341 = vmatpush1.bf16.msra.mxu0 %v2047
        %2342 = vmatprep.subr.bf16.mxu0 %v2052
        %2343 = vmatpush1.bf16.msra.mxu0 %v2051
        %2344 = vmatprep.subr.bf16.mxu0 0
        %2345 = vmatpush1.bf16.msra.mxu0 0
        %2346 = vmatprep.subr.bf16.mxu0 0
        %2347 = vmatpush1.bf16.msra.mxu0 0
        %2348 = vmatprep.subr.bf16.mxu0 0
        %2349 = vmatpush1.bf16.msra.mxu0 0
        %2350 = vmatprep.subr.bf16.mxu0 0
        %2351 = vmatpush1.bf16.msra.mxu0 0
        %2352 = vmatprep.subr.bf16.mxu0 0
        %2353 = vmatpush1.bf16.msra.mxu0 0
        %2354 = vmatprep.subr.bf16.mxu0 0
        %2355 = vmatpush1.bf16.msra.mxu0 0
        %2356 = vmatprep.subr.bf16.mxu0 0
        %2357 = vmatpush1.bf16.msra.mxu0 0
        %2358 = vmatprep.subr.bf16.mxu0 0
        %2359 = vmatpush1.bf16.msra.mxu0 0
        %2360 = vmatprep.mubr.bf16.mxu0 0
        %2361 = vmatmul.mubr.bf16.gmra.mrb[0].mxu0 %v2325
        %v2362 = vpop.f32.mrb[0].mxu0
        %v2363 = vadd.f32 0.0, %v2362
        %v2364 = vpop.f32.mrb[0].mxu0
        %v2365 = vadd.f32 0.0, %v2364
        %v2366 = vpop.f32.mrb[0].mxu0
        %v2367 = vpop.f32.mrb[0].mxu0
        %2368 = vdwg.mxu0
        %2369 = vmatprep.subr.bf16.mxu0 %v2026
        %2370 = vmatpush1.bf16.msra.mxu0 %v2025
        %2371 = vmatprep.subr.bf16.mxu0 %v2030
        %2372 = vmatpush1.bf16.msra.mxu0 %v2029
        %2373 = vmatprep.subr.bf16.mxu0 %v2034
        %2374 = vmatpush1.bf16.msra.mxu0 %v2033
        %2375 = vmatprep.subr.bf16.mxu0 %v2038
        %2376 = vmatpush1.bf16.msra.mxu0 %v2037
        %2377 = vmatprep.subr.bf16.mxu0 %v2042
        %2378 = vmatpush1.bf16.msra.mxu0 %v2041
        %2379 = vmatprep.subr.bf16.mxu0 %v2046
        %2380 = vmatpush1.bf16.msra.mxu0 %v2045
        %2381 = vmatprep.subr.bf16.mxu0 %v2050
        %2382 = vmatpush1.bf16.msra.mxu0 %v2049
        %2383 = vmatprep.subr.bf16.mxu0 %v2054
        %2384 = vmatpush1.bf16.msra.mxu0 %v2053
        %2385 = vmatprep.subr.bf16.mxu0 0
        %2386 = vmatpush1.bf16.msra.mxu0 0
        %2387 = vmatprep.subr.bf16.mxu0 0
        %2388 = vmatpush1.bf16.msra.mxu0 0
        %2389 = vmatprep.subr.bf16.mxu0 0
        %2390 = vmatpush1.bf16.msra.mxu0 0
        %2391 = vmatprep.subr.bf16.mxu0 0
        %2392 = vmatpush1.bf16.msra.mxu0 0
        %2393 = vmatprep.subr.bf16.mxu0 0
        %2394 = vmatpush1.bf16.msra.mxu0 0
        %2395 = vmatprep.subr.bf16.mxu0 0
        %2396 = vmatpush1.bf16.msra.mxu0 0
        %2397 = vmatprep.subr.bf16.mxu0 0
        %2398 = vmatpush1.bf16.msra.mxu0 0
        %2399 = vmatprep.subr.bf16.mxu0 0
        %2400 = vmatpush1.bf16.msra.mxu0 0
        %2401 = vmatprep.mubr.bf16.mxu0 0
        %2402 = vmatmul.mubr.bf16.gmra.mrb[0].mxu0 %v2325
        %v2403 = vpop.f32.mrb[0].mxu0
        %v2404 = vadd.f32 0.0, %v2403
        %v2405 = vpop.f32.mrb[0].mxu0
        %v2406 = vadd.f32 0.0, %v2405
        %v2407 = vpop.f32.mrb[0].mxu0
        %v2408 = vpop.f32.mrb[0].mxu0
        %2409 = vdwg.mxu0
        %v2414 = vrot.slane %v2363, 6
        %v2415 = vrot.slane %v2365, 6
        %v2416 = vrot.slane %v2404, 6
        %v2417 = vrot.slane %v2406, 6
        %v2422 = vadd.f32 %v1848, %v2414
        %v2423 = vadd.f32 %v1850, %v2415
        %v2424 = vadd.f32 %v1889, %v2416
        %v2425 = vadd.f32 %v1891, %v2417
        %v2426 = vxor.u32 %v2422, 2147483648
        %v2427 = vmul.f32 %v2426, 1.442695
        %v2428 = vpow.pop %v2427
        %v2429 = vadd.f32 %v2428, 1.0
        %v2430 = vrcp.pop %v2429
        %v2431 = vmul.f32 1.0, %v2430
        %v2432 = vxor.u32 %v2423, 2147483648
        %v2433 = vmul.f32 %v2432, 1.442695
        %v2434 = vpow.pop %v2433
        %v2435 = vadd.f32 %v2434, 1.0
        %v2436 = vrcp.pop %v2435
        %v2437 = vmul.f32 1.0, %v2436
        %v2438 = vtanh.pop %v2424
        %v2439 = vxor.u32 %v2425, 2147483648
        %v2440 = vmul.f32 %v2439, 1.442695
        %v2441 = vpow.pop %v2440
        %v2442 = vadd.f32 %v2441, 1.0
        %v2443 = vrcp.pop %v2442
        %v2444 = vmul.f32 1.0, %v2443
        %v2446 = vrot.slane %v2320, 7
        %v2448 = vmul.f32 %v2437, %v2446
        %v2449 = vmul.f32 %v2431, %v2438
        %v2450 = vadd.f32 %v2448, %v2449
        %v2451 = vtanh.pop %v2450
        %v2452 = vmul.f32 %v2444, %v2451
        %v2453 = vpack.c.bf16 %v2452, %v2452
        %v2455 = vrot.slane %v2453, 1
        %2457 = vmatprep.subr.bf16.mxu0 %v2024
        %2458 = vmatpush1.bf16.msra.mxu0 %v2023
        %2459 = vmatprep.subr.bf16.mxu0 %v2028
        %2460 = vmatpush1.bf16.msra.mxu0 %v2027
        %2461 = vmatprep.subr.bf16.mxu0 %v2032
        %2462 = vmatpush1.bf16.msra.mxu0 %v2031
        %2463 = vmatprep.subr.bf16.mxu0 %v2036
        %2464 = vmatpush1.bf16.msra.mxu0 %v2035
        %2465 = vmatprep.subr.bf16.mxu0 %v2040
        %2466 = vmatpush1.bf16.msra.mxu0 %v2039
        %2467 = vmatprep.subr.bf16.mxu0 %v2044
        %2468 = vmatpush1.bf16.msra.mxu0 %v2043
        %2469 = vmatprep.subr.bf16.mxu0 %v2048
        %2470 = vmatpush1.bf16.msra.mxu0 %v2047
        %2471 = vmatprep.subr.bf16.mxu0 %v2052
        %2472 = vmatpush1.bf16.msra.mxu0 %v2051
        %2473 = vmatprep.subr.bf16.mxu0 0
        %2474 = vmatpush1.bf16.msra.mxu0 0
        %2475 = vmatprep.subr.bf16.mxu0 0
        %2476 = vmatpush1.bf16.msra.mxu0 0
        %2477 = vmatprep.subr.bf16.mxu0 0
        %2478 = vmatpush1.bf16.msra.mxu0 0
        %2479 = vmatprep.subr.bf16.mxu0 0
        %2480 = vmatpush1.bf16.msra.mxu0 0
        %2481 = vmatprep.subr.bf16.mxu0 0
        %2482 = vmatpush1.bf16.msra.mxu0 0
        %2483 = vmatprep.subr.bf16.mxu0 0
        %2484 = vmatpush1.bf16.msra.mxu0 0
        %2485 = vmatprep.subr.bf16.mxu0 0
        %2486 = vmatpush1.bf16.msra.mxu0 0
        %2487 = vmatprep.subr.bf16.mxu0 0
        %2488 = vmatpush1.bf16.msra.mxu0 0
        %2489 = vmatprep.mubr.bf16.mxu0 0
        %2490 = vmatmul.mubr.bf16.gmra.mrb[0].mxu0 %v2455
        %v2491 = vpop.f32.mrb[0].mxu0
        %v2492 = vadd.f32 0.0, %v2491
        %v2493 = vpop.f32.mrb[0].mxu0
        %v2494 = vadd.f32 0.0, %v2493
        %v2495 = vpop.f32.mrb[0].mxu0
        %v2496 = vpop.f32.mrb[0].mxu0
        %2497 = vdwg.mxu0
        %2498 = vmatprep.subr.bf16.mxu0 %v2026
        %2499 = vmatpush1.bf16.msra.mxu0 %v2025
        %2500 = vmatprep.subr.bf16.mxu0 %v2030
        %2501 = vmatpush1.bf16.msra.mxu0 %v2029
        %2502 = vmatprep.subr.bf16.mxu0 %v2034
        %2503 = vmatpush1.bf16.msra.mxu0 %v2033
        %2504 = vmatprep.subr.bf16.mxu0 %v2038
        %2505 = vmatpush1.bf16.msra.mxu0 %v2037
        %2506 = vmatprep.subr.bf16.mxu0 %v2042
        %2507 = vmatpush1.bf16.msra.mxu0 %v2041
        %2508 = vmatprep.subr.bf16.mxu0 %v2046
        %2509 = vmatpush1.bf16.msra.mxu0 %v2045
        %2510 = vmatprep.subr.bf16.mxu0 %v2050
        %2511 = vmatpush1.bf16.msra.mxu0 %v2049
        %2512 = vmatprep.subr.bf16.mxu0 %v2054
        %2513 = vmatpush1.bf16.msra.mxu0 %v2053
        %2514 = vmatprep.subr.bf16.mxu0 0
        %2515 = vmatpush1.bf16.msra.mxu0 0
        %2516 = vmatprep.subr.bf16.mxu0 0
        %2517 = vmatpush1.bf16.msra.mxu0 0
        %2518 = vmatprep.subr.bf16.mxu0 0
        %2519 = vmatpush1.bf16.msra.mxu0 0
        %2520 = vmatprep.subr.bf16.mxu0 0
        %2521 = vmatpush1.bf16.msra.mxu0 0
        %2522 = vmatprep.subr.bf16.mxu0 0
        %2523 = vmatpush1.bf16.msra.mxu0 0
        %2524 = vmatprep.subr.bf16.mxu0 0
        %2525 = vmatpush1.bf16.msra.mxu0 0
        %2526 = vmatprep.subr.bf16.mxu0 0
        %2527 = vmatpush1.bf16.msra.mxu0 0
        %2528 = vmatprep.subr.bf16.mxu0 0
        %2529 = vmatpush1.bf16.msra.mxu0 0
        %2530 = vmatprep.mubr.bf16.mxu0 0
        %2531 = vmatmul.mubr.bf16.gmra.mrb[0].mxu0 %v2455
        %v2532 = vpop.f32.mrb[0].mxu0
        %v2533 = vadd.f32 0.0, %v2532
        %v2534 = vpop.f32.mrb[0].mxu0
        %v2535 = vadd.f32 0.0, %v2534
        %v2536 = vpop.f32.mrb[0].mxu0
        %v2537 = vpop.f32.mrb[0].mxu0
        %2538 = vdwg.mxu0
        %v2543 = vrot.slane %v2492, 5
        %v2544 = vrot.slane %v2494, 5
        %v2545 = vrot.slane %v2533, 5
        %v2546 = vrot.slane %v2535, 5
        %v2551 = vadd.f32 %v1848, %v2543
        %v2552 = vadd.f32 %v1850, %v2544
        %v2553 = vadd.f32 %v1889, %v2545
        %v2554 = vadd.f32 %v1891, %v2546
        %v2555 = vxor.u32 %v2551, 2147483648
        %v2556 = vmul.f32 %v2555, 1.442695
        %v2557 = vpow.pop %v2556
        %v2558 = vadd.f32 %v2557, 1.0
        %v2559 = vrcp.pop %v2558
        %v2560 = vmul.f32 1.0, %v2559
        %v2561 = vxor.u32 %v2552, 2147483648
        %v2562 = vmul.f32 %v2561, 1.442695
        %v2563 = vpow.pop %v2562
        %v2564 = vadd.f32 %v2563, 1.0
        %v2565 = vrcp.pop %v2564
        %v2566 = vmul.f32 1.0, %v2565
        %v2567 = vtanh.pop %v2553
        %v2568 = vxor.u32 %v2554, 2147483648
        %v2569 = vmul.f32 %v2568, 1.442695
        %v2570 = vpow.pop %v2569
        %v2571 = vadd.f32 %v2570, 1.0
        %v2572 = vrcp.pop %v2571
        %v2573 = vmul.f32 1.0, %v2572
        %v2575 = vrot.slane %v2450, 7
        %v2577 = vmul.f32 %v2566, %v2575
        %v2578 = vmul.f32 %v2560, %v2567
        %v2579 = vadd.f32 %v2577, %v2578
        %v2580 = vtanh.pop %v2579
        %v2581 = vmul.f32 %v2573, %v2580
        %v2582 = vpack.c.bf16 %v2581, %v2581
        %v2584 = vshrl.u32 %v2582, 16
        %v2586 = vrot.slane %v2584, 1
        %2588 = vmatprep.subr.bf16.mxu0 %v2024
        %2589 = vmatpush1.bf16.msra.mxu0 %v2023
        %2590 = vmatprep.subr.bf16.mxu0 %v2028
        %2591 = vmatpush1.bf16.msra.mxu0 %v2027
        %2592 = vmatprep.subr.bf16.mxu0 %v2032
        %2593 = vmatpush1.bf16.msra.mxu0 %v2031
        %2594 = vmatprep.subr.bf16.mxu0 %v2036
        %2595 = vmatpush1.bf16.msra.mxu0 %v2035
        %2596 = vmatprep.subr.bf16.mxu0 %v2040
        %2597 = vmatpush1.bf16.msra.mxu0 %v2039
        %2598 = vmatprep.subr.bf16.mxu0 %v2044
        %2599 = vmatpush1.bf16.msra.mxu0 %v2043
        %2600 = vmatprep.subr.bf16.mxu0 %v2048
        %2601 = vmatpush1.bf16.msra.mxu0 %v2047
        %2602 = vmatprep.subr.bf16.mxu0 %v2052
        %2603 = vmatpush1.bf16.msra.mxu0 %v2051
        %2604 = vmatprep.subr.bf16.mxu0 0
        %2605 = vmatpush1.bf16.msra.mxu0 0
        %2606 = vmatprep.subr.bf16.mxu0 0
        %2607 = vmatpush1.bf16.msra.mxu0 0
        %2608 = vmatprep.subr.bf16.mxu0 0
        %2609 = vmatpush1.bf16.msra.mxu0 0
        %2610 = vmatprep.subr.bf16.mxu0 0
        %2611 = vmatpush1.bf16.msra.mxu0 0
        %2612 = vmatprep.subr.bf16.mxu0 0
        %2613 = vmatpush1.bf16.msra.mxu0 0
        %2614 = vmatprep.subr.bf16.mxu0 0
        %2615 = vmatpush1.bf16.msra.mxu0 0
        %2616 = vmatprep.subr.bf16.mxu0 0
        %2617 = vmatpush1.bf16.msra.mxu0 0
        %2618 = vmatprep.subr.bf16.mxu0 0
        %2619 = vmatpush1.bf16.msra.mxu0 0
        %2620 = vmatprep.mubr.bf16.mxu0 0
        %2621 = vmatmul.mubr.bf16.gmra.mrb[0].mxu0 %v2586
        %v2622 = vpop.f32.mrb[0].mxu0
        %v2623 = vadd.f32 0.0, %v2622
        %v2624 = vpop.f32.mrb[0].mxu0
        %v2625 = vadd.f32 0.0, %v2624
        %v2626 = vpop.f32.mrb[0].mxu0
        %v2627 = vpop.f32.mrb[0].mxu0
        %2628 = vdwg.mxu0
        %2629 = vmatprep.subr.bf16.mxu0 %v2026
        %2630 = vmatpush1.bf16.msra.mxu0 %v2025
        %2631 = vmatprep.subr.bf16.mxu0 %v2030
        %2632 = vmatpush1.bf16.msra.mxu0 %v2029
        %2633 = vmatprep.subr.bf16.mxu0 %v2034
        %2634 = vmatpush1.bf16.msra.mxu0 %v2033
        %2635 = vmatprep.subr.bf16.mxu0 %v2038
        %2636 = vmatpush1.bf16.msra.mxu0 %v2037
        %2637 = vmatprep.subr.bf16.mxu0 %v2042
        %2638 = vmatpush1.bf16.msra.mxu0 %v2041
        %2639 = vmatprep.subr.bf16.mxu0 %v2046
        %2640 = vmatpush1.bf16.msra.mxu0 %v2045
        %2641 = vmatprep.subr.bf16.mxu0 %v2050
        %2642 = vmatpush1.bf16.msra.mxu0 %v2049
        %2643 = vmatprep.subr.bf16.mxu0 %v2054
        %2644 = vmatpush1.bf16.msra.mxu0 %v2053
        %2645 = vmatprep.subr.bf16.mxu0 0
        %2646 = vmatpush1.bf16.msra.mxu0 0
        %2647 = vmatprep.subr.bf16.mxu0 0
        %2648 = vmatpush1.bf16.msra.mxu0 0
        %2649 = vmatprep.subr.bf16.mxu0 0
        %2650 = vmatpush1.bf16.msra.mxu0 0
        %2651 = vmatprep.subr.bf16.mxu0 0
        %2652 = vmatpush1.bf16.msra.mxu0 0
        %2653 = vmatprep.subr.bf16.mxu0 0
        %2654 = vmatpush1.bf16.msra.mxu0 0
        %2655 = vmatprep.subr.bf16.mxu0 0
        %2656 = vmatpush1.bf16.msra.mxu0 0
        %2657 = vmatprep.subr.bf16.mxu0 0
        %2658 = vmatpush1.bf16.msra.mxu0 0
        %2659 = vmatprep.subr.bf16.mxu0 0
        %2660 = vmatpush1.bf16.msra.mxu0 0
        %2661 = vmatprep.mubr.bf16.mxu0 0
        %2662 = vmatmul.mubr.bf16.gmra.mrb[0].mxu0 %v2586
        %v2663 = vpop.f32.mrb[0].mxu0
        %v2664 = vadd.f32 0.0, %v2663
        %v2665 = vpop.f32.mrb[0].mxu0
        %v2666 = vadd.f32 0.0, %v2665
        %v2667 = vpop.f32.mrb[0].mxu0
        %v2668 = vpop.f32.mrb[0].mxu0
        %2669 = vdwg.mxu0
        %v2674 = vrot.slane %v2623, 4
        %v2675 = vrot.slane %v2625, 4
        %v2676 = vrot.slane %v2664, 4
        %v2677 = vrot.slane %v2666, 4
        %v2682 = vadd.f32 %v1848, %v2674
        %v2683 = vadd.f32 %v1850, %v2675
        %v2684 = vadd.f32 %v1889, %v2676
        %v2685 = vadd.f32 %v1891, %v2677
        %v2686 = vxor.u32 %v2682, 2147483648
        %v2687 = vmul.f32 %v2686, 1.442695
        %v2688 = vpow.pop %v2687
        %v2689 = vadd.f32 %v2688, 1.0
        %v2690 = vrcp.pop %v2689
        %v2691 = vmul.f32 1.0, %v2690
        %v2692 = vxor.u32 %v2683, 2147483648
        %v2693 = vmul.f32 %v2692, 1.442695
        %v2694 = vpow.pop %v2693
        %v2695 = vadd.f32 %v2694, 1.0
        %v2696 = vrcp.pop %v2695
        %v2697 = vmul.f32 1.0, %v2696
        %v2698 = vtanh.pop %v2684
        %v2699 = vxor.u32 %v2685, 2147483648
        %v2700 = vmul.f32 %v2699, 1.442695
        %v2701 = vpow.pop %v2700
        %v2702 = vadd.f32 %v2701, 1.0
        %v2703 = vrcp.pop %v2702
        %v2704 = vmul.f32 1.0, %v2703
        %v2706 = vrot.slane %v2579, 7
        %v2708 = vmul.f32 %v2697, %v2706
        %v2709 = vmul.f32 %v2691, %v2698
        %v2710 = vadd.f32 %v2708, %v2709
        %v2711 = vtanh.pop %v2710
        %v2712 = vmul.f32 %v2704, %v2711
        %v2713 = vpack.c.bf16 %v2712, %v2712
        %v2715 = vrot.slane %v2713, 2
        %2717 = vmatprep.subr.bf16.mxu0 %v2024
        %2718 = vmatpush1.bf16.msra.mxu0 %v2023
        %2719 = vmatprep.subr.bf16.mxu0 %v2028
        %2720 = vmatpush1.bf16.msra.mxu0 %v2027
        %2721 = vmatprep.subr.bf16.mxu0 %v2032
        %2722 = vmatpush1.bf16.msra.mxu0 %v2031
        %2723 = vmatprep.subr.bf16.mxu0 %v2036
        %2724 = vmatpush1.bf16.msra.mxu0 %v2035
        %2725 = vmatprep.subr.bf16.mxu0 %v2040
        %2726 = vmatpush1.bf16.msra.mxu0 %v2039
        %2727 = vmatprep.subr.bf16.mxu0 %v2044
        %2728 = vmatpush1.bf16.msra.mxu0 %v2043
        %2729 = vmatprep.subr.bf16.mxu0 %v2048
        %2730 = vmatpush1.bf16.msra.mxu0 %v2047
        %2731 = vmatprep.subr.bf16.mxu0 %v2052
        %2732 = vmatpush1.bf16.msra.mxu0 %v2051
        %2733 = vmatprep.subr.bf16.mxu0 0
        %2734 = vmatpush1.bf16.msra.mxu0 0
        %2735 = vmatprep.subr.bf16.mxu0 0
        %2736 = vmatpush1.bf16.msra.mxu0 0
        %2737 = vmatprep.subr.bf16.mxu0 0
        %2738 = vmatpush1.bf16.msra.mxu0 0
        %2739 = vmatprep.subr.bf16.mxu0 0
        %2740 = vmatpush1.bf16.msra.mxu0 0
        %2741 = vmatprep.subr.bf16.mxu0 0
        %2742 = vmatpush1.bf16.msra.mxu0 0
        %2743 = vmatprep.subr.bf16.mxu0 0
        %2744 = vmatpush1.bf16.msra.mxu0 0
        %2745 = vmatprep.subr.bf16.mxu0 0
        %2746 = vmatpush1.bf16.msra.mxu0 0
        %2747 = vmatprep.subr.bf16.mxu0 0
        %2748 = vmatpush1.bf16.msra.mxu0 0
        %2749 = vmatprep.mubr.bf16.mxu0 0
        %2750 = vmatmul.mubr.bf16.gmra.mrb[0].mxu0 %v2715
        %v2751 = vpop.f32.mrb[0].mxu0
        %v2752 = vadd.f32 0.0, %v2751
        %v2753 = vpop.f32.mrb[0].mxu0
        %v2754 = vadd.f32 0.0, %v2753
        %v2755 = vpop.f32.mrb[0].mxu0
        %v2756 = vpop.f32.mrb[0].mxu0
        %2757 = vdwg.mxu0
        %2758 = vmatprep.subr.bf16.mxu0 %v2026
        %2759 = vmatpush1.bf16.msra.mxu0 %v2025
        %2760 = vmatprep.subr.bf16.mxu0 %v2030
        %2761 = vmatpush1.bf16.msra.mxu0 %v2029
        %2762 = vmatprep.subr.bf16.mxu0 %v2034
        %2763 = vmatpush1.bf16.msra.mxu0 %v2033
        %2764 = vmatprep.subr.bf16.mxu0 %v2038
        %2765 = vmatpush1.bf16.msra.mxu0 %v2037
        %2766 = vmatprep.subr.bf16.mxu0 %v2042
        %2767 = vmatpush1.bf16.msra.mxu0 %v2041
        %2768 = vmatprep.subr.bf16.mxu0 %v2046
        %2769 = vmatpush1.bf16.msra.mxu0 %v2045
        %2770 = vmatprep.subr.bf16.mxu0 %v2050
        %2771 = vmatpush1.bf16.msra.mxu0 %v2049
        %2772 = vmatprep.subr.bf16.mxu0 %v2054
        %2773 = vmatpush1.bf16.msra.mxu0 %v2053
        %2774 = vmatprep.subr.bf16.mxu0 0
        %2775 = vmatpush1.bf16.msra.mxu0 0
        %2776 = vmatprep.subr.bf16.mxu0 0
        %2777 = vmatpush1.bf16.msra.mxu0 0
        %2778 = vmatprep.subr.bf16.mxu0 0
        %2779 = vmatpush1.bf16.msra.mxu0 0
        %2780 = vmatprep.subr.bf16.mxu0 0
        %2781 = vmatpush1.bf16.msra.mxu0 0
        %2782 = vmatprep.subr.bf16.mxu0 0
        %2783 = vmatpush1.bf16.msra.mxu0 0
        %2784 = vmatprep.subr.bf16.mxu0 0
        %2785 = vmatpush1.bf16.msra.mxu0 0
        %2786 = vmatprep.subr.bf16.mxu0 0
        %2787 = vmatpush1.bf16.msra.mxu0 0
        %2788 = vmatprep.subr.bf16.mxu0 0
        %2789 = vmatpush1.bf16.msra.mxu0 0
        %2790 = vmatprep.mubr.bf16.mxu0 0
        %2791 = vmatmul.mubr.bf16.gmra.mrb[0].mxu0 %v2715
        %v2792 = vpop.f32.mrb[0].mxu0
        %v2793 = vadd.f32 0.0, %v2792
        %v2794 = vpop.f32.mrb[0].mxu0
        %v2795 = vadd.f32 0.0, %v2794
        %v2796 = vpop.f32.mrb[0].mxu0
        %v2797 = vpop.f32.mrb[0].mxu0
        %2798 = vdwg.mxu0
        %v2803 = vrot.slane %v2752, 3
        %v2804 = vrot.slane %v2754, 3
        %v2805 = vrot.slane %v2793, 3
        %v2806 = vrot.slane %v2795, 3
        %v2811 = vadd.f32 %v1848, %v2803
        %v2812 = vadd.f32 %v1850, %v2804
        %v2813 = vadd.f32 %v1889, %v2805
        %v2814 = vadd.f32 %v1891, %v2806
        %v2815 = vxor.u32 %v2811, 2147483648
        %v2816 = vmul.f32 %v2815, 1.442695
        %v2817 = vpow.pop %v2816
        %v2818 = vadd.f32 %v2817, 1.0
        %v2819 = vrcp.pop %v2818
        %v2820 = vmul.f32 1.0, %v2819
        %v2821 = vxor.u32 %v2812, 2147483648
        %v2822 = vmul.f32 %v2821, 1.442695
        %v2823 = vpow.pop %v2822
        %v2824 = vadd.f32 %v2823, 1.0
        %v2825 = vrcp.pop %v2824
        %v2826 = vmul.f32 1.0, %v2825
        %v2827 = vtanh.pop %v2813
        %v2828 = vxor.u32 %v2814, 2147483648
        %v2829 = vmul.f32 %v2828, 1.442695
        %v2830 = vpow.pop %v2829
        %v2831 = vadd.f32 %v2830, 1.0
        %v2832 = vrcp.pop %v2831
        %v2833 = vmul.f32 1.0, %v2832
        %v2835 = vrot.slane %v2710, 7
        %v2837 = vmul.f32 %v2826, %v2835
        %v2838 = vmul.f32 %v2820, %v2827
        %v2839 = vadd.f32 %v2837, %v2838
        %v2840 = vtanh.pop %v2839
        %v2841 = vmul.f32 %v2833, %v2840
        %v2842 = vsel %vm1628, %v2196, %v2322
        %v2843 = vsel %vm1360, %v2842, %v2452
        %v2844 = vsel %vm1631, %v2843, %v2581
        %v2845 = vsel %vm809, %v2844, %v2712
        %v2846 = vsel %vm1634, %v2845, %v2841
        %v2848 = vrot.slane %v2841, 5
        %v2851 = vrot.slane %v2712, 3
        %v2854 = vrot.slane %v2581, 1
        %v2857 = vrot.slane %v2452, 7
        %v2860 = vrot.slane %v2322, 5
        %v2863 = vrot.slane %v2196, 3
        %v2865 = vsel %vm1628, %v2848, %v2851
        %v2866 = vsel %vm1360, %v2865, %v2854
        %v2867 = vsel %vm1631, %v2866, %v2857
        %v2868 = vsel %vm809, %v2867, %v2860
        %v2869 = vsel %vm1634, %v2868, %v2863
        %vm2870 = vcmask 523264
        %v2871 = vsel %vm2870, %v2846, %v2869
        %v2872 = vpack.c.bf16 %v2871, %v2871
        %v2873 = vld [vmem:[%s10] sm:$0xff]
        %v2874 = vld [vmem:[%s10 + $0x8] sm:$0xf]
        %v2875 = vld [vmem:[%s10 + $0xc] sm:$0xff]
        %v2876 = vld [vmem:[%s10 + $0x14] sm:$0xf]
        %v2877 = vld [vmem:[%s10 + $0x18] sm:$0xff]
        %v2878 = vld [vmem:[%s10 + $0x20] sm:$0xf]
        %v2879 = vld [vmem:[%s10 + $0x24] sm:$0xff]
        %v2880 = vld [vmem:[%s10 + $0x2c] sm:$0xf]
        %v2881 = vld [vmem:[%s10 + $0x30] sm:$0xff]
        %v2882 = vld [vmem:[%s10 + $0x38] sm:$0xf]
        %v2883 = vld [vmem:[%s10 + $0x3c] sm:$0xff]
        %v2884 = vld [vmem:[%s10 + $0x44] sm:$0xf]
        %v2885 = vld [vmem:[%s10 + $0x48] sm:$0xff]
        %v2886 = vld [vmem:[%s10 + $0x50] sm:$0xf]
        %v2887 = vld [vmem:[%s10 + $0x54] sm:$0xff]
        %v2888 = vld [vmem:[%s10 + $0x5c] sm:$0xf]
        %v2889 = vld [vmem:[%s10 + $0x60] sm:$0xff]
        %v2890 = vld [vmem:[%s10 + $0x68] sm:$0xf]
        %v2891 = vld [vmem:[%s10 + $0x6c] sm:$0xff]
        %v2892 = vld [vmem:[%s10 + $0x74] sm:$0xf]
        %v2893 = vld [vmem:[%s10 + $0x78] sm:$0xff]
        %v2894 = vld [vmem:[%s10 + $0x80] sm:$0xf]
        %v2895 = vld [vmem:[%s10 + $0x84] sm:$0xff]
        %v2896 = vld [vmem:[%s10 + $0x8c] sm:$0xf]
        %v2897 = vld [vmem:[%s10 + $0x90] sm:$0xff]
        %v2898 = vld [vmem:[%s10 + $0x98] sm:$0xf]
        %v2899 = vld [vmem:[%s10 + $0x9c] sm:$0xff]
        %v2900 = vld [vmem:[%s10 + $0xa4] sm:$0xf]
        %v2901 = vld [vmem:[%s10 + $0xa8] sm:$0xff]
        %v2902 = vld [vmem:[%s10 + $0xb0] sm:$0xf]
        %v2903 = vld [vmem:[%s10 + $0xb4] sm:$0xff]
        %v2904 = vld [vmem:[%s10 + $0xbc] sm:$0xf]
        %v2905 = vld [vmem:[%s11] sm:$0x7]
        %v2907 = vlaneseq
        %v2908 = vshrl.u32 %v2907, 7
        %v2909 = vsub.s32 0, %v2908
        %v2910 = vrot.slane %v2905, %v2909
        %v2911 = vlaneseq
        %v2912 = vshrl.u32 %v2911, 7
        %v2913 = vsub.s32 1, %v2912
        %v2914 = vrot.slane %v2905, %v2913
        %v2915 = vlaneseq
        %v2916 = vshrl.u32 %v2915, 7
        %v2917 = vsub.s32 2, %v2916
        %v2918 = vrot.slane %v2905, %v2917
        %v2954 = vunpack.c.l.b16 %v2873
        %v2955 = vunpack.c.h.b16 %v2873
        %v2956 = vunpack.c.l.b16 %v2874
        %v2957 = vunpack.c.l.b16 %v2875
        %v2958 = vunpack.c.h.b16 %v2875
        %v2959 = vunpack.c.l.b16 %v2876
        %v2960 = vunpack.c.l.b16 %v2877
        %v2961 = vunpack.c.h.b16 %v2877
        %v2962 = vunpack.c.l.b16 %v2878
        %v2963 = vunpack.c.l.b16 %v2879
        %v2964 = vunpack.c.h.b16 %v2879
        %v2965 = vunpack.c.l.b16 %v2880
        %v2966 = vunpack.c.l.b16 %v2881
        %v2967 = vunpack.c.h.b16 %v2881
        %v2968 = vunpack.c.l.b16 %v2882
        %v2969 = vunpack.c.l.b16 %v2883
        %v2970 = vunpack.c.h.b16 %v2883
        %v2971 = vunpack.c.l.b16 %v2884
        %v2972 = vunpack.c.l.b16 %v2885
        %v2973 = vunpack.c.h.b16 %v2885
        %v2974 = vunpack.c.l.b16 %v2886
        %v2975 = vunpack.c.l.b16 %v2887
        %v2976 = vunpack.c.h.b16 %v2887
        %v2977 = vunpack.c.l.b16 %v2888
        %v2978 = vunpack.c.l.b16 %v2889
        %v2979 = vunpack.c.h.b16 %v2889
        %v2980 = vunpack.c.l.b16 %v2890
        %v2981 = vunpack.c.l.b16 %v2891
        %v2982 = vunpack.c.h.b16 %v2891
        %v2983 = vunpack.c.l.b16 %v2892
        %v2984 = vunpack.c.l.b16 %v2893
        %v2985 = vunpack.c.h.b16 %v2893
        %v2986 = vunpack.c.l.b16 %v2894
        %v2987 = vunpack.c.l.b16 %v2895
        %v2988 = vunpack.c.h.b16 %v2895
        %v2989 = vunpack.c.l.b16 %v2896
        %v2990 = vunpack.c.l.b16 %v2897
        %v2991 = vunpack.c.h.b16 %v2897
        %v2992 = vunpack.c.l.b16 %v2898
        %v2993 = vunpack.c.l.b16 %v2899
        %v2994 = vunpack.c.h.b16 %v2899
        %v2995 = vunpack.c.l.b16 %v2900
        %v2996 = vunpack.c.l.b16 %v2901
        %v2997 = vunpack.c.h.b16 %v2901
        %v2998 = vunpack.c.l.b16 %v2902
        %v2999 = vunpack.c.l.b16 %v2903
        %v3000 = vunpack.c.h.b16 %v2903
        %v3001 = vunpack.c.l.b16 %v2904
        %v3002 = vpack.c.b16 %v2957, %v2954
        %v3003 = vpack.c.b16 %v2958, %v2955
        %v3004 = vpack.c.b16 %v2959, %v2956
        %v3005 = vpack.c.b16 %v2963, %v2960
        %v3006 = vpack.c.b16 %v2964, %v2961
        %v3007 = vpack.c.b16 %v2965, %v2962
        %v3008 = vpack.c.b16 %v2969, %v2966
        %v3009 = vpack.c.b16 %v2970, %v2967
        %v3010 = vpack.c.b16 %v2971, %v2968
        %v3011 = vpack.c.b16 %v2975, %v2972
        %v3012 = vpack.c.b16 %v2976, %v2973
        %v3013 = vpack.c.b16 %v2977, %v2974
        %v3014 = vpack.c.b16 %v2981, %v2978
        %v3015 = vpack.c.b16 %v2982, %v2979
        %v3016 = vpack.c.b16 %v2983, %v2980
        %v3017 = vpack.c.b16 %v2987, %v2984
        %v3018 = vpack.c.b16 %v2988, %v2985
        %v3019 = vpack.c.b16 %v2989, %v2986
        %v3020 = vpack.c.b16 %v2993, %v2990
        %v3021 = vpack.c.b16 %v2994, %v2991
        %v3022 = vpack.c.b16 %v2995, %v2992
        %v3023 = vpack.c.b16 %v2999, %v2996
        %v3024 = vpack.c.b16 %v3000, %v2997
        %v3025 = vpack.c.b16 %v3001, %v2998
        %3050 = vmatprep.subr.bf16.mxu0 %v3003
        %3051 = vmatpush1.bf16.msra.mxu0 %v3002
        %3052 = vmatprep.subr.bf16.mxu0 %v3006
        %3053 = vmatpush1.bf16.msra.mxu0 %v3005
        %3054 = vmatprep.subr.bf16.mxu0 %v3009
        %3055 = vmatpush1.bf16.msra.mxu0 %v3008
        %3056 = vmatprep.subr.bf16.mxu0 %v3012
        %3057 = vmatpush1.bf16.msra.mxu0 %v3011
        %3058 = vmatprep.subr.bf16.mxu0 %v3015
        %3059 = vmatpush1.bf16.msra.mxu0 %v3014
        %3060 = vmatprep.subr.bf16.mxu0 %v3018
        %3061 = vmatpush1.bf16.msra.mxu0 %v3017
        %3062 = vmatprep.subr.bf16.mxu0 %v3021
        %3063 = vmatpush1.bf16.msra.mxu0 %v3020
        %3064 = vmatprep.subr.bf16.mxu0 %v3024
        %3065 = vmatpush1.bf16.msra.mxu0 %v3023
        %3066 = vmatprep.subr.bf16.mxu0 0
        %3067 = vmatpush1.bf16.msra.mxu0 0
        %3068 = vmatprep.subr.bf16.mxu0 0
        %3069 = vmatpush1.bf16.msra.mxu0 0
        %3070 = vmatprep.subr.bf16.mxu0 0
        %3071 = vmatpush1.bf16.msra.mxu0 0
        %3072 = vmatprep.subr.bf16.mxu0 0
        %3073 = vmatpush1.bf16.msra.mxu0 0
        %3074 = vmatprep.subr.bf16.mxu0 0
        %3075 = vmatpush1.bf16.msra.mxu0 0
        %3076 = vmatprep.subr.bf16.mxu0 0
        %3077 = vmatpush1.bf16.msra.mxu0 0
        %3078 = vmatprep.subr.bf16.mxu0 0
        %3079 = vmatpush1.bf16.msra.mxu0 0
        %3080 = vmatprep.subr.bf16.mxu0 0
        %3081 = vmatpush1.bf16.msra.mxu0 0
        %3082 = vmatprep.mubr.bf16.mxu0 0
        %3083 = vmatmul.mubr.bf16.gmra.mrb[0].mxu0 %v2872
        %v3084 = vpop.f32.mrb[0].mxu0
        %v3085 = vadd.f32 %v2910, %v3084
        %v3086 = vpop.f32.mrb[0].mxu0
        %v3087 = vadd.f32 %v2914, %v3086
        %v3088 = vpop.f32.mrb[0].mxu0
        %v3089 = vpop.f32.mrb[0].mxu0
        %3090 = vdwg.mxu0
        %3091 = vmatprep.subr.bf16.mxu0 0
        %3092 = vmatpush1.bf16.msra.mxu0 %v3004
        %3093 = vmatprep.subr.bf16.mxu0 0
        %3094 = vmatpush1.bf16.msra.mxu0 %v3007
        %3095 = vmatprep.subr.bf16.mxu0 0
        %3096 = vmatpush1.bf16.msra.mxu0 %v3010
        %3097 = vmatprep.subr.bf16.mxu0 0
        %3098 = vmatpush1.bf16.msra.mxu0 %v3013
        %3099 = vmatprep.subr.bf16.mxu0 0
        %3100 = vmatpush1.bf16.msra.mxu0 %v3016
        %3101 = vmatprep.subr.bf16.mxu0 0
        %3102 = vmatpush1.bf16.msra.mxu0 %v3019
        %3103 = vmatprep.subr.bf16.mxu0 0
        %3104 = vmatpush1.bf16.msra.mxu0 %v3022
        %3105 = vmatprep.subr.bf16.mxu0 0
        %3106 = vmatpush1.bf16.msra.mxu0 %v3025
        %3107 = vmatprep.subr.bf16.mxu0 0
        %3108 = vmatpush1.bf16.msra.mxu0 0
        %3109 = vmatprep.subr.bf16.mxu0 0
        %3110 = vmatpush1.bf16.msra.mxu0 0
        %3111 = vmatprep.subr.bf16.mxu0 0
        %3112 = vmatpush1.bf16.msra.mxu0 0
        %3113 = vmatprep.subr.bf16.mxu0 0
        %3114 = vmatpush1.bf16.msra.mxu0 0
        %3115 = vmatprep.subr.bf16.mxu0 0
        %3116 = vmatpush1.bf16.msra.mxu0 0
        %3117 = vmatprep.subr.bf16.mxu0 0
        %3118 = vmatpush1.bf16.msra.mxu0 0
        %3119 = vmatprep.subr.bf16.mxu0 0
        %3120 = vmatpush1.bf16.msra.mxu0 0
        %3121 = vmatprep.subr.bf16.mxu0 0
        %3122 = vmatpush1.bf16.msra.mxu0 0
        %3123 = vmatprep.mubr.bf16.mxu0 0
        %3124 = vmatmul.mubr.bf16.gmra.mrb[0].mxu0 %v2872
        %v3125 = vpop.f32.mrb[0].mxu0
        %v3126 = vadd.f32 %v2918, %v3125
        %v3127 = vpop.f32.mrb[0].mxu0
        %v3128 = vpop.f32.mrb[0].mxu0
        %v3129 = vpop.f32.mrb[0].mxu0
        %3130 = vdwg.mxu0
        %v3131 = vpack.c.bf16 %v3085, %v3085
        %v3132 = vpack.c.bf16 %v3087, %v3087
        %v3133 = vpack.c.bf16 %v3126, %v3126
        %vm3134 = vcmask 261120
        %v3136 = vsel %vm3134, %v3131, 0
        %v3139 = vsel %vm3134, %v3132, 0
        %3141 = vmatprep.subr.bf16.mxu0 0
        %3142 = vmatpush1.bf16.xpose.msra.mxu0 %v3139
        %3143 = vmatprep.subr.bf16.mxu0 0
        %3144 = vmatpush1.bf16.xpose.msra.mxu0 0
        %3145 = vmatprep.subr.bf16.mxu0 0
        %3146 = vmatpush1.bf16.xpose.msra.mxu0 0
        %3147 = vmatprep.subr.bf16.mxu0 0
        %3148 = vmatpush1.bf16.xpose.msra.mxu0 0
        %3149 = vmatprep.subr.bf16.mxu0 0
        %3150 = vmatpush1.bf16.xpose.msra.mxu0 0
        %3151 = vmatprep.subr.bf16.mxu0 0
        %3152 = vmatpush1.bf16.xpose.msra.mxu0 0
        %3153 = vmatprep.subr.bf16.mxu0 0
        %3154 = vmatpush1.bf16.xpose.msra.mxu0 0
        %3155 = vmatprep.subr.bf16.mxu0 0
        %3156 = vmatpush1.bf16.xpose.msra.mxu0 0
        %3157 = vmatprep.subr.bf16.mxu0 0
        %3158 = vmatpush1.bf16.xpose.msra.mxu0 0
        %3159 = vmatprep.subr.bf16.mxu0 0
        %3160 = vmatpush1.bf16.xpose.msra.mxu0 0
        %3161 = vmatprep.subr.bf16.mxu0 0
        %3162 = vmatpush1.bf16.xpose.msra.mxu0 0
        %3163 = vmatprep.subr.bf16.mxu0 0
        %3164 = vmatpush1.bf16.xpose.msra.mxu0 0
        %3165 = vmatprep.subr.bf16.mxu0 0
        %3166 = vmatpush1.bf16.xpose.msra.mxu0 0
        %3167 = vmatprep.subr.bf16.mxu0 0
        %3168 = vmatpush1.bf16.xpose.msra.mxu0 0
        %3169 = vmatprep.subr.bf16.mxu0 0
        %3170 = vmatpush1.bf16.xpose.msra.mxu0 0
        %3171 = vmatprep.subr.bf16.mxu0 0
        %3172 = vmatpush1.bf16.xpose.msra.mxu0 0
        %3173 = vmatprep.mubr.bf16.mxu0 0
        %3174 = vmatmul.mubr.bf16.gmra.mrb[0].mxu0 %v3136
        %v3175 = vpop.f32.mrb[0].mxu0
        %v3176 = vadd.f32 0.0, %v3175
        %v3177 = vpop.f32.mrb[0].mxu0
        %v3178 = vpop.f32.mrb[0].mxu0
        %v3179 = vpop.f32.mrb[0].mxu0
        %3180 = vdwg.mxu0
        %vm3181 = vcmask 46080
        %v3182 = vsel %vm3181, %v3176, -inf
        %3183 = vmax.xlane.f32.xlu0 %v3182
        %v3184 = vpop.xlane.xlu0 %3183
        %v3185 = vsub.f32 %v3176, %v3184
        %v3186 = vmul.f32 %v3185, 1.442695
        %v3187 = vpow.pop %v3186
        %v3188 = vsel %vm3181, %v3187, 0.0
        %3189 = vadd.xlane.f32.xlu0 %v3188
        %v3190 = vpop.xlane.xlu0 %3189
        %v3191 = vrcp.pop %v3190
        %v3192 = vmul.f32 %v3187, %v3191
        %v3193 = vpack.c.bf16 %v3192, %v3192
        %vm3194 = vcmask 48128
        %v3196 = vsel %vm3194, %v3193, 0
        %v3199 = vsel %vm1631, %v3133, 0
        %3201 = vmatprep.subr.bf16.mxu0 0
        %3202 = vmatpush1.bf16.msra.mxu0 %v3199
        %3203 = vmatprep.subr.bf16.mxu0 0
        %3204 = vmatpush1.bf16.msra.mxu0 0
        %3205 = vmatprep.subr.bf16.mxu0 0
        %3206 = vmatpush1.bf16.msra.mxu0 0
        %3207 = vmatprep.subr.bf16.mxu0 0
        %3208 = vmatpush1.bf16.msra.mxu0 0
        %3209 = vmatprep.subr.bf16.mxu0 0
        %3210 = vmatpush1.bf16.msra.mxu0 0
        %3211 = vmatprep.subr.bf16.mxu0 0
        %3212 = vmatpush1.bf16.msra.mxu0 0
        %3213 = vmatprep.subr.bf16.mxu0 0
        %3214 = vmatpush1.bf16.msra.mxu0 0
        %3215 = vmatprep.subr.bf16.mxu0 0
        %3216 = vmatpush1.bf16.msra.mxu0 0
        %3217 = vmatprep.subr.bf16.mxu0 0
        %3218 = vmatpush1.bf16.msra.mxu0 0
        %3219 = vmatprep.subr.bf16.mxu0 0
        %3220 = vmatpush1.bf16.msra.mxu0 0
        %3221 = vmatprep.subr.bf16.mxu0 0
        %3222 = vmatpush1.bf16.msra.mxu0 0
        %3223 = vmatprep.subr.bf16.mxu0 0
        %3224 = vmatpush1.bf16.msra.mxu0 0
        %3225 = vmatprep.subr.bf16.mxu0 0
        %3226 = vmatpush1.bf16.msra.mxu0 0
        %3227 = vmatprep.subr.bf16.mxu0 0
        %3228 = vmatpush1.bf16.msra.mxu0 0
        %3229 = vmatprep.subr.bf16.mxu0 0
        %3230 = vmatpush1.bf16.msra.mxu0 0
        %3231 = vmatprep.subr.bf16.mxu0 0
        %3232 = vmatpush1.bf16.msra.mxu0 0
        %3233 = vmatprep.mubr.bf16.mxu0 0
        %3234 = vmatmul.mubr.bf16.gmra.mrb[0].mxu0 %v3196
        %v3235 = vpop.f32.mrb[0].mxu0
        %v3236 = vadd.f32 0.0, %v3235
        %v3237 = vpop.f32.mrb[0].mxu0
        %v3238 = vpop.f32.mrb[0].mxu0
        %v3239 = vpop.f32.mrb[0].mxu0
        %3240 = vdwg.mxu0
        %3242 = vrot.lane.b32.xlu0 %v3131, 96
        %v3243 = vpop.permute.xlu0 %3242
        %3245 = vrot.lane.b32.xlu0 %v3132, 96
        %v3246 = vpop.permute.xlu0 %3245
        %v3248 = vsel %vm3134, %v3243, 0
        %v3251 = vsel %vm3134, %v3246, 0
        %3253 = vmatprep.subr.bf16.mxu0 0
        %3254 = vmatpush1.bf16.xpose.msra.mxu0 %v3251
        %3255 = vmatprep.subr.bf16.mxu0 0
        %3256 = vmatpush1.bf16.xpose.msra.mxu0 0
        %3257 = vmatprep.subr.bf16.mxu0 0
        %3258 = vmatpush1.bf16.xpose.msra.mxu0 0
        %3259 = vmatprep.subr.bf16.mxu0 0
        %3260 = vmatpush1.bf16.xpose.msra.mxu0 0
        %3261 = vmatprep.subr.bf16.mxu0 0
        %3262 = vmatpush1.bf16.xpose.msra.mxu0 0
        %3263 = vmatprep.subr.bf16.mxu0 0
        %3264 = vmatpush1.bf16.xpose.msra.mxu0 0
        %3265 = vmatprep.subr.bf16.mxu0 0
        %3266 = vmatpush1.bf16.xpose.msra.mxu0 0
        %3267 = vmatprep.subr.bf16.mxu0 0
        %3268 = vmatpush1.bf16.xpose.msra.mxu0 0
        %3269 = vmatprep.subr.bf16.mxu0 0
        %3270 = vmatpush1.bf16.xpose.msra.mxu0 0
        %3271 = vmatprep.subr.bf16.mxu0 0
        %3272 = vmatpush1.bf16.xpose.msra.mxu0 0
        %3273 = vmatprep.subr.bf16.mxu0 0
        %3274 = vmatpush1.bf16.xpose.msra.mxu0 0
        %3275 = vmatprep.subr.bf16.mxu0 0
        %3276 = vmatpush1.bf16.xpose.msra.mxu0 0
        %3277 = vmatprep.subr.bf16.mxu0 0
        %3278 = vmatpush1.bf16.xpose.msra.mxu0 0
        %3279 = vmatprep.subr.bf16.mxu0 0
        %3280 = vmatpush1.bf16.xpose.msra.mxu0 0
        %3281 = vmatprep.subr.bf16.mxu0 0
        %3282 = vmatpush1.bf16.xpose.msra.mxu0 0
        %3283 = vmatprep.subr.bf16.mxu0 0
        %3284 = vmatpush1.bf16.xpose.msra.mxu0 0
        %3285 = vmatprep.mubr.bf16.mxu0 0
        %3286 = vmatmul.mubr.bf16.gmra.mrb[0].mxu0 %v3248
        %v3287 = vpop.f32.mrb[0].mxu0
        %v3288 = vadd.f32 0.0, %v3287
        %v3289 = vpop.f32.mrb[0].mxu0
        %v3290 = vpop.f32.mrb[0].mxu0
        %v3291 = vpop.f32.mrb[0].mxu0
        %3292 = vdwg.mxu0
        %v3293 = vsel %vm3181, %v3288, -inf
        %3294 = vmax.xlane.f32.xlu0 %v3293
        %v3295 = vpop.xlane.xlu0 %3294
        %v3296 = vsub.f32 %v3288, %v3295
        %v3297 = vmul.f32 %v3296, 1.442695
        %v3298 = vpow.pop %v3297
        %v3299 = vsel %vm3181, %v3298, 0.0
        %3300 = vadd.xlane.f32.xlu0 %v3299
        %v3301 = vpop.xlane.xlu0 %3300
        %v3302 = vrcp.pop %v3301
        %v3303 = vmul.f32 %v3298, %v3302
        %v3304 = vpack.c.bf16 %v3303, %v3303
        %3306 = vrot.lane.b32.xlu0 %v3133, 96
        %v3307 = vpop.permute.xlu0 %3306
        %v3309 = vsel %vm3194, %v3304, 0
        %v3312 = vsel %vm1631, %v3307, 0
        %3314 = vmatprep.subr.bf16.mxu0 0
        %3315 = vmatpush1.bf16.msra.mxu0 %v3312
        %3316 = vmatprep.subr.bf16.mxu0 0
        %3317 = vmatpush1.bf16.msra.mxu0 0
        %3318 = vmatprep.subr.bf16.mxu0 0
        %3319 = vmatpush1.bf16.msra.mxu0 0
        %3320 = vmatprep.subr.bf16.mxu0 0
        %3321 = vmatpush1.bf16.msra.mxu0 0
        %3322 = vmatprep.subr.bf16.mxu0 0
        %3323 = vmatpush1.bf16.msra.mxu0 0
        %3324 = vmatprep.subr.bf16.mxu0 0
        %3325 = vmatpush1.bf16.msra.mxu0 0
        %3326 = vmatprep.subr.bf16.mxu0 0
        %3327 = vmatpush1.bf16.msra.mxu0 0
        %3328 = vmatprep.subr.bf16.mxu0 0
        %3329 = vmatpush1.bf16.msra.mxu0 0
        %3330 = vmatprep.subr.bf16.mxu0 0
        %3331 = vmatpush1.bf16.msra.mxu0 0
        %3332 = vmatprep.subr.bf16.mxu0 0
        %3333 = vmatpush1.bf16.msra.mxu0 0
        %3334 = vmatprep.subr.bf16.mxu0 0
        %3335 = vmatpush1.bf16.msra.mxu0 0
        %3336 = vmatprep.subr.bf16.mxu0 0
        %3337 = vmatpush1.bf16.msra.mxu0 0
        %3338 = vmatprep.subr.bf16.mxu0 0
        %3339 = vmatpush1.bf16.msra.mxu0 0
        %3340 = vmatprep.subr.bf16.mxu0 0
        %3341 = vmatpush1.bf16.msra.mxu0 0
        %3342 = vmatprep.subr.bf16.mxu0 0
        %3343 = vmatpush1.bf16.msra.mxu0 0
        %3344 = vmatprep.subr.bf16.mxu0 0
        %3345 = vmatpush1.bf16.msra.mxu0 0
        %3346 = vmatprep.mubr.bf16.mxu0 0
        %3347 = vmatmul.mubr.bf16.gmra.mrb[0].mxu0 %v3309
        %v3348 = vpop.f32.mrb[0].mxu0
        %v3349 = vadd.f32 0.0, %v3348
        %v3350 = vpop.f32.mrb[0].mxu0
        %v3351 = vpop.f32.mrb[0].mxu0
        %v3352 = vpop.f32.mrb[0].mxu0
        %3353 = vdwg.mxu0
        %3354 = vrot.lane.b32.xlu0 %v3131, 64
        %v3355 = vpop.permute.xlu0 %3354
        %3356 = vrot.lane.b32.xlu0 %v3132, 64
        %v3357 = vpop.permute.xlu0 %3356
        %v3359 = vsel %vm3134, %v3355, 0
        %v3362 = vsel %vm3134, %v3357, 0
        %3364 = vmatprep.subr.bf16.mxu0 0
        %3365 = vmatpush1.bf16.xpose.msra.mxu0 %v3362
        %3366 = vmatprep.subr.bf16.mxu0 0
        %3367 = vmatpush1.bf16.xpose.msra.mxu0 0
        %3368 = vmatprep.subr.bf16.mxu0 0
        %3369 = vmatpush1.bf16.xpose.msra.mxu0 0
        %3370 = vmatprep.subr.bf16.mxu0 0
        %3371 = vmatpush1.bf16.xpose.msra.mxu0 0
        %3372 = vmatprep.subr.bf16.mxu0 0
        %3373 = vmatpush1.bf16.xpose.msra.mxu0 0
        %3374 = vmatprep.subr.bf16.mxu0 0
        %3375 = vmatpush1.bf16.xpose.msra.mxu0 0
        %3376 = vmatprep.subr.bf16.mxu0 0
        %3377 = vmatpush1.bf16.xpose.msra.mxu0 0
        %3378 = vmatprep.subr.bf16.mxu0 0
        %3379 = vmatpush1.bf16.xpose.msra.mxu0 0
        %3380 = vmatprep.subr.bf16.mxu0 0
        %3381 = vmatpush1.bf16.xpose.msra.mxu0 0
        %3382 = vmatprep.subr.bf16.mxu0 0
        %3383 = vmatpush1.bf16.xpose.msra.mxu0 0
        %3384 = vmatprep.subr.bf16.mxu0 0
        %3385 = vmatpush1.bf16.xpose.msra.mxu0 0
        %3386 = vmatprep.subr.bf16.mxu0 0
        %3387 = vmatpush1.bf16.xpose.msra.mxu0 0
        %3388 = vmatprep.subr.bf16.mxu0 0
        %3389 = vmatpush1.bf16.xpose.msra.mxu0 0
        %3390 = vmatprep.subr.bf16.mxu0 0
        %3391 = vmatpush1.bf16.xpose.msra.mxu0 0
        %3392 = vmatprep.subr.bf16.mxu0 0
        %3393 = vmatpush1.bf16.xpose.msra.mxu0 0
        %3394 = vmatprep.subr.bf16.mxu0 0
        %3395 = vmatpush1.bf16.xpose.msra.mxu0 0
        %3396 = vmatprep.mubr.bf16.mxu0 0
        %3397 = vmatmul.mubr.bf16.gmra.mrb[0].mxu0 %v3359
        %v3398 = vpop.f32.mrb[0].mxu0
        %v3399 = vadd.f32 0.0, %v3398
        %v3400 = vpop.f32.mrb[0].mxu0
        %v3401 = vpop.f32.mrb[0].mxu0
        %v3402 = vpop.f32.mrb[0].mxu0
        %3403 = vdwg.mxu0
        %v3404 = vsel %vm3181, %v3399, -inf
        %3405 = vmax.xlane.f32.xlu0 %v3404
        %v3406 = vpop.xlane.xlu0 %3405
        %v3407 = vsub.f32 %v3399, %v3406
        %v3408 = vmul.f32 %v3407, 1.442695
        %v3409 = vpow.pop %v3408
        %v3410 = vsel %vm3181, %v3409, 0.0
        %3411 = vadd.xlane.f32.xlu0 %v3410
        %v3412 = vpop.xlane.xlu0 %3411
        %v3413 = vrcp.pop %v3412
        %v3414 = vmul.f32 %v3409, %v3413
        %v3415 = vpack.c.bf16 %v3414, %v3414
        %3416 = vrot.lane.b32.xlu0 %v3133, 64
        %v3417 = vpop.permute.xlu0 %3416
        %v3419 = vsel %vm3194, %v3415, 0
        %v3422 = vsel %vm1631, %v3417, 0
        %3424 = vmatprep.subr.bf16.mxu0 0
        %3425 = vmatpush1.bf16.msra.mxu0 %v3422
        %3426 = vmatprep.subr.bf16.mxu0 0
        %3427 = vmatpush1.bf16.msra.mxu0 0
        %3428 = vmatprep.subr.bf16.mxu0 0
        %3429 = vmatpush1.bf16.msra.mxu0 0
        %3430 = vmatprep.subr.bf16.mxu0 0
        %3431 = vmatpush1.bf16.msra.mxu0 0
        %3432 = vmatprep.subr.bf16.mxu0 0
        %3433 = vmatpush1.bf16.msra.mxu0 0
        %3434 = vmatprep.subr.bf16.mxu0 0
        %3435 = vmatpush1.bf16.msra.mxu0 0
        %3436 = vmatprep.subr.bf16.mxu0 0
        %3437 = vmatpush1.bf16.msra.mxu0 0
        %3438 = vmatprep.subr.bf16.mxu0 0
        %3439 = vmatpush1.bf16.msra.mxu0 0
        %3440 = vmatprep.subr.bf16.mxu0 0
        %3441 = vmatpush1.bf16.msra.mxu0 0
        %3442 = vmatprep.subr.bf16.mxu0 0
        %3443 = vmatpush1.bf16.msra.mxu0 0
        %3444 = vmatprep.subr.bf16.mxu0 0
        %3445 = vmatpush1.bf16.msra.mxu0 0
        %3446 = vmatprep.subr.bf16.mxu0 0
        %3447 = vmatpush1.bf16.msra.mxu0 0
        %3448 = vmatprep.subr.bf16.mxu0 0
        %3449 = vmatpush1.bf16.msra.mxu0 0
        %3450 = vmatprep.subr.bf16.mxu0 0
        %3451 = vmatpush1.bf16.msra.mxu0 0
        %3452 = vmatprep.subr.bf16.mxu0 0
        %3453 = vmatpush1.bf16.msra.mxu0 0
        %3454 = vmatprep.subr.bf16.mxu0 0
        %3455 = vmatpush1.bf16.msra.mxu0 0
        %3456 = vmatprep.mubr.bf16.mxu0 0
        %3457 = vmatmul.mubr.bf16.gmra.mrb[0].mxu0 %v3419
        %v3458 = vpop.f32.mrb[0].mxu0
        %v3459 = vadd.f32 0.0, %v3458
        %v3460 = vpop.f32.mrb[0].mxu0
        %v3461 = vpop.f32.mrb[0].mxu0
        %v3462 = vpop.f32.mrb[0].mxu0
        %3463 = vdwg.mxu0
        %3464 = vrot.lane.b32.xlu0 %v3131, 32
        %v3465 = vpop.permute.xlu0 %3464
        %3466 = vrot.lane.b32.xlu0 %v3132, 32
        %v3467 = vpop.permute.xlu0 %3466
        %v3469 = vsel %vm3134, %v3465, 0
        %v3472 = vsel %vm3134, %v3467, 0
        %3474 = vmatprep.subr.bf16.mxu0 0
        %3475 = vmatpush1.bf16.xpose.msra.mxu0 %v3472
        %3476 = vmatprep.subr.bf16.mxu0 0
        %3477 = vmatpush1.bf16.xpose.msra.mxu0 0
        %3478 = vmatprep.subr.bf16.mxu0 0
        %3479 = vmatpush1.bf16.xpose.msra.mxu0 0
        %3480 = vmatprep.subr.bf16.mxu0 0
        %3481 = vmatpush1.bf16.xpose.msra.mxu0 0
        %3482 = vmatprep.subr.bf16.mxu0 0
        %3483 = vmatpush1.bf16.xpose.msra.mxu0 0
        %3484 = vmatprep.subr.bf16.mxu0 0
        %3485 = vmatpush1.bf16.xpose.msra.mxu0 0
        %3486 = vmatprep.subr.bf16.mxu0 0
        %3487 = vmatpush1.bf16.xpose.msra.mxu0 0
        %3488 = vmatprep.subr.bf16.mxu0 0
        %3489 = vmatpush1.bf16.xpose.msra.mxu0 0
        %3490 = vmatprep.subr.bf16.mxu0 0
        %3491 = vmatpush1.bf16.xpose.msra.mxu0 0
        %3492 = vmatprep.subr.bf16.mxu0 0
        %3493 = vmatpush1.bf16.xpose.msra.mxu0 0
        %3494 = vmatprep.subr.bf16.mxu0 0
        %3495 = vmatpush1.bf16.xpose.msra.mxu0 0
        %3496 = vmatprep.subr.bf16.mxu0 0
        %3497 = vmatpush1.bf16.xpose.msra.mxu0 0
        %3498 = vmatprep.subr.bf16.mxu0 0
        %3499 = vmatpush1.bf16.xpose.msra.mxu0 0
        %3500 = vmatprep.subr.bf16.mxu0 0
        %3501 = vmatpush1.bf16.xpose.msra.mxu0 0
        %3502 = vmatprep.subr.bf16.mxu0 0
        %3503 = vmatpush1.bf16.xpose.msra.mxu0 0
        %3504 = vmatprep.subr.bf16.mxu0 0
        %3505 = vmatpush1.bf16.xpose.msra.mxu0 0
        %3506 = vmatprep.mubr.bf16.mxu0 0
        %3507 = vmatmul.mubr.bf16.gmra.mrb[0].mxu0 %v3469
        %v3508 = vpop.f32.mrb[0].mxu0
        %v3509 = vadd.f32 0.0, %v3508
        %v3510 = vpop.f32.mrb[0].mxu0
        %v3511 = vpop.f32.mrb[0].mxu0
        %v3512 = vpop.f32.mrb[0].mxu0
        %3513 = vdwg.mxu0
        %v3514 = vsel %vm3181, %v3509, -inf
        %3515 = vmax.xlane.f32.xlu0 %v3514
        %v3516 = vpop.xlane.xlu0 %3515
        %v3517 = vsub.f32 %v3509, %v3516
        %v3518 = vmul.f32 %v3517, 1.442695
        %v3519 = vpow.pop %v3518
        %v3520 = vsel %vm3181, %v3519, 0.0
        %3521 = vadd.xlane.f32.xlu0 %v3520
        %v3522 = vpop.xlane.xlu0 %3521
        %v3523 = vrcp.pop %v3522
        %v3524 = vmul.f32 %v3519, %v3523
        %v3525 = vpack.c.bf16 %v3524, %v3524
        %3526 = vrot.lane.b32.xlu0 %v3133, 32
        %v3527 = vpop.permute.xlu0 %3526
        %v3529 = vsel %vm3194, %v3525, 0
        %v3532 = vsel %vm1631, %v3527, 0
        %3534 = vmatprep.subr.bf16.mxu0 0
        %3535 = vmatpush1.bf16.msra.mxu0 %v3532
        %3536 = vmatprep.subr.bf16.mxu0 0
        %3537 = vmatpush1.bf16.msra.mxu0 0
        %3538 = vmatprep.subr.bf16.mxu0 0
        %3539 = vmatpush1.bf16.msra.mxu0 0
        %3540 = vmatprep.subr.bf16.mxu0 0
        %3541 = vmatpush1.bf16.msra.mxu0 0
        %3542 = vmatprep.subr.bf16.mxu0 0
        %3543 = vmatpush1.bf16.msra.mxu0 0
        %3544 = vmatprep.subr.bf16.mxu0 0
        %3545 = vmatpush1.bf16.msra.mxu0 0
        %3546 = vmatprep.subr.bf16.mxu0 0
        %3547 = vmatpush1.bf16.msra.mxu0 0
        %3548 = vmatprep.subr.bf16.mxu0 0
        %3549 = vmatpush1.bf16.msra.mxu0 0
        %3550 = vmatprep.subr.bf16.mxu0 0
        %3551 = vmatpush1.bf16.msra.mxu0 0
        %3552 = vmatprep.subr.bf16.mxu0 0
        %3553 = vmatpush1.bf16.msra.mxu0 0
        %3554 = vmatprep.subr.bf16.mxu0 0
        %3555 = vmatpush1.bf16.msra.mxu0 0
        %3556 = vmatprep.subr.bf16.mxu0 0
        %3557 = vmatpush1.bf16.msra.mxu0 0
        %3558 = vmatprep.subr.bf16.mxu0 0
        %3559 = vmatpush1.bf16.msra.mxu0 0
        %3560 = vmatprep.subr.bf16.mxu0 0
        %3561 = vmatpush1.bf16.msra.mxu0 0
        %3562 = vmatprep.subr.bf16.mxu0 0
        %3563 = vmatpush1.bf16.msra.mxu0 0
        %3564 = vmatprep.subr.bf16.mxu0 0
        %3565 = vmatpush1.bf16.msra.mxu0 0
        %3566 = vmatprep.mubr.bf16.mxu0 0
        %3567 = vmatmul.mubr.bf16.gmra.mrb[0].mxu0 %v3529
        %v3568 = vpop.f32.mrb[0].mxu0
        %v3569 = vadd.f32 0.0, %v3568
        %v3570 = vpop.f32.mrb[0].mxu0
        %v3571 = vpop.f32.mrb[0].mxu0
        %v3572 = vpop.f32.mrb[0].mxu0
        %3573 = vdwg.mxu0
        %3575 = vrot.lane.b32.xlu0 %v3349, 32
        %v3576 = vpop.permute.xlu0 %3575
        %3579 = vrot.lane.b32.xlu0 %v3459, 64
        %v3580 = vpop.permute.xlu0 %3579
        %3583 = vrot.lane.b32.xlu0 %v3569, 96
        %v3584 = vpop.permute.xlu0 %3583
        %v3586 = vsel %vm3134, %v3236, %v3576
        %v3587 = vsel %vm2870, %v3586, %v3580
        %v3588 = vsel %vm1809, %v3587, %v3584
        %v3589 = vpack.c.bf16 %v3588, %v3588
        %v3590 = vld [vmem:[%s12] sm:$0xf]
        %v3591 = vld [vmem:[%s12 + $0x4] sm:$0xf]
        %v3592 = vld [vmem:[%s12 + $0x8] sm:$0xf]
        %v3593 = vld [vmem:[%s12 + $0xc] sm:$0xf]
        %v3594 = vld [vmem:[%s12 + $0x10] sm:$0xf]
        %v3595 = vld [vmem:[%s12 + $0x14] sm:$0xf]
        %v3596 = vld [vmem:[%s12 + $0x18] sm:$0xf]
        %v3597 = vld [vmem:[%s12 + $0x1c] sm:$0xf]
        %v3598 = vld [vmem:[%s12 + $0x20] sm:$0xf]
        %v3599 = vld [vmem:[%s12 + $0x24] sm:$0xf]
        %v3600 = vld [vmem:[%s12 + $0x28] sm:$0xf]
        %v3601 = vld [vmem:[%s12 + $0x2c] sm:$0xf]
        %v3602 = vld [vmem:[%s12 + $0x30] sm:$0xf]
        %v3603 = vld [vmem:[%s12 + $0x34] sm:$0xf]
        %v3604 = vld [vmem:[%s12 + $0x38] sm:$0xf]
        %v3605 = vld [vmem:[%s12 + $0x3c] sm:$0xf]
        %v3606 = vld [vmem:[%s13] sm:$0x1]
        %v3608 = vlaneseq
        %v3609 = vshrl.u32 %v3608, 7
        %v3610 = vsub.s32 0, %v3609
        %v3611 = vrot.slane %v3606, %v3610
        %v3629 = vunpack.c.l.b16 %v3590
        %v3630 = vunpack.c.l.b16 %v3591
        %v3631 = vunpack.c.l.b16 %v3592
        %v3632 = vunpack.c.l.b16 %v3593
        %v3633 = vunpack.c.l.b16 %v3594
        %v3634 = vunpack.c.l.b16 %v3595
        %v3635 = vunpack.c.l.b16 %v3596
        %v3636 = vunpack.c.l.b16 %v3597
        %v3637 = vunpack.c.l.b16 %v3598
        %v3638 = vunpack.c.l.b16 %v3599
        %v3639 = vunpack.c.l.b16 %v3600
        %v3640 = vunpack.c.l.b16 %v3601
        %v3641 = vunpack.c.l.b16 %v3602
        %v3642 = vunpack.c.l.b16 %v3603
        %v3643 = vunpack.c.l.b16 %v3604
        %v3644 = vunpack.c.l.b16 %v3605
        %v3645 = vpack.c.b16 %v3630, %v3629
        %v3646 = vpack.c.b16 %v3632, %v3631
        %v3647 = vpack.c.b16 %v3634, %v3633
        %v3648 = vpack.c.b16 %v3636, %v3635
        %v3649 = vpack.c.b16 %v3638, %v3637
        %v3650 = vpack.c.b16 %v3640, %v3639
        %v3651 = vpack.c.b16 %v3642, %v3641
        %v3652 = vpack.c.b16 %v3644, %v3643
        %3661 = vmatprep.subr.bf16.mxu0 0
        %3662 = vmatpush1.bf16.msra.mxu0 %v3645
        %3663 = vmatprep.subr.bf16.mxu0 0
        %3664 = vmatpush1.bf16.msra.mxu0 %v3646
        %3665 = vmatprep.subr.bf16.mxu0 0
        %3666 = vmatpush1.bf16.msra.mxu0 %v3647
        %3667 = vmatprep.subr.bf16.mxu0 0
        %3668 = vmatpush1.bf16.msra.mxu0 %v3648
        %3669 = vmatprep.subr.bf16.mxu0 0
        %3670 = vmatpush1.bf16.msra.mxu0 %v3649
        %3671 = vmatprep.subr.bf16.mxu0 0
        %3672 = vmatpush1.bf16.msra.mxu0 %v3650
        %3673 = vmatprep.subr.bf16.mxu0 0
        %3674 = vmatpush1.bf16.msra.mxu0 %v3651
        %3675 = vmatprep.subr.bf16.mxu0 0
        %3676 = vmatpush1.bf16.msra.mxu0 %v3652
        %3677 = vmatprep.subr.bf16.mxu0 0
        %3678 = vmatpush1.bf16.msra.mxu0 0
        %3679 = vmatprep.subr.bf16.mxu0 0
        %3680 = vmatpush1.bf16.msra.mxu0 0
        %3681 = vmatprep.subr.bf16.mxu0 0
        %3682 = vmatpush1.bf16.msra.mxu0 0
        %3683 = vmatprep.subr.bf16.mxu0 0
        %3684 = vmatpush1.bf16.msra.mxu0 0
        %3685 = vmatprep.subr.bf16.mxu0 0
        %3686 = vmatpush1.bf16.msra.mxu0 0
        %3687 = vmatprep.subr.bf16.mxu0 0
        %3688 = vmatpush1.bf16.msra.mxu0 0
        %3689 = vmatprep.subr.bf16.mxu0 0
        %3690 = vmatpush1.bf16.msra.mxu0 0
        %3691 = vmatprep.subr.bf16.mxu0 0
        %3692 = vmatpush1.bf16.msra.mxu0 0
        %3693 = vmatprep.mubr.bf16.mxu0 0
        %3694 = vmatmul.mubr.bf16.gmra.mrb[0].mxu0 %v3589
        %v3695 = vpop.f32.mrb[0].mxu0
        %v3696 = vadd.f32 %v3611, %v3695
        %v3697 = vpop.f32.mrb[0].mxu0
        %v3698 = vpop.f32.mrb[0].mxu0
        %v3699 = vpop.f32.mrb[0].mxu0
        %3700 = vdwg.mxu0
        %vm3701 = vcmask 1045504
        %v3702 = vsel %vm3701, %v3696, 0.0
        %v3703 = vrot.slane %v3702, 4
        %v3704 = vadd.f32 %v3702, %v3703
        %v3705 = vrot.slane %v3704, 2
        %v3706 = vadd.f32 %v3704, %v3705
        %v3707 = vrot.slane %v3706, 1
        %v3708 = vadd.f32 %v3706, %v3707
        %v3709 = vmul.f32 %v3708, 0.16666667
        %v3710 = vld [vmem:[%s14] sm:$0xff]
        %v3711 = vld [vmem:[%s14 + $0x8] sm:$0xff]
        %v3712 = vld [vmem:[%s14 + $0x10] sm:$0xff]
        %v3713 = vld [vmem:[%s14 + $0x18] sm:$0xff]
        %v3714 = vld [vmem:[%s14 + $0x20] sm:$0xff]
        %v3715 = vld [vmem:[%s14 + $0x28] sm:$0xff]
        %v3716 = vld [vmem:[%s14 + $0x30] sm:$0xff]
        %v3717 = vld [vmem:[%s14 + $0x38] sm:$0xff]
        %v3718 = vld [vmem:[%s14 + $0x40] sm:$0xff]
        %v3719 = vld [vmem:[%s14 + $0x48] sm:$0xff]
        %v3720 = vld [vmem:[%s14 + $0x50] sm:$0xff]
        %v3721 = vld [vmem:[%s14 + $0x58] sm:$0xff]
        %v3722 = vld [vmem:[%s14 + $0x60] sm:$0xff]
        %v3723 = vld [vmem:[%s14 + $0x68] sm:$0xff]
        %v3724 = vld [vmem:[%s14 + $0x70] sm:$0xff]
        %v3725 = vld [vmem:[%s14 + $0x78] sm:$0xff]
        %v3726 = vld [vmem:[%s15] sm:$0x1]
        %3727 = vmatprep.subr.mxu0 0.0
        %3728 = vmatpush1.msra.mxu0 %v3710
        %3729 = vmatprep.subr.mxu0 0.0
        %3730 = vmatpush1.msra.mxu0 %v3711
        %3731 = vmatprep.subr.mxu0 0.0
        %3732 = vmatpush1.msra.mxu0 %v3712
        %3733 = vmatprep.subr.mxu0 0.0
        %3734 = vmatpush1.msra.mxu0 %v3713
        %3735 = vmatprep.subr.mxu0 0.0
        %3736 = vmatpush1.msra.mxu0 %v3714
        %3737 = vmatprep.subr.mxu0 0.0
        %3738 = vmatpush1.msra.mxu0 %v3715
        %3739 = vmatprep.subr.mxu0 0.0
        %3740 = vmatpush1.msra.mxu0 %v3716
        %3741 = vmatprep.subr.mxu0 0.0
        %3742 = vmatpush1.msra.mxu0 %v3717
        %3743 = vmatprep.subr.mxu0 0.0
        %3744 = vmatpush1.msra.mxu0 %v3718
        %3745 = vmatprep.subr.mxu0 0.0
        %3746 = vmatpush1.msra.mxu0 %v3719
        %3747 = vmatprep.subr.mxu0 0.0
        %3748 = vmatpush1.msra.mxu0 %v3720
        %3749 = vmatprep.subr.mxu0 0.0
        %3750 = vmatpush1.msra.mxu0 %v3721
        %3751 = vmatprep.subr.mxu0 0.0
        %3752 = vmatpush1.msra.mxu0 %v3722
        %3753 = vmatprep.subr.mxu0 0.0
        %3754 = vmatpush1.msra.mxu0 %v3723
        %3755 = vmatprep.subr.mxu0 0.0
        %3756 = vmatpush1.msra.mxu0 %v3724
        %3757 = vmatprep.subr.mxu0 0.0
        %3758 = vmatpush1.msra.mxu0 %v3725
        %3759 = vmatprep.subr.mxu0 0.0
        %3760 = vmatpush1.msra.mxu0 0.0
        %3761 = vmatprep.subr.mxu0 0.0
        %3762 = vmatpush1.msra.mxu0 0.0
        %3763 = vmatprep.subr.mxu0 0.0
        %3764 = vmatpush1.msra.mxu0 0.0
        %3765 = vmatprep.subr.mxu0 0.0
        %3766 = vmatpush1.msra.mxu0 0.0
        %3767 = vmatprep.subr.mxu0 0.0
        %3768 = vmatpush1.msra.mxu0 0.0
        %3769 = vmatprep.subr.mxu0 0.0
        %3770 = vmatpush1.msra.mxu0 0.0
        %3771 = vmatprep.subr.mxu0 0.0
        %3772 = vmatpush1.msra.mxu0 0.0
        %3773 = vmatprep.subr.mxu0 0.0
        %3774 = vmatpush1.msra.mxu0 0.0
        %3775 = vmatprep.subr.mxu0 0.0
        %3776 = vmatpush1.msra.mxu0 0.0
        %3777 = vmatprep.subr.mxu0 0.0
        %3778 = vmatpush1.msra.mxu0 0.0
        %3779 = vmatprep.subr.mxu0 0.0
        %3780 = vmatpush1.msra.mxu0 0.0
        %3781 = vmatprep.subr.mxu0 0.0
        %3782 = vmatpush1.msra.mxu0 0.0
        %3783 = vmatprep.subr.mxu0 0.0
        %3784 = vmatpush1.msra.mxu0 0.0
        %3785 = vmatprep.subr.mxu0 0.0
        %3786 = vmatpush1.msra.mxu0 0.0
        %3787 = vmatprep.subr.mxu0 0.0
        %3788 = vmatpush1.msra.mxu0 0.0
        %3789 = vmatprep.subr.mxu0 0.0
        %3790 = vmatpush1.msra.mxu0 0.0
        %3791 = vmatprep.mubr.f32.mxu0 0.0
        %3792 = vmatmul.mubr.f32.gmra.mrb[0].mxu0 %v3709
        %v3793 = vpop.f32.mrb[0].mxu0
        %v3794 = vadd.f32 %v3726, %v3793
        %v3795 = vpop.f32.mrb[0].mxu0
        %3796 = vdwg.mxu0
        %v3797 = vld [vmem:[%s16] sm:$0xff]
        %v3798 = vld [vmem:[%s16 + $0x8] sm:$0xff]
        %v3799 = vld [vmem:[%s16 + $0x10] sm:$0xff]
        %v3800 = vld [vmem:[%s16 + $0x18] sm:$0xff]
        %v3801 = vld [vmem:[%s17] sm:$0x1]
        %v3803 = vsel %vm3134, %v3794, 0
        %3805 = vmatprep.subr.mxu0 0.0
        %3806 = vmatpush1.msra.mxu0 %v3797
        %3807 = vmatprep.subr.mxu0 0.0
        %3808 = vmatpush1.msra.mxu0 %v3798
        %3809 = vmatprep.subr.mxu0 0.0
        %3810 = vmatpush1.msra.mxu0 %v3799
        %3811 = vmatprep.subr.mxu0 0.0
        %3812 = vmatpush1.msra.mxu0 %v3800
        %3813 = vmatprep.subr.mxu0 0.0
        %3814 = vmatpush1.msra.mxu0 0.0
        %3815 = vmatprep.subr.mxu0 0.0
        %3816 = vmatpush1.msra.mxu0 0.0
        %3817 = vmatprep.subr.mxu0 0.0
        %3818 = vmatpush1.msra.mxu0 0.0
        %3819 = vmatprep.subr.mxu0 0.0
        %3820 = vmatpush1.msra.mxu0 0.0
        %3821 = vmatprep.subr.mxu0 0.0
        %3822 = vmatpush1.msra.mxu0 0.0
        %3823 = vmatprep.subr.mxu0 0.0
        %3824 = vmatpush1.msra.mxu0 0.0
        %3825 = vmatprep.subr.mxu0 0.0
        %3826 = vmatpush1.msra.mxu0 0.0
        %3827 = vmatprep.subr.mxu0 0.0
        %3828 = vmatpush1.msra.mxu0 0.0
        %3829 = vmatprep.subr.mxu0 0.0
        %3830 = vmatpush1.msra.mxu0 0.0
        %3831 = vmatprep.subr.mxu0 0.0
        %3832 = vmatpush1.msra.mxu0 0.0
        %3833 = vmatprep.subr.mxu0 0.0
        %3834 = vmatpush1.msra.mxu0 0.0
        %3835 = vmatprep.subr.mxu0 0.0
        %3836 = vmatpush1.msra.mxu0 0.0
        %3837 = vmatprep.subr.mxu0 0.0
        %3838 = vmatpush1.msra.mxu0 0.0
        %3839 = vmatprep.subr.mxu0 0.0
        %3840 = vmatpush1.msra.mxu0 0.0
        %3841 = vmatprep.subr.mxu0 0.0
        %3842 = vmatpush1.msra.mxu0 0.0
        %3843 = vmatprep.subr.mxu0 0.0
        %3844 = vmatpush1.msra.mxu0 0.0
        %3845 = vmatprep.subr.mxu0 0.0
        %3846 = vmatpush1.msra.mxu0 0.0
        %3847 = vmatprep.subr.mxu0 0.0
        %3848 = vmatpush1.msra.mxu0 0.0
        %3849 = vmatprep.subr.mxu0 0.0
        %3850 = vmatpush1.msra.mxu0 0.0
        %3851 = vmatprep.subr.mxu0 0.0
        %3852 = vmatpush1.msra.mxu0 0.0
        %3853 = vmatprep.subr.mxu0 0.0
        %3854 = vmatpush1.msra.mxu0 0.0
        %3855 = vmatprep.subr.mxu0 0.0
        %3856 = vmatpush1.msra.mxu0 0.0
        %3857 = vmatprep.subr.mxu0 0.0
        %3858 = vmatpush1.msra.mxu0 0.0
        %3859 = vmatprep.subr.mxu0 0.0
        %3860 = vmatpush1.msra.mxu0 0.0
        %3861 = vmatprep.subr.mxu0 0.0
        %3862 = vmatpush1.msra.mxu0 0.0
        %3863 = vmatprep.subr.mxu0 0.0
        %3864 = vmatpush1.msra.mxu0 0.0
        %3865 = vmatprep.subr.mxu0 0.0
        %3866 = vmatpush1.msra.mxu0 0.0
        %3867 = vmatprep.subr.mxu0 0.0
        %3868 = vmatpush1.msra.mxu0 0.0
        %3869 = vmatprep.mubr.f32.mxu0 0.0
        %3870 = vmatmul.mubr.f32.gmra.mrb[0].mxu0 %v3803
        %v3871 = vpop.f32.mrb[0].mxu0
        %v3872 = vadd.f32 %v3801, %v3871
        %v3873 = vpop.f32.mrb[0].mxu0
        %3874 = vdwg.mxu0
        %vm3875 = vcmask 253952
        %3876 = vst.msk [vmem:[%s598] sm:$0x1] %vm3875, %v3794
        %vm3877 = vcmask 8192
        %3878 = vst.msk [vmem:[%s604] sm:$0x1] %vm3877, %v3872
        %s3879 = sand.u32 %s428, 1
        %s3880 = scalar_lea.sflag [#allocation5], %s3879
        %s3881 = sand.u32 %s428, 1
        %s3882 = scalar_lea.vmem [#allocation4], %s3881
        %s3883 = sand.u32 %s454, 1
        %s3884 = scalar_lea.sflag [#allocation7], %s3883
        %s3885 = sand.u32 %s454, 1
        %s3886 = scalar_lea.vmem [#allocation6], %s3885
        // Predicated region
        $region93: #{attention_backbone_forward.1} parent=91 // pred_check
          %p3887 = pneg %p438
        $region94: #{attention_backbone_forward.1} parent=91 // pred_check_branch
          %3889 = sbr.rel (%p3887) target = $region96
        $region95: #{attention_backbone_forward.1} parent=91 // pred_region
          %s3891 = ssub.s32 16, 16
          %3892 = vsyncadd %s3880, %s3891
          %s3893 = smul.addr %s37, 16
          %s3894 = scalar_lea.hbm %s18, %s3893
          %s3896 = sshll.u32 %s3882, 4
          %s3897 = int_to_ptr.vmem [resolvable:$true] %s3896
          %3899 = dma.vmem_to_hbm [thread:$0]  %s3897, 16, %s3894, %s3880
        $region96: #{attention_backbone_forward.1} parent=91 // pred_fallthru
          _
        // Predicated region
        $region97: #{attention_backbone_forward.1} parent=91 // pred_check
          %p3900 = pneg %p464
        $region98: #{attention_backbone_forward.1} parent=91 // pred_check_branch
          %3902 = sbr.rel (%p3900) target = $region100
        $region99: #{attention_backbone_forward.1} parent=91 // pred_region
          %s3904 = ssub.s32 16, 16
          %3905 = vsyncadd %s3884, %s3904
          %s3906 = smul.addr %s37, 16
          %s3907 = scalar_lea.hbm %s19, %s3906
          %s3909 = sshll.u32 %s3886, 4
          %s3910 = int_to_ptr.vmem [resolvable:$true] %s3909
          %3912 = dma.vmem_to_hbm [thread:$0]  %s3910, 16, %s3907, %s3884
        $region100: #{attention_backbone_forward.1} parent=91 // pred_fallthru
          _
      $region92: #{attention_backbone_forward.1} parent=5 // pred_fallthru
        _
      %p3913 = scmp.le.s32.totalorder 2, %s32
      // Predicated region
      $region101: #{attention_backbone_forward.1} parent=5 // pred_check
        %p3914 = pneg %p3913
      $region102: #{attention_backbone_forward.1} parent=5 // pred_check_branch
        %3916 = sbr.rel (%p3914) target = $region104
      $region103: #{attention_backbone_forward.1} parent=5 // pred_region
        %s3917 = ssub.s32 %s32, 2
        // Predicated region
        $region105: #{attention_backbone_forward.1} parent=103 // pred_check
          %p3918 = pneg %p444
        $region106: #{attention_backbone_forward.1} parent=103 // pred_check_branch
          %3920 = sbr.rel (%p3918) target = $region108
        $region107: #{attention_backbone_forward.1} parent=103 // pred_region
          %s3921 = sand.u32 %s429, 1
          %s3922 = scalar_lea.sflag [#allocation5], %s3921
          %s3923 = sand.u32 %s429, 1
          %s3924 = scalar_lea.vmem [#allocation4], %s3923
          %3925 = dma.done %s3922, 16
        $region108: #{attention_backbone_forward.1} parent=103 // pred_fallthru
          _
        // Predicated region
        $region109: #{attention_backbone_forward.1} parent=103 // pred_check
          %p3926 = pneg %p470
        $region110: #{attention_backbone_forward.1} parent=103 // pred_check_branch
          %3928 = sbr.rel (%p3926) target = $region112
        $region111: #{attention_backbone_forward.1} parent=103 // pred_region
          %s3929 = sand.u32 %s455, 1
          %s3930 = scalar_lea.sflag [#allocation7], %s3929
          %s3931 = sand.u32 %s455, 1
          %s3932 = scalar_lea.vmem [#allocation6], %s3931
          %3933 = dma.done %s3930, 16
        $region112: #{attention_backbone_forward.1} parent=103 // pred_fallthru
          _
      $region104: #{attention_backbone_forward.1} parent=5 // pred_fallthru
        _
    $region6: #{attention_backbone_forward.1} parent=1 // loop_footer
      %s36 = sadd.s32 1, %s32
    $region7: #{attention_backbone_forward.1} parent=1 // loop_footer_branch
      %31 = sbr.rel target = $region3
    $region8: #{attention_backbone_forward.1} parent=1 // loop_exit
      _
    %3934 = vsyncpa [#allocation5], 1
    %s3935 = scalar_lea.sflag [#allocation5], 1
    %3936 = vsyncpa %s3935, 1
    %3937 = vsyncpa [#allocation7], 1
    %s3938 = scalar_lea.sflag [#allocation7], 1
    %3939 = vsyncpa %s3938, 1

</llo_original>
